<compile_context>
chip_gen: v5e
topology: v5e:2x2
jax: 0.10.0
libtpu: 0.0.40
codegen_flags: <defaults>
</compile_context>

<pallas_src>
from math import sqrt

import jax
import jax.numpy as jnp
import numpy as np
from jax import lax
from jax.experimental import pallas as pl
from jax.experimental.pallas import tpu as pltpu

FEATURE = 128        # stands in for the hard-coded 1115 in word_to_sent
NUM_CLASSES = 8
HIDDEN = 128
DECODER_LAYERS = 2   # decoder LSTM layers (layer0: F+C -> H, layer1: H -> H)
B_SENT = 4           # sentences == tags == greedy decode steps
T_WORDS = 6          # words per sentence


def _lstm_cell(pre_gates, c, H):
    # PyTorch gate order: input, forget, cell(g), output
    i = jax.nn.sigmoid(pre_gates[:, 0:H])
    f = jax.nn.sigmoid(pre_gates[:, H:2 * H])
    g = jnp.tanh(pre_gates[:, 2 * H:3 * H])
    o = jax.nn.sigmoid(pre_gates[:, 3 * H:4 * H])
    c_new = f * c + i * g
    h_new = o * jnp.tanh(c_new)
    return h_new, c_new


def decoder_loss_kernel(
    x_ref,        # (T, Bp, F) f32, VMEM   word features, time-major, batch-padded
    tag_ref,      # (B,)       i32, SMEM   one tag per (real) sentence
    ws_wih_ref,   # (F, 4F)   bf16  word_to_sent W_ih^T
    ws_whh_ref,   # (F, 4F)   bf16  word_to_sent W_hh^T
    ws_b_ref,     # (1, 4F)   f32   word_to_sent b_ih + b_hh
    d_wx_ref,     # (F, 4H)   bf16  decoder L0 W_ih^T (feature part)
    d_wc_ref,     # (C, 4H)   f32   decoder L0 W_ih^T (one-hot part) -> row select
    d_whh0_ref,   # (H, 4H)   bf16
    d_b0_ref,     # (1, 4H)   f32
    d_w1_ref,     # (2H, 4H)  bf16  decoder L1: vstack(W_ih1^T, W_hh1^T) (fused)
    d_b1_ref,     # (1, 4H)   f32
    lin_w_ref,    # (H, C)    bf16  linear W^T
    lin_b_ref,    # (1, C)    f32
    loss_ref,     # (1, 1)    f32 output (summed cross entropy)
    xw_ref,       # scratch VMEM (T, Bp, 4F): hoisted word_to_sent input proj
    inp_ref,      # scratch VMEM (Bp, 4H):    hoisted decoder input proj
):
    T, Bp, F = x_ref.shape
    H = d_whh0_ref.shape[0]
    C = lin_w_ref.shape[1]
    B = tag_ref.shape[0]          # actual number of sentences to decode

    # ---- hoisted word_to_sent input projection: one big (T*Bp, F) matmul ---
    x_all = x_ref[...].reshape(T * Bp, F).astype(jnp.bfloat16)
    xw = (jnp.dot(x_all, ws_wih_ref[...], preferred_element_type=jnp.float32)
          + ws_b_ref[...])
    xw_ref[...] = xw.reshape(T, Bp, 4 * F)

    ws_whh = ws_whh_ref[...]                               # bf16

    # ---- word_to_sent LSTM: keep only the final hidden state --------------
    def ws_step(t, carry):
        h, c = carry
        pre = xw_ref[t] + jnp.dot(h.astype(jnp.bfloat16), ws_whh,
                                  preferred_element_type=jnp.float32)
        return _lstm_cell(pre, c, F)

    zbf = jnp.zeros((Bp, F), jnp.float32)
    sent_feat, _ = lax.fori_loop(0, T, ws_step, (zbf, zbf),
                                 unroll=True)                     # (Bp, F) f32

    # ---- hoisted decoder input projection (all rows at once) --------------
    inp_ref[...] = (jnp.dot(sent_feat.astype(jnp.bfloat16), d_wx_ref[...],
                            preferred_element_type=jnp.float32)
                    + d_b0_ref[...])                              # (Bp, 4H) f32

    d_wc = d_wc_ref[...]                                          # f32 (C, 4H)
    d_whh0 = d_whh0_ref[...]                                      # bf16
    d_w1, d_b1 = d_w1_ref[...], d_b1_ref[...]                     # bf16 / f32
    lin_w, lin_b = lin_w_ref[...], lin_b_ref[...]                 # bf16 / f32

    iota_c = lax.broadcasted_iota(jnp.int32, (1, C), 1)           # lane iota
    iota_rows = lax.broadcasted_iota(jnp.int32, (C, 1), 0)        # sublane iota

    # ---- greedy decoder: 2-layer LSTM + linear + summed cross entropy -----
    # All scalar-ish state (pred, loss, lse, ...) stays as (1,1) vreg values;
    # no vreg->sreg crossings on the argmax-feedback chain.
    def dec_step(i, carry):
        pred, loss, h_0, c_0, h_1, c_1 = carry

        inp_i = inp_ref[pl.ds(i, 1), :]                   # (1, 4H) VMEM load
        # in-vreg "gather" of d_wc row `pred`: compare + select + sublane sum
        wc_row = jnp.sum(jnp.where(iota_rows == pred, d_wc, 0.0),
                         axis=0, keepdims=True)           # (1, 4H)
        pre0 = inp_i + wc_row + jnp.dot(h_0.astype(jnp.bfloat16), d_whh0,
                                        preferred_element_type=jnp.float32)
        h_0n, c_0n = _lstm_cell(pre0, c_0, H)

        # fused layer-1: [h0, h1] (1, 2H) @ (2H, 4H) — one MXU op per step
        h01 = jnp.concatenate([h_0n, h_1], axis=1).astype(jnp.bfloat16)
        pre1 = (jnp.dot(h01, d_w1, preferred_element_type=jnp.float32)
                + d_b1)
        h_1n, c_1n = _lstm_cell(pre1, c_1, H)

        # TODO(synk): dropout(p=0.5) between the LSTM and linear is treated as
        # identity (eval semantics); stochastic masking is not reproduced.
        logits = (jnp.dot(h_1n.astype(jnp.bfloat16), lin_w,
                          preferred_element_type=jnp.float32)
                  + lin_b)                                        # (1, C)

        mx = jnp.max(logits, axis=1, keepdims=True)               # (1, 1)
        pred_new = jnp.min(jnp.where(logits == mx, iota_c, C),
                           axis=1, keepdims=True).astype(jnp.int32)  # (1, 1)

        t = tag_ref[i]
        lse = mx + jnp.log(jnp.sum(jnp.exp(logits - mx),
                                   axis=1, keepdims=True))        # (1, 1)
        tgt = jnp.sum(jnp.where(iota_c == t, logits, 0.0),
                      axis=1, keepdims=True)                      # (1, 1)
        step_loss = jnp.where(t == 0, 0.0, lse - tgt)   # ignore_index=0, sum

        return (pred_new, loss + step_loss, h_0n, c_0n, h_1n, c_1n)

    z1h = jnp.zeros((1, H), jnp.float32)
    init = (jnp.zeros((1, 1), jnp.int32), jnp.zeros((1, 1), jnp.float32),
            z1h, z1h, z1h, z1h)
    _, loss, *_ = lax.fori_loop(0, B, dec_step, init, unroll=True)
    loss_ref[...] = loss


def decoder_forward(x, tags, params):
    """x: (B_sent, T, F) f32 (batch_first, like torch); tags: (B_sent,) int."""
    B, T, F = x.shape
    H = HIDDEN
    # Pad the sentence batch to a multiple of 8 so gate tensors are
    # sublane-dense; the decode loop only touches the first B real rows.
    Bp = ((B + 7) // 8) * 8
    x_pad = jnp.pad(x.astype(jnp.float32), ((0, Bp - B), (0, 0), (0, 0)))
    x_tbf = jnp.transpose(x_pad, (1, 0, 2))            # time-major (T, Bp, F)

    # Scoped-VMEM limit sized from the actual residency (+ headroom).
    scratch_bytes = (T * Bp * 4 * F + Bp * 4 * H) * 4
    arg_bytes = (x_tbf.size * 4
                 + sum(int(p.size) * p.dtype.itemsize for p in params))
    vmem_limit = int(2 * (arg_bytes + scratch_bytes)) + (8 << 20)

    in_specs = ([pl.BlockSpec(memory_space=pltpu.MemorySpace.VMEM),
                 pl.BlockSpec(memory_space=pltpu.MemorySpace.SMEM)]
                + [pl.BlockSpec(memory_space=pltpu.MemorySpace.VMEM)]
                * len(params))
    out = pl.pallas_call(
        decoder_loss_kernel,
        out_shape=jax.ShapeDtypeStruct((1, 1), jnp.float32),
        in_specs=in_specs,
        out_specs=pl.BlockSpec(memory_space=pltpu.MemorySpace.VMEM),
        scratch_shapes=[
            pltpu.VMEM((T, Bp, 4 * F), jnp.float32),   # hoisted ws input proj
            pltpu.VMEM((Bp, 4 * H), jnp.float32),      # hoisted decoder proj
        ],
        compiler_params=pltpu.CompilerParams(vmem_limit_bytes=vmem_limit),
    )(x_tbf, tags.astype(jnp.int32), *params)
    return out[0, 0]


def init_params(key):
    F, H, C = FEATURE, HIDDEN, NUM_CLASSES
    ks = jax.random.split(key, 8)

    def glorot_uniform(k, shape):
        b = sqrt(6.0 / (shape[0] + shape[1]))
        return jax.random.uniform(k, shape, jnp.float32, -b, b)

    # word_to_sent LSTM (PyTorch default init: U(-1/sqrt(H), 1/sqrt(H)))
    s = 1.0 / sqrt(F)
    ws_wih = jax.random.uniform(ks[0], (4 * F, F), jnp.float32, -s, s)
    ws_whh = jax.random.uniform(ks[1], (4 * F, F), jnp.float32, -s, s)
    ws_b = jax.random.uniform(ks[2], (2, 4 * F), jnp.float32, -s, s).sum(0)

    # decoder LSTM, init as in init_weight(): Glorot-uniform weights,
    # biases 0 with forget-gate slice set to 1 (b_ih + b_hh -> 2).
    w_ih0 = glorot_uniform(ks[3], (4 * H, F + C))
    w_hh0 = glorot_uniform(ks[4], (4 * H, H))
    w_ih1 = glorot_uniform(ks[5], (4 * H, H))
    w_hh1 = glorot_uniform(ks[6], (4 * H, H))
    b_comb = jnp.zeros((4 * H,), jnp.float32).at[H:2 * H].set(2.0)

    lin_w = glorot_uniform(ks[7], (C, H))
    lin_b = jnp.zeros((C,), jnp.float32)

    bf = jnp.bfloat16
    d_w1 = jnp.vstack([w_ih1.T, w_hh1.T])              # (2H, 4H) fused layer-1
    return (
        ws_wih.T.astype(bf), ws_whh.T.astype(bf), ws_b.reshape(1, 4 * F),
        w_ih0[:, :F].T.astype(bf), w_ih0[:, F:].T,      # d_wc stays f32 (select)
        w_hh0.T.astype(bf), b_comb.reshape(1, 4 * H),
        d_w1.astype(bf), b_comb.reshape(1, 4 * H),
        lin_w.T.astype(bf), lin_b.reshape(1, C),
    )


def reference_loss(x, tags, params):
    """Pure-JAX re-implementation (same mixed-precision math) as a check."""
    (ws_wih, ws_whh, ws_b, d_wx, d_wc, d_whh0, d_b0,
     d_w1, d_b1, lin_w, lin_b) = params
    F, H, C = FEATURE, HIDDEN, NUM_CLASSES

    def bdot(a, w):
        return jnp.dot(a.astype(jnp.bfloat16), w,
                       preferred_element_type=jnp.float32)

    def cell(pre, c, n):
        i = jax.nn.sigmoid(pre[:, :n]); f = jax.nn.sigmoid(pre[:, n:2 * n])
        g = jnp.tanh(pre[:, 2 * n:3 * n]); o = jax.nn.sigmoid(pre[:, 3 * n:])
        c = f * c + i * g
        return o * jnp.tanh(c), c

    x_tbf = jnp.transpose(x, (1, 0, 2)).astype(jnp.float32)
    T, B, _ = x_tbf.shape
    h = jnp.zeros((B, F)); c = jnp.zeros((B, F))
    for t in range(T):
        h, c = cell(bdot(x_tbf[t], ws_wih) + bdot(h, ws_whh) + ws_b, c, F)

    pred = 0
    loss = 0.0
    h0 = c0 = h1 = c1 = jnp.zeros((1, H))
    iota_c = jnp.arange(C)[None, :]
    for i in range(B):
        onehot = (iota_c == pred).astype(jnp.float32)
        h0, c0 = cell(bdot(h[i:i + 1], d_wx) + onehot @ d_wc
                      + bdot(h0, d_whh0) + d_b0, c0, H)
        h1, c1 = cell(bdot(jnp.concatenate([h0, h1], axis=1), d_w1) + d_b1,
                      c1, H)
        logits = bdot(h1, lin_w) + lin_b
        pred = jnp.argmax(logits, axis=1)[0]
        t = tags[i]
        lse = jax.nn.logsumexp(logits, axis=1)[0]
        loss = loss + jnp.where(t == 0, 0.0, lse - logits[0, t])
    return loss


if __name__ == "__main__":
    key = jax.random.PRNGKey(0)
    kx, kt, kp = jax.random.split(key, 3)

    x = jax.random.normal(kx, (B_SENT, T_WORDS, FEATURE), jnp.float32)
    tags = jax.random.randint(kt, (B_SENT,), 0, NUM_CLASSES, jnp.int32)
    params = init_params(kp)

    loss = decoder_forward(x, tags, params)
    loss = jax.block_until_ready(loss)

    ref = jax.block_until_ready(reference_loss(x, tags, params))
    assert np.isfinite(float(loss)), "non-finite loss"
    np.testing.assert_allclose(float(loss), float(ref), rtol=2e-3, atol=2e-3)

    print("KERNEL_OK")
</pallas_src>

<mosaic_0001>
module attributes {stable_mosaic.version = 11 : i64} {
  func.func @decoder_loss_kernel(%arg0: memref<6x8x128xf32, #tpu.memory_space<vmem>>, %arg1: memref<4xi32, #tpu.memory_space<smem>>, %arg2: memref<128x512xbf16, #tpu.memory_space<vmem>>, %arg3: memref<128x512xbf16, #tpu.memory_space<vmem>>, %arg4: memref<1x512xf32, #tpu.memory_space<vmem>>, %arg5: memref<128x512xbf16, #tpu.memory_space<vmem>>, %arg6: memref<8x512xf32, #tpu.memory_space<vmem>>, %arg7: memref<128x512xbf16, #tpu.memory_space<vmem>>, %arg8: memref<1x512xf32, #tpu.memory_space<vmem>>, %arg9: memref<256x512xbf16, #tpu.memory_space<vmem>>, %arg10: memref<1x512xf32, #tpu.memory_space<vmem>>, %arg11: memref<128x8xbf16, #tpu.memory_space<vmem>>, %arg12: memref<1x8xf32, #tpu.memory_space<vmem>>, %arg13: memref<1x1xf32, #tpu.memory_space<vmem>>, %arg14: memref<6x8x512xf32, #tpu.memory_space<vmem>>, %arg15: memref<8x512xf32, #tpu.memory_space<vmem>>) attributes {dimension_semantics = [], scalar_prefetch = 0 : i64, scratch_operands = 2 : i64, tpu.core_type = #tpu.core_type<tc>} {
    %c0 = arith.constant 0 : index
    %c0_0 = arith.constant 0 : index
    %c0_1 = arith.constant 0 : index
    %0 = vector.load %arg0[%c0, %c0_0, %c0_1] : memref<6x8x128xf32, #tpu.memory_space<vmem>>, vector<6x8x128xf32>
    %1 = vector.shape_cast %0 : vector<6x8x128xf32> to vector<48x128xf32>
    %2 = arith.truncf %1 : vector<48x128xf32> to vector<48x128xbf16>
    %c0_2 = arith.constant 0 : index
    %c0_3 = arith.constant 0 : index
    %3 = vector.load %arg2[%c0_2, %c0_3] : memref<128x512xbf16, #tpu.memory_space<vmem>>, vector<128x512xbf16>
    %cst = arith.constant dense<0.000000e+00> : vector<48x512xf32>
    %4 = tpu.matmul %2, %3, %cst {dimension_numbers = #tpu.dot_dimension_numbers<[1], [0], [0], [1], [0, 0, 1, 1], [], []>} : vector<48x128xbf16>, vector<128x512xbf16>, vector<48x512xf32> -> vector<48x512xf32>
    %c0_4 = arith.constant 0 : index
    %c0_5 = arith.constant 0 : index
    %5 = vector.load %arg4[%c0_4, %c0_5] : memref<1x512xf32, #tpu.memory_space<vmem>>, vector<1x512xf32>
    %6 = vector.broadcast %5 : vector<1x512xf32> to vector<48x512xf32>
    %7 = arith.addf %4, %6 : vector<48x512xf32>
    %8 = vector.shape_cast %7 : vector<48x512xf32> to vector<6x8x512xf32>
    %c0_6 = arith.constant 0 : index
    %c0_7 = arith.constant 0 : index
    %c0_8 = arith.constant 0 : index
    %9 = vector.load %arg14[%c0_6, %c0_7, %c0_8] : memref<6x8x512xf32, #tpu.memory_space<vmem>>, vector<6x8x512xf32>
    tpu.vector_store %arg14[%c0_6, %c0_7, %c0_8], %8 {strides = array<i32>} : memref<6x8x512xf32, #tpu.memory_space<vmem>>, vector<6x8x512xf32>,
    %c0_9 = arith.constant 0 : index
    %c0_10 = arith.constant 0 : index
    %10 = vector.load %arg3[%c0_9, %c0_10] : memref<128x512xbf16, #tpu.memory_space<vmem>>, vector<128x512xbf16>
    %cst_11 = arith.constant 0.000000e+00 : f32
    %11 = vector.broadcast %cst_11 : f32 to vector<8x128xf32>
    %c0_i32 = arith.constant 0 : i32
    %12 = arith.index_cast %c0_i32 : i32 to index
    %c0_12 = arith.constant 0 : index
    %c0_13 = arith.constant 0 : index
    %13 = vector.load %arg14[%12, %c0_12, %c0_13] : memref<6x8x512xf32, #tpu.memory_space<vmem>>, vector<1x8x512xf32>
    %14 = vector.shape_cast %13 : vector<1x8x512xf32> to vector<8x512xf32>
    %15 = arith.truncf %11 : vector<8x128xf32> to vector<8x128xbf16>
    %cst_14 = arith.constant dense<0.000000e+00> : vector<8x512xf32>
    %16 = tpu.matmul %15, %10, %cst_14 {dimension_numbers = #tpu.dot_dimension_numbers<[1], [0], [0], [1], [0, 0, 1, 1], [], []>} : vector<8x128xbf16>, vector<128x512xbf16>, vector<8x512xf32> -> vector<8x512xf32>
    %17 = arith.addf %14, %16 : vector<8x512xf32>
    %18 = vector.extract_strided_slice %17 {offsets = [0, 0], sizes = [8, 128], strides = [1, 1]} : vector<8x512xf32> to vector<8x128xf32>
    %19 = arith.negf %18 : vector<8x128xf32>
    %20 = math.exp %19 : vector<8x128xf32>
    %cst_15 = arith.constant 1.000000e+00 : f32
    %21 = vector.broadcast %cst_15 : f32 to vector<8x128xf32>
    %22 = arith.addf %21, %20 : vector<8x128xf32>
    %23 = arith.divf %21, %22 : vector<8x128xf32>
    %24 = vector.extract_strided_slice %17 {offsets = [0, 128], sizes = [8, 128], strides = [1, 1]} : vector<8x512xf32> to vector<8x128xf32>
    %25 = arith.negf %24 : vector<8x128xf32>
    %26 = math.exp %25 : vector<8x128xf32>
    %cst_16 = arith.constant 1.000000e+00 : f32
    %27 = vector.broadcast %cst_16 : f32 to vector<8x128xf32>
    %28 = arith.addf %27, %26 : vector<8x128xf32>
    %29 = arith.divf %27, %28 : vector<8x128xf32>
    %30 = vector.extract_strided_slice %17 {offsets = [0, 256], sizes = [8, 128], strides = [1, 1]} : vector<8x512xf32> to vector<8x128xf32>
    %31 = math.tanh %30 : vector<8x128xf32>
    %32 = vector.extract_strided_slice %17 {offsets = [0, 384], sizes = [8, 128], strides = [1, 1]} : vector<8x512xf32> to vector<8x128xf32>
    %33 = arith.negf %32 : vector<8x128xf32>
    %34 = math.exp %33 : vector<8x128xf32>
    %cst_17 = arith.constant 1.000000e+00 : f32
    %35 = vector.broadcast %cst_17 : f32 to vector<8x128xf32>
    %36 = arith.addf %35, %34 : vector<8x128xf32>
    %37 = arith.divf %35, %36 : vector<8x128xf32>
    %38 = arith.mulf %29, %11 : vector<8x128xf32>
    %39 = arith.mulf %23, %31 : vector<8x128xf32>
    %40 = arith.addf %38, %39 : vector<8x128xf32>
    %41 = math.tanh %40 : vector<8x128xf32>
    %42 = arith.mulf %37, %41 : vector<8x128xf32>
    %c1_i32 = arith.constant 1 : i32
    %43 = arith.index_cast %c1_i32 : i32 to index
    %c0_18 = arith.constant 0 : index
    %c0_19 = arith.constant 0 : index
    %44 = vector.load %arg14[%43, %c0_18, %c0_19] : memref<6x8x512xf32, #tpu.memory_space<vmem>>, vector<1x8x512xf32>
    %45 = vector.shape_cast %44 : vector<1x8x512xf32> to vector<8x512xf32>
    %46 = arith.truncf %42 : vector<8x128xf32> to vector<8x128xbf16>
    %cst_20 = arith.constant dense<0.000000e+00> : vector<8x512xf32>
    %47 = tpu.matmul %46, %10, %cst_20 {dimension_numbers = #tpu.dot_dimension_numbers<[1], [0], [0], [1], [0, 0, 1, 1], [], []>} : vector<8x128xbf16>, vector<128x512xbf16>, vector<8x512xf32> -> vector<8x512xf32>
    %48 = arith.addf %45, %47 : vector<8x512xf32>
    %49 = vector.extract_strided_slice %48 {offsets = [0, 0], sizes = [8, 128], strides = [1, 1]} : vector<8x512xf32> to vector<8x128xf32>
    %50 = arith.negf %49 : vector<8x128xf32>
    %51 = math.exp %50 : vector<8x128xf32>
    %cst_21 = arith.constant 1.000000e+00 : f32
    %52 = vector.broadcast %cst_21 : f32 to vector<8x128xf32>
    %53 = arith.addf %52, %51 : vector<8x128xf32>
    %54 = arith.divf %52, %53 : vector<8x128xf32>
    %55 = vector.extract_strided_slice %48 {offsets = [0, 128], sizes = [8, 128], strides = [1, 1]} : vector<8x512xf32> to vector<8x128xf32>
    %56 = arith.negf %55 : vector<8x128xf32>
    %57 = math.exp %56 : vector<8x128xf32>
    %cst_22 = arith.constant 1.000000e+00 : f32
    %58 = vector.broadcast %cst_22 : f32 to vector<8x128xf32>
    %59 = arith.addf %58, %57 : vector<8x128xf32>
    %60 = arith.divf %58, %59 : vector<8x128xf32>
    %61 = vector.extract_strided_slice %48 {offsets = [0, 256], sizes = [8, 128], strides = [1, 1]} : vector<8x512xf32> to vector<8x128xf32>
    %62 = math.tanh %61 : vector<8x128xf32>
    %63 = vector.extract_strided_slice %48 {offsets = [0, 384], sizes = [8, 128], strides = [1, 1]} : vector<8x512xf32> to vector<8x128xf32>
    %64 = arith.negf %63 : vector<8x128xf32>
    %65 = math.exp %64 : vector<8x128xf32>
    %cst_23 = arith.constant 1.000000e+00 : f32
    %66 = vector.broadcast %cst_23 : f32 to vector<8x128xf32>
    %67 = arith.addf %66, %65 : vector<8x128xf32>
    %68 = arith.divf %66, %67 : vector<8x128xf32>
    %69 = arith.mulf %60, %40 : vector<8x128xf32>
    %70 = arith.mulf %54, %62 : vector<8x128xf32>
    %71 = arith.addf %69, %70 : vector<8x128xf32>
    %72 = math.tanh %71 : vector<8x128xf32>
    %73 = arith.mulf %68, %72 : vector<8x128xf32>
    %c2_i32 = arith.constant 2 : i32
    %74 = arith.index_cast %c2_i32 : i32 to index
    %c0_24 = arith.constant 0 : index
    %c0_25 = arith.constant 0 : index
    %75 = vector.load %arg14[%74, %c0_24, %c0_25] : memref<6x8x512xf32, #tpu.memory_space<vmem>>, vector<1x8x512xf32>
    %76 = vector.shape_cast %75 : vector<1x8x512xf32> to vector<8x512xf32>
    %77 = arith.truncf %73 : vector<8x128xf32> to vector<8x128xbf16>
    %cst_26 = arith.constant dense<0.000000e+00> : vector<8x512xf32>
    %78 = tpu.matmul %77, %10, %cst_26 {dimension_numbers = #tpu.dot_dimension_numbers<[1], [0], [0], [1], [0, 0, 1, 1], [], []>} : vector<8x128xbf16>, vector<128x512xbf16>, vector<8x512xf32> -> vector<8x512xf32>
    %79 = arith.addf %76, %78 : vector<8x512xf32>
    %80 = vector.extract_strided_slice %79 {offsets = [0, 0], sizes = [8, 128], strides = [1, 1]} : vector<8x512xf32> to vector<8x128xf32>
    %81 = arith.negf %80 : vector<8x128xf32>
    %82 = math.exp %81 : vector<8x128xf32>
    %cst_27 = arith.constant 1.000000e+00 : f32
    %83 = vector.broadcast %cst_27 : f32 to vector<8x128xf32>
    %84 = arith.addf %83, %82 : vector<8x128xf32>
    %85 = arith.divf %83, %84 : vector<8x128xf32>
    %86 = vector.extract_strided_slice %79 {offsets = [0, 128], sizes = [8, 128], strides = [1, 1]} : vector<8x512xf32> to vector<8x128xf32>
    %87 = arith.negf %86 : vector<8x128xf32>
    %88 = math.exp %87 : vector<8x128xf32>
    %cst_28 = arith.constant 1.000000e+00 : f32
    %89 = vector.broadcast %cst_28 : f32 to vector<8x128xf32>
    %90 = arith.addf %89, %88 : vector<8x128xf32>
    %91 = arith.divf %89, %90 : vector<8x128xf32>
    %92 = vector.extract_strided_slice %79 {offsets = [0, 256], sizes = [8, 128], strides = [1, 1]} : vector<8x512xf32> to vector<8x128xf32>
    %93 = math.tanh %92 : vector<8x128xf32>
    %94 = vector.extract_strided_slice %79 {offsets = [0, 384], sizes = [8, 128], strides = [1, 1]} : vector<8x512xf32> to vector<8x128xf32>
    %95 = arith.negf %94 : vector<8x128xf32>
    %96 = math.exp %95 : vector<8x128xf32>
    %cst_29 = arith.constant 1.000000e+00 : f32
    %97 = vector.broadcast %cst_29 : f32 to vector<8x128xf32>
    %98 = arith.addf %97, %96 : vector<8x128xf32>
    %99 = arith.divf %97, %98 : vector<8x128xf32>
    %100 = arith.mulf %91, %71 : vector<8x128xf32>
    %101 = arith.mulf %85, %93 : vector<8x128xf32>
    %102 = arith.addf %100, %101 : vector<8x128xf32>
    %103 = math.tanh %102 : vector<8x128xf32>
    %104 = arith.mulf %99, %103 : vector<8x128xf32>
    %c3_i32 = arith.constant 3 : i32
    %105 = arith.index_cast %c3_i32 : i32 to index
    %c0_30 = arith.constant 0 : index
    %c0_31 = arith.constant 0 : index
    %106 = vector.load %arg14[%105, %c0_30, %c0_31] : memref<6x8x512xf32, #tpu.memory_space<vmem>>, vector<1x8x512xf32>
    %107 = vector.shape_cast %106 : vector<1x8x512xf32> to vector<8x512xf32>
    %108 = arith.truncf %104 : vector<8x128xf32> to vector<8x128xbf16>
    %cst_32 = arith.constant dense<0.000000e+00> : vector<8x512xf32>
    %109 = tpu.matmul %108, %10, %cst_32 {dimension_numbers = #tpu.dot_dimension_numbers<[1], [0], [0], [1], [0, 0, 1, 1], [], []>} : vector<8x128xbf16>, vector<128x512xbf16>, vector<8x512xf32> -> vector<8x512xf32>
    %110 = arith.addf %107, %109 : vector<8x512xf32>
    %111 = vector.extract_strided_slice %110 {offsets = [0, 0], sizes = [8, 128], strides = [1, 1]} : vector<8x512xf32> to vector<8x128xf32>
    %112 = arith.negf %111 : vector<8x128xf32>
    %113 = math.exp %112 : vector<8x128xf32>
    %cst_33 = arith.constant 1.000000e+00 : f32
    %114 = vector.broadcast %cst_33 : f32 to vector<8x128xf32>
    %115 = arith.addf %114, %113 : vector<8x128xf32>
    %116 = arith.divf %114, %115 : vector<8x128xf32>
    %117 = vector.extract_strided_slice %110 {offsets = [0, 128], sizes = [8, 128], strides = [1, 1]} : vector<8x512xf32> to vector<8x128xf32>
    %118 = arith.negf %117 : vector<8x128xf32>
    %119 = math.exp %118 : vector<8x128xf32>
    %cst_34 = arith.constant 1.000000e+00 : f32
    %120 = vector.broadcast %cst_34 : f32 to vector<8x128xf32>
    %121 = arith.addf %120, %119 : vector<8x128xf32>
    %122 = arith.divf %120, %121 : vector<8x128xf32>
    %123 = vector.extract_strided_slice %110 {offsets = [0, 256], sizes = [8, 128], strides = [1, 1]} : vector<8x512xf32> to vector<8x128xf32>
    %124 = math.tanh %123 : vector<8x128xf32>
    %125 = vector.extract_strided_slice %110 {offsets = [0, 384], sizes = [8, 128], strides = [1, 1]} : vector<8x512xf32> to vector<8x128xf32>
    %126 = arith.negf %125 : vector<8x128xf32>
    %127 = math.exp %126 : vector<8x128xf32>
    %cst_35 = arith.constant 1.000000e+00 : f32
    %128 = vector.broadcast %cst_35 : f32 to vector<8x128xf32>
    %129 = arith.addf %128, %127 : vector<8x128xf32>
    %130 = arith.divf %128, %129 : vector<8x128xf32>
    %131 = arith.mulf %122, %102 : vector<8x128xf32>
    %132 = arith.mulf %116, %124 : vector<8x128xf32>
    %133 = arith.addf %131, %132 : vector<8x128xf32>
    %134 = math.tanh %133 : vector<8x128xf32>
    %135 = arith.mulf %130, %134 : vector<8x128xf32>
    %c4_i32 = arith.constant 4 : i32
    %136 = arith.index_cast %c4_i32 : i32 to index
    %c0_36 = arith.constant 0 : index
    %c0_37 = arith.constant 0 : index
    %137 = vector.load %arg14[%136, %c0_36, %c0_37] : memref<6x8x512xf32, #tpu.memory_space<vmem>>, vector<1x8x512xf32>
    %138 = vector.shape_cast %137 : vector<1x8x512xf32> to vector<8x512xf32>
    %139 = arith.truncf %135 : vector<8x128xf32> to vector<8x128xbf16>
    %cst_38 = arith.constant dense<0.000000e+00> : vector<8x512xf32>
    %140 = tpu.matmul %139, %10, %cst_38 {dimension_numbers = #tpu.dot_dimension_numbers<[1], [0], [0], [1], [0, 0, 1, 1], [], []>} : vector<8x128xbf16>, vector<128x512xbf16>, vector<8x512xf32> -> vector<8x512xf32>
    %141 = arith.addf %138, %140 : vector<8x512xf32>
    %142 = vector.extract_strided_slice %141 {offsets = [0, 0], sizes = [8, 128], strides = [1, 1]} : vector<8x512xf32> to vector<8x128xf32>
    %143 = arith.negf %142 : vector<8x128xf32>
    %144 = math.exp %143 : vector<8x128xf32>
    %cst_39 = arith.constant 1.000000e+00 : f32
    %145 = vector.broadcast %cst_39 : f32 to vector<8x128xf32>
    %146 = arith.addf %145, %144 : vector<8x128xf32>
    %147 = arith.divf %145, %146 : vector<8x128xf32>
    %148 = vector.extract_strided_slice %141 {offsets = [0, 128], sizes = [8, 128], strides = [1, 1]} : vector<8x512xf32> to vector<8x128xf32>
    %149 = arith.negf %148 : vector<8x128xf32>
    %150 = math.exp %149 : vector<8x128xf32>
    %cst_40 = arith.constant 1.000000e+00 : f32
    %151 = vector.broadcast %cst_40 : f32 to vector<8x128xf32>
    %152 = arith.addf %151, %150 : vector<8x128xf32>
    %153 = arith.divf %151, %152 : vector<8x128xf32>
    %154 = vector.extract_strided_slice %141 {offsets = [0, 256], sizes = [8, 128], strides = [1, 1]} : vector<8x512xf32> to vector<8x128xf32>
    %155 = math.tanh %154 : vector<8x128xf32>
    %156 = vector.extract_strided_slice %141 {offsets = [0, 384], sizes = [8, 128], strides = [1, 1]} : vector<8x512xf32> to vector<8x128xf32>
    %157 = arith.negf %156 : vector<8x128xf32>
    %158 = math.exp %157 : vector<8x128xf32>
    %cst_41 = arith.constant 1.000000e+00 : f32
    %159 = vector.broadcast %cst_41 : f32 to vector<8x128xf32>
    %160 = arith.addf %159, %158 : vector<8x128xf32>
    %161 = arith.divf %159, %160 : vector<8x128xf32>
    %162 = arith.mulf %153, %133 : vector<8x128xf32>
    %163 = arith.mulf %147, %155 : vector<8x128xf32>
    %164 = arith.addf %162, %163 : vector<8x128xf32>
    %165 = math.tanh %164 : vector<8x128xf32>
    %166 = arith.mulf %161, %165 : vector<8x128xf32>
    %c5_i32 = arith.constant 5 : i32
    %167 = arith.index_cast %c5_i32 : i32 to index
    %c0_42 = arith.constant 0 : index
    %c0_43 = arith.constant 0 : index
    %168 = vector.load %arg14[%167, %c0_42, %c0_43] : memref<6x8x512xf32, #tpu.memory_space<vmem>>, vector<1x8x512xf32>
    %169 = vector.shape_cast %168 : vector<1x8x512xf32> to vector<8x512xf32>
    %170 = arith.truncf %166 : vector<8x128xf32> to vector<8x128xbf16>
    %cst_44 = arith.constant dense<0.000000e+00> : vector<8x512xf32>
    %171 = tpu.matmul %170, %10, %cst_44 {dimension_numbers = #tpu.dot_dimension_numbers<[1], [0], [0], [1], [0, 0, 1, 1], [], []>} : vector<8x128xbf16>, vector<128x512xbf16>, vector<8x512xf32> -> vector<8x512xf32>
    %172 = arith.addf %169, %171 : vector<8x512xf32>
    %173 = vector.extract_strided_slice %172 {offsets = [0, 0], sizes = [8, 128], strides = [1, 1]} : vector<8x512xf32> to vector<8x128xf32>
    %174 = arith.negf %173 : vector<8x128xf32>
    %175 = math.exp %174 : vector<8x128xf32>
    %cst_45 = arith.constant 1.000000e+00 : f32
    %176 = vector.broadcast %cst_45 : f32 to vector<8x128xf32>
    %177 = arith.addf %176, %175 : vector<8x128xf32>
    %178 = arith.divf %176, %177 : vector<8x128xf32>
    %179 = vector.extract_strided_slice %172 {offsets = [0, 128], sizes = [8, 128], strides = [1, 1]} : vector<8x512xf32> to vector<8x128xf32>
    %180 = arith.negf %179 : vector<8x128xf32>
    %181 = math.exp %180 : vector<8x128xf32>
    %cst_46 = arith.constant 1.000000e+00 : f32
    %182 = vector.broadcast %cst_46 : f32 to vector<8x128xf32>
    %183 = arith.addf %182, %181 : vector<8x128xf32>
    %184 = arith.divf %182, %183 : vector<8x128xf32>
    %185 = vector.extract_strided_slice %172 {offsets = [0, 256], sizes = [8, 128], strides = [1, 1]} : vector<8x512xf32> to vector<8x128xf32>
    %186 = math.tanh %185 : vector<8x128xf32>
    %187 = vector.extract_strided_slice %172 {offsets = [0, 384], sizes = [8, 128], strides = [1, 1]} : vector<8x512xf32> to vector<8x128xf32>
    %188 = arith.negf %187 : vector<8x128xf32>
    %189 = math.exp %188 : vector<8x128xf32>
    %cst_47 = arith.constant 1.000000e+00 : f32
    %190 = vector.broadcast %cst_47 : f32 to vector<8x128xf32>
    %191 = arith.addf %190, %189 : vector<8x128xf32>
    %192 = arith.divf %190, %191 : vector<8x128xf32>
    %193 = arith.mulf %184, %164 : vector<8x128xf32>
    %194 = arith.mulf %178, %186 : vector<8x128xf32>
    %195 = arith.addf %193, %194 : vector<8x128xf32>
    %196 = math.tanh %195 : vector<8x128xf32>
    %197 = arith.mulf %192, %196 : vector<8x128xf32>
    %c6_i32 = arith.constant 6 : i32
    %198 = arith.truncf %197 : vector<8x128xf32> to vector<8x128xbf16>
    %c0_48 = arith.constant 0 : index
    %c0_49 = arith.constant 0 : index
    %199 = vector.load %arg5[%c0_48, %c0_49] : memref<128x512xbf16, #tpu.memory_space<vmem>>, vector<128x512xbf16>
    %cst_50 = arith.constant dense<0.000000e+00> : vector<8x512xf32>
    %200 = tpu.matmul %198, %199, %cst_50 {dimension_numbers = #tpu.dot_dimension_numbers<[1], [0], [0], [1], [0, 0, 1, 1], [], []>} : vector<8x128xbf16>, vector<128x512xbf16>, vector<8x512xf32> -> vector<8x512xf32>
    %c0_51 = arith.constant 0 : index
    %c0_52 = arith.constant 0 : index
    %201 = vector.load %arg8[%c0_51, %c0_52] : memref<1x512xf32, #tpu.memory_space<vmem>>, vector<1x512xf32>
    %202 = vector.broadcast %201 : vector<1x512xf32> to vector<8x512xf32>
    %203 = arith.addf %200, %202 : vector<8x512xf32>
    %c0_53 = arith.constant 0 : index
    %c0_54 = arith.constant 0 : index
    %204 = vector.load %arg15[%c0_53, %c0_54] : memref<8x512xf32, #tpu.memory_space<vmem>>, vector<8x512xf32>
    tpu.vector_store %arg15[%c0_53, %c0_54], %203 {strides = array<i32>} : memref<8x512xf32, #tpu.memory_space<vmem>>, vector<8x512xf32>,
    %c0_55 = arith.constant 0 : index
    %c0_56 = arith.constant 0 : index
    %205 = vector.load %arg6[%c0_55, %c0_56] : memref<8x512xf32, #tpu.memory_space<vmem>>, vector<8x512xf32>
    %c0_57 = arith.constant 0 : index
    %c0_58 = arith.constant 0 : index
    %206 = vector.load %arg7[%c0_57, %c0_58] : memref<128x512xbf16, #tpu.memory_space<vmem>>, vector<128x512xbf16>
    %c0_59 = arith.constant 0 : index
    %c0_60 = arith.constant 0 : index
    %207 = vector.load %arg9[%c0_59, %c0_60] : memref<256x512xbf16, #tpu.memory_space<vmem>>, vector<256x512xbf16>
    %c0_61 = arith.constant 0 : index
    %c0_62 = arith.constant 0 : index
    %208 = vector.load %arg10[%c0_61, %c0_62] : memref<1x512xf32, #tpu.memory_space<vmem>>, vector<1x512xf32>
    %c0_63 = arith.constant 0 : index
    %c0_64 = arith.constant 0 : index
    %209 = vector.load %arg11[%c0_63, %c0_64] : memref<128x8xbf16, #tpu.memory_space<vmem>>, vector<128x8xbf16>
    %c0_65 = arith.constant 0 : index
    %c0_66 = arith.constant 0 : index
    %210 = vector.load %arg12[%c0_65, %c0_66] : memref<1x8xf32, #tpu.memory_space<vmem>>, vector<1x8xf32>
    %211 = tpu.iota {dimensions = array<i32: 1>} : vector<1x8xi32>
    %212 = tpu.iota {dimensions = array<i32: 0>} : vector<8x1xi32>
    %cst_67 = arith.constant 0.000000e+00 : f32
    %213 = vector.broadcast %cst_67 : f32 to vector<1x128xf32>
    %c0_i32_68 = arith.constant 0 : i32
    %214 = vector.broadcast %c0_i32_68 : i32 to vector<1x1xi32>
    %cst_69 = arith.constant 0.000000e+00 : f32
    %215 = vector.broadcast %cst_69 : f32 to vector<1x1xf32>
    %c0_i32_70 = arith.constant 0 : i32
    %216 = arith.index_cast %c0_i32_70 : i32 to index
    %c0_71 = arith.constant 0 : index
    %217 = vector.load %arg15[%216, %c0_71] : memref<8x512xf32, #tpu.memory_space<vmem>>, vector<1x512xf32>
    %218 = vector.broadcast %214 : vector<1x1xi32> to vector<8x1xi32>
    %219 = arith.cmpi eq, %212, %218 : vector<8x1xi32>
    %cst_72 = arith.constant 0.000000e+00 : f32
    %220 = vector.shape_cast %219 : vector<8x1xi1> to vector<8x1xi1>
    %221 = vector.broadcast %220 : vector<8x1xi1> to vector<8x512xi1>
    %222 = vector.broadcast %cst_72 : f32 to vector<8x512xf32>
    %223 = arith.select %221, %205, %222 : vector<8x512xi1>, vector<8x512xf32>
    %cst_73 = arith.constant dense<0.000000e+00> : vector<512xf32>
    %224 = vector.multi_reduction <add>, %223, %cst_73 [0] : vector<8x512xf32> to vector<512xf32>
    %225 = vector.shape_cast %224 : vector<512xf32> to vector<1x512xf32>
    %226 = arith.addf %217, %225 : vector<1x512xf32>
    %227 = arith.truncf %213 : vector<1x128xf32> to vector<1x128xbf16>
    %cst_74 = arith.constant dense<0.000000e+00> : vector<1x512xf32>
    %228 = tpu.matmul %227, %206, %cst_74 {dimension_numbers = #tpu.dot_dimension_numbers<[1], [0], [0], [1], [0, 0, 1, 1], [], []>} : vector<1x128xbf16>, vector<128x512xbf16>, vector<1x512xf32> -> vector<1x512xf32>
    %229 = arith.addf %226, %228 : vector<1x512xf32>
    %230 = vector.extract_strided_slice %229 {offsets = [0, 0], sizes = [1, 128], strides = [1, 1]} : vector<1x512xf32> to vector<1x128xf32>
    %231 = arith.negf %230 : vector<1x128xf32>
    %232 = math.exp %231 : vector<1x128xf32>
    %cst_75 = arith.constant 1.000000e+00 : f32
    %233 = vector.broadcast %cst_75 : f32 to vector<1x128xf32>
    %234 = arith.addf %233, %232 : vector<1x128xf32>
    %235 = arith.divf %233, %234 : vector<1x128xf32>
    %236 = vector.extract_strided_slice %229 {offsets = [0, 128], sizes = [1, 128], strides = [1, 1]} : vector<1x512xf32> to vector<1x128xf32>
    %237 = arith.negf %236 : vector<1x128xf32>
    %238 = math.exp %237 : vector<1x128xf32>
    %cst_76 = arith.constant 1.000000e+00 : f32
    %239 = vector.broadcast %cst_76 : f32 to vector<1x128xf32>
    %240 = arith.addf %239, %238 : vector<1x128xf32>
    %241 = arith.divf %239, %240 : vector<1x128xf32>
    %242 = vector.extract_strided_slice %229 {offsets = [0, 256], sizes = [1, 128], strides = [1, 1]} : vector<1x512xf32> to vector<1x128xf32>
    %243 = math.tanh %242 : vector<1x128xf32>
    %244 = vector.extract_strided_slice %229 {offsets = [0, 384], sizes = [1, 128], strides = [1, 1]} : vector<1x512xf32> to vector<1x128xf32>
    %245 = arith.negf %244 : vector<1x128xf32>
    %246 = math.exp %245 : vector<1x128xf32>
    %cst_77 = arith.constant 1.000000e+00 : f32
    %247 = vector.broadcast %cst_77 : f32 to vector<1x128xf32>
    %248 = arith.addf %247, %246 : vector<1x128xf32>
    %249 = arith.divf %247, %248 : vector<1x128xf32>
    %250 = arith.mulf %241, %213 : vector<1x128xf32>
    %251 = arith.mulf %235, %243 : vector<1x128xf32>
    %252 = arith.addf %250, %251 : vector<1x128xf32>
    %253 = math.tanh %252 : vector<1x128xf32>
    %254 = arith.mulf %249, %253 : vector<1x128xf32>
    %255 = tpu.concatenate %254, %213 in 1 : vector<1x128xf32>, vector<1x128xf32> -> vector<1x256xf32>
    %256 = arith.truncf %255 : vector<1x256xf32> to vector<1x256xbf16>
    %cst_78 = arith.constant dense<0.000000e+00> : vector<1x512xf32>
    %257 = tpu.matmul %256, %207, %cst_78 {dimension_numbers = #tpu.dot_dimension_numbers<[1], [0], [0], [1], [0, 0, 1, 1], [], []>} : vector<1x256xbf16>, vector<256x512xbf16>, vector<1x512xf32> -> vector<1x512xf32>
    %258 = arith.addf %257, %208 : vector<1x512xf32>
    %259 = vector.extract_strided_slice %258 {offsets = [0, 0], sizes = [1, 128], strides = [1, 1]} : vector<1x512xf32> to vector<1x128xf32>
    %260 = arith.negf %259 : vector<1x128xf32>
    %261 = math.exp %260 : vector<1x128xf32>
    %cst_79 = arith.constant 1.000000e+00 : f32
    %262 = vector.broadcast %cst_79 : f32 to vector<1x128xf32>
    %263 = arith.addf %262, %261 : vector<1x128xf32>
    %264 = arith.divf %262, %263 : vector<1x128xf32>
    %265 = vector.extract_strided_slice %258 {offsets = [0, 128], sizes = [1, 128], strides = [1, 1]} : vector<1x512xf32> to vector<1x128xf32>
    %266 = arith.negf %265 : vector<1x128xf32>
    %267 = math.exp %266 : vector<1x128xf32>
    %cst_80 = arith.constant 1.000000e+00 : f32
    %268 = vector.broadcast %cst_80 : f32 to vector<1x128xf32>
    %269 = arith.addf %268, %267 : vector<1x128xf32>
    %270 = arith.divf %268, %269 : vector<1x128xf32>
    %271 = vector.extract_strided_slice %258 {offsets = [0, 256], sizes = [1, 128], strides = [1, 1]} : vector<1x512xf32> to vector<1x128xf32>
    %272 = math.tanh %271 : vector<1x128xf32>
    %273 = vector.extract_strided_slice %258 {offsets = [0, 384], sizes = [1, 128], strides = [1, 1]} : vector<1x512xf32> to vector<1x128xf32>
    %274 = arith.negf %273 : vector<1x128xf32>
    %275 = math.exp %274 : vector<1x128xf32>
    %cst_81 = arith.constant 1.000000e+00 : f32
    %276 = vector.broadcast %cst_81 : f32 to vector<1x128xf32>
    %277 = arith.addf %276, %275 : vector<1x128xf32>
    %278 = arith.divf %276, %277 : vector<1x128xf32>
    %279 = arith.mulf %270, %213 : vector<1x128xf32>
    %280 = arith.mulf %264, %272 : vector<1x128xf32>
    %281 = arith.addf %279, %280 : vector<1x128xf32>
    %282 = math.tanh %281 : vector<1x128xf32>
    %283 = arith.mulf %278, %282 : vector<1x128xf32>
    %284 = arith.truncf %283 : vector<1x128xf32> to vector<1x128xbf16>
    %cst_82 = arith.constant dense<0.000000e+00> : vector<1x8xf32>
    %285 = tpu.matmul %284, %209, %cst_82 {dimension_numbers = #tpu.dot_dimension_numbers<[1], [0], [0], [1], [0, 0, 1, 1], [], []>} : vector<1x128xbf16>, vector<128x8xbf16>, vector<1x8xf32> -> vector<1x8xf32>
    %286 = arith.addf %285, %210 : vector<1x8xf32>
    %cst_83 = arith.constant dense<0xFF800000> : vector<1xf32>
    %287 = vector.multi_reduction <maximumf>, %286, %cst_83 [1] : vector<1x8xf32> to vector<1xf32>
    %288 = vector.shape_cast %287 : vector<1xf32> to vector<1x1xf32>
    %289 = vector.broadcast %288 : vector<1x1xf32> to vector<1x8xf32>
    %290 = arith.cmpf oeq, %286, %289 : vector<1x8xf32>
    %c8_i32 = arith.constant 8 : i32
    %291 = vector.broadcast %c8_i32 : i32 to vector<1x8xi32>
    %292 = arith.select %290, %211, %291 : vector<1x8xi1>, vector<1x8xi32>
    %cst_84 = arith.constant dense<2147483647> : vector<1xi32>
    %293 = vector.multi_reduction <minsi>, %292, %cst_84 [1] : vector<1x8xi32> to vector<1xi32>
    %294 = vector.shape_cast %293 : vector<1xi32> to vector<1x1xi32>
    %295 = arith.index_cast %c0_i32_70 : i32 to index
    %296 = memref.load %arg1[%295] : memref<4xi32, #tpu.memory_space<smem>>
    %297 = vector.broadcast %288 : vector<1x1xf32> to vector<1x8xf32>
    %298 = arith.subf %286, %297 : vector<1x8xf32>
    %299 = math.exp %298 : vector<1x8xf32>
    %cst_85 = arith.constant dense<0.000000e+00> : vector<1xf32>
    %300 = vector.multi_reduction <add>, %299, %cst_85 [1] : vector<1x8xf32> to vector<1xf32>
    %301 = vector.shape_cast %300 : vector<1xf32> to vector<1x1xf32>
    %302 = math.log %301 : vector<1x1xf32>
    %303 = arith.addf %288, %302 : vector<1x1xf32>
    %304 = vector.broadcast %296 : i32 to vector<1x8xi32>
    %305 = arith.cmpi eq, %211, %304 : vector<1x8xi32>
    %cst_86 = arith.constant 0.000000e+00 : f32
    %306 = vector.broadcast %cst_86 : f32 to vector<1x8xf32>
    %307 = arith.select %305, %286, %306 : vector<1x8xi1>, vector<1x8xf32>
    %cst_87 = arith.constant dense<0.000000e+00> : vector<1xf32>
    %308 = vector.multi_reduction <add>, %307, %cst_87 [1] : vector<1x8xf32> to vector<1xf32>
    %309 = vector.shape_cast %308 : vector<1xf32> to vector<1x1xf32>
    %c0_i32_88 = arith.constant 0 : i32
    %310 = arith.cmpi eq, %296, %c0_i32_88 : i32
    %311 = arith.subf %303, %309 : vector<1x1xf32>
    %cst_89 = arith.constant 0.000000e+00 : f32
    %312 = vector.broadcast %cst_89 : f32 to vector<1x1xf32>
    %313 = arith.select %310, %312, %311 : vector<1x1xf32>
    %314 = arith.addf %215, %313 : vector<1x1xf32>
    %c1_i32_90 = arith.constant 1 : i32
    %315 = arith.index_cast %c1_i32_90 : i32 to index
    %c0_91 = arith.constant 0 : index
    %316 = vector.load %arg15[%315, %c0_91] : memref<8x512xf32, #tpu.memory_space<vmem>>, vector<1x512xf32>
    %317 = vector.broadcast %294 : vector<1x1xi32> to vector<8x1xi32>
    %318 = arith.cmpi eq, %212, %317 : vector<8x1xi32>
    %cst_92 = arith.constant 0.000000e+00 : f32
    %319 = vector.shape_cast %318 : vector<8x1xi1> to vector<8x1xi1>
    %320 = vector.broadcast %319 : vector<8x1xi1> to vector<8x512xi1>
    %321 = vector.broadcast %cst_92 : f32 to vector<8x512xf32>
    %322 = arith.select %320, %205, %321 : vector<8x512xi1>, vector<8x512xf32>
    %cst_93 = arith.constant dense<0.000000e+00> : vector<512xf32>
    %323 = vector.multi_reduction <add>, %322, %cst_93 [0] : vector<8x512xf32> to vector<512xf32>
    %324 = vector.shape_cast %323 : vector<512xf32> to vector<1x512xf32>
    %325 = arith.addf %316, %324 : vector<1x512xf32>
    %326 = arith.truncf %254 : vector<1x128xf32> to vector<1x128xbf16>
    %cst_94 = arith.constant dense<0.000000e+00> : vector<1x512xf32>
    %327 = tpu.matmul %326, %206, %cst_94 {dimension_numbers = #tpu.dot_dimension_numbers<[1], [0], [0], [1], [0, 0, 1, 1], [], []>} : vector<1x128xbf16>, vector<128x512xbf16>, vector<1x512xf32> -> vector<1x512xf32>
    %328 = arith.addf %325, %327 : vector<1x512xf32>
    %329 = vector.extract_strided_slice %328 {offsets = [0, 0], sizes = [1, 128], strides = [1, 1]} : vector<1x512xf32> to vector<1x128xf32>
    %330 = arith.negf %329 : vector<1x128xf32>
    %331 = math.exp %330 : vector<1x128xf32>
    %cst_95 = arith.constant 1.000000e+00 : f32
    %332 = vector.broadcast %cst_95 : f32 to vector<1x128xf32>
    %333 = arith.addf %332, %331 : vector<1x128xf32>
    %334 = arith.divf %332, %333 : vector<1x128xf32>
    %335 = vector.extract_strided_slice %328 {offsets = [0, 128], sizes = [1, 128], strides = [1, 1]} : vector<1x512xf32> to vector<1x128xf32>
    %336 = arith.negf %335 : vector<1x128xf32>
    %337 = math.exp %336 : vector<1x128xf32>
    %cst_96 = arith.constant 1.000000e+00 : f32
    %338 = vector.broadcast %cst_96 : f32 to vector<1x128xf32>
    %339 = arith.addf %338, %337 : vector<1x128xf32>
    %340 = arith.divf %338, %339 : vector<1x128xf32>
    %341 = vector.extract_strided_slice %328 {offsets = [0, 256], sizes = [1, 128], strides = [1, 1]} : vector<1x512xf32> to vector<1x128xf32>
    %342 = math.tanh %341 : vector<1x128xf32>
    %343 = vector.extract_strided_slice %328 {offsets = [0, 384], sizes = [1, 128], strides = [1, 1]} : vector<1x512xf32> to vector<1x128xf32>
    %344 = arith.negf %343 : vector<1x128xf32>
    %345 = math.exp %344 : vector<1x128xf32>
    %cst_97 = arith.constant 1.000000e+00 : f32
    %346 = vector.broadcast %cst_97 : f32 to vector<1x128xf32>
    %347 = arith.addf %346, %345 : vector<1x128xf32>
    %348 = arith.divf %346, %347 : vector<1x128xf32>
    %349 = arith.mulf %340, %252 : vector<1x128xf32>
    %350 = arith.mulf %334, %342 : vector<1x128xf32>
    %351 = arith.addf %349, %350 : vector<1x128xf32>
    %352 = math.tanh %351 : vector<1x128xf32>
    %353 = arith.mulf %348, %352 : vector<1x128xf32>
    %354 = tpu.concatenate %353, %283 in 1 : vector<1x128xf32>, vector<1x128xf32> -> vector<1x256xf32>
    %355 = arith.truncf %354 : vector<1x256xf32> to vector<1x256xbf16>
    %cst_98 = arith.constant dense<0.000000e+00> : vector<1x512xf32>
    %356 = tpu.matmul %355, %207, %cst_98 {dimension_numbers = #tpu.dot_dimension_numbers<[1], [0], [0], [1], [0, 0, 1, 1], [], []>} : vector<1x256xbf16>, vector<256x512xbf16>, vector<1x512xf32> -> vector<1x512xf32>
    %357 = arith.addf %356, %208 : vector<1x512xf32>
    %358 = vector.extract_strided_slice %357 {offsets = [0, 0], sizes = [1, 128], strides = [1, 1]} : vector<1x512xf32> to vector<1x128xf32>
    %359 = arith.negf %358 : vector<1x128xf32>
    %360 = math.exp %359 : vector<1x128xf32>
    %cst_99 = arith.constant 1.000000e+00 : f32
    %361 = vector.broadcast %cst_99 : f32 to vector<1x128xf32>
    %362 = arith.addf %361, %360 : vector<1x128xf32>
    %363 = arith.divf %361, %362 : vector<1x128xf32>
    %364 = vector.extract_strided_slice %357 {offsets = [0, 128], sizes = [1, 128], strides = [1, 1]} : vector<1x512xf32> to vector<1x128xf32>
    %365 = arith.negf %364 : vector<1x128xf32>
    %366 = math.exp %365 : vector<1x128xf32>
    %cst_100 = arith.constant 1.000000e+00 : f32
    %367 = vector.broadcast %cst_100 : f32 to vector<1x128xf32>
    %368 = arith.addf %367, %366 : vector<1x128xf32>
    %369 = arith.divf %367, %368 : vector<1x128xf32>
    %370 = vector.extract_strided_slice %357 {offsets = [0, 256], sizes = [1, 128], strides = [1, 1]} : vector<1x512xf32> to vector<1x128xf32>
    %371 = math.tanh %370 : vector<1x128xf32>
    %372 = vector.extract_strided_slice %357 {offsets = [0, 384], sizes = [1, 128], strides = [1, 1]} : vector<1x512xf32> to vector<1x128xf32>
    %373 = arith.negf %372 : vector<1x128xf32>
    %374 = math.exp %373 : vector<1x128xf32>
    %cst_101 = arith.constant 1.000000e+00 : f32
    %375 = vector.broadcast %cst_101 : f32 to vector<1x128xf32>
    %376 = arith.addf %375, %374 : vector<1x128xf32>
    %377 = arith.divf %375, %376 : vector<1x128xf32>
    %378 = arith.mulf %369, %281 : vector<1x128xf32>
    %379 = arith.mulf %363, %371 : vector<1x128xf32>
    %380 = arith.addf %378, %379 : vector<1x128xf32>
    %381 = math.tanh %380 : vector<1x128xf32>
    %382 = arith.mulf %377, %381 : vector<1x128xf32>
    %383 = arith.truncf %382 : vector<1x128xf32> to vector<1x128xbf16>
    %cst_102 = arith.constant dense<0.000000e+00> : vector<1x8xf32>
    %384 = tpu.matmul %383, %209, %cst_102 {dimension_numbers = #tpu.dot_dimension_numbers<[1], [0], [0], [1], [0, 0, 1, 1], [], []>} : vector<1x128xbf16>, vector<128x8xbf16>, vector<1x8xf32> -> vector<1x8xf32>
    %385 = arith.addf %384, %210 : vector<1x8xf32>
    %cst_103 = arith.constant dense<0xFF800000> : vector<1xf32>
    %386 = vector.multi_reduction <maximumf>, %385, %cst_103 [1] : vector<1x8xf32> to vector<1xf32>
    %387 = vector.shape_cast %386 : vector<1xf32> to vector<1x1xf32>
    %388 = vector.broadcast %387 : vector<1x1xf32> to vector<1x8xf32>
    %389 = arith.cmpf oeq, %385, %388 : vector<1x8xf32>
    %c8_i32_104 = arith.constant 8 : i32
    %390 = vector.broadcast %c8_i32_104 : i32 to vector<1x8xi32>
    %391 = arith.select %389, %211, %390 : vector<1x8xi1>, vector<1x8xi32>
    %cst_105 = arith.constant dense<2147483647> : vector<1xi32>
    %392 = vector.multi_reduction <minsi>, %391, %cst_105 [1] : vector<1x8xi32> to vector<1xi32>
    %393 = vector.shape_cast %392 : vector<1xi32> to vector<1x1xi32>
    %394 = arith.index_cast %c1_i32_90 : i32 to index
    %395 = memref.load %arg1[%394] : memref<4xi32, #tpu.memory_space<smem>>
    %396 = vector.broadcast %387 : vector<1x1xf32> to vector<1x8xf32>
    %397 = arith.subf %385, %396 : vector<1x8xf32>
    %398 = math.exp %397 : vector<1x8xf32>
    %cst_106 = arith.constant dense<0.000000e+00> : vector<1xf32>
    %399 = vector.multi_reduction <add>, %398, %cst_106 [1] : vector<1x8xf32> to vector<1xf32>
    %400 = vector.shape_cast %399 : vector<1xf32> to vector<1x1xf32>
    %401 = math.log %400 : vector<1x1xf32>
    %402 = arith.addf %387, %401 : vector<1x1xf32>
    %403 = vector.broadcast %395 : i32 to vector<1x8xi32>
    %404 = arith.cmpi eq, %211, %403 : vector<1x8xi32>
    %cst_107 = arith.constant 0.000000e+00 : f32
    %405 = vector.broadcast %cst_107 : f32 to vector<1x8xf32>
    %406 = arith.select %404, %385, %405 : vector<1x8xi1>, vector<1x8xf32>
    %cst_108 = arith.constant dense<0.000000e+00> : vector<1xf32>
    %407 = vector.multi_reduction <add>, %406, %cst_108 [1] : vector<1x8xf32> to vector<1xf32>
    %408 = vector.shape_cast %407 : vector<1xf32> to vector<1x1xf32>
    %c0_i32_109 = arith.constant 0 : i32
    %409 = arith.cmpi eq, %395, %c0_i32_109 : i32
    %410 = arith.subf %402, %408 : vector<1x1xf32>
    %cst_110 = arith.constant 0.000000e+00 : f32
    %411 = vector.broadcast %cst_110 : f32 to vector<1x1xf32>
    %412 = arith.select %409, %411, %410 : vector<1x1xf32>
    %413 = arith.addf %314, %412 : vector<1x1xf32>
    %c2_i32_111 = arith.constant 2 : i32
    %414 = arith.index_cast %c2_i32_111 : i32 to index
    %c0_112 = arith.constant 0 : index
    %415 = vector.load %arg15[%414, %c0_112] : memref<8x512xf32, #tpu.memory_space<vmem>>, vector<1x512xf32>
    %416 = vector.broadcast %393 : vector<1x1xi32> to vector<8x1xi32>
    %417 = arith.cmpi eq, %212, %416 : vector<8x1xi32>
    %cst_113 = arith.constant 0.000000e+00 : f32
    %418 = vector.shape_cast %417 : vector<8x1xi1> to vector<8x1xi1>
    %419 = vector.broadcast %418 : vector<8x1xi1> to vector<8x512xi1>
    %420 = vector.broadcast %cst_113 : f32 to vector<8x512xf32>
    %421 = arith.select %419, %205, %420 : vector<8x512xi1>, vector<8x512xf32>
    %cst_114 = arith.constant dense<0.000000e+00> : vector<512xf32>
    %422 = vector.multi_reduction <add>, %421, %cst_114 [0] : vector<8x512xf32> to vector<512xf32>
    %423 = vector.shape_cast %422 : vector<512xf32> to vector<1x512xf32>
    %424 = arith.addf %415, %423 : vector<1x512xf32>
    %425 = arith.truncf %353 : vector<1x128xf32> to vector<1x128xbf16>
    %cst_115 = arith.constant dense<0.000000e+00> : vector<1x512xf32>
    %426 = tpu.matmul %425, %206, %cst_115 {dimension_numbers = #tpu.dot_dimension_numbers<[1], [0], [0], [1], [0, 0, 1, 1], [], []>} : vector<1x128xbf16>, vector<128x512xbf16>, vector<1x512xf32> -> vector<1x512xf32>
    %427 = arith.addf %424, %426 : vector<1x512xf32>
    %428 = vector.extract_strided_slice %427 {offsets = [0, 0], sizes = [1, 128], strides = [1, 1]} : vector<1x512xf32> to vector<1x128xf32>
    %429 = arith.negf %428 : vector<1x128xf32>
    %430 = math.exp %429 : vector<1x128xf32>
    %cst_116 = arith.constant 1.000000e+00 : f32
    %431 = vector.broadcast %cst_116 : f32 to vector<1x128xf32>
    %432 = arith.addf %431, %430 : vector<1x128xf32>
    %433 = arith.divf %431, %432 : vector<1x128xf32>
    %434 = vector.extract_strided_slice %427 {offsets = [0, 128], sizes = [1, 128], strides = [1, 1]} : vector<1x512xf32> to vector<1x128xf32>
    %435 = arith.negf %434 : vector<1x128xf32>
    %436 = math.exp %435 : vector<1x128xf32>
    %cst_117 = arith.constant 1.000000e+00 : f32
    %437 = vector.broadcast %cst_117 : f32 to vector<1x128xf32>
    %438 = arith.addf %437, %436 : vector<1x128xf32>
    %439 = arith.divf %437, %438 : vector<1x128xf32>
    %440 = vector.extract_strided_slice %427 {offsets = [0, 256], sizes = [1, 128], strides = [1, 1]} : vector<1x512xf32> to vector<1x128xf32>
    %441 = math.tanh %440 : vector<1x128xf32>
    %442 = vector.extract_strided_slice %427 {offsets = [0, 384], sizes = [1, 128], strides = [1, 1]} : vector<1x512xf32> to vector<1x128xf32>
    %443 = arith.negf %442 : vector<1x128xf32>
    %444 = math.exp %443 : vector<1x128xf32>
    %cst_118 = arith.constant 1.000000e+00 : f32
    %445 = vector.broadcast %cst_118 : f32 to vector<1x128xf32>
    %446 = arith.addf %445, %444 : vector<1x128xf32>
    %447 = arith.divf %445, %446 : vector<1x128xf32>
    %448 = arith.mulf %439, %351 : vector<1x128xf32>
    %449 = arith.mulf %433, %441 : vector<1x128xf32>
    %450 = arith.addf %448, %449 : vector<1x128xf32>
    %451 = math.tanh %450 : vector<1x128xf32>
    %452 = arith.mulf %447, %451 : vector<1x128xf32>
    %453 = tpu.concatenate %452, %382 in 1 : vector<1x128xf32>, vector<1x128xf32> -> vector<1x256xf32>
    %454 = arith.truncf %453 : vector<1x256xf32> to vector<1x256xbf16>
    %cst_119 = arith.constant dense<0.000000e+00> : vector<1x512xf32>
    %455 = tpu.matmul %454, %207, %cst_119 {dimension_numbers = #tpu.dot_dimension_numbers<[1], [0], [0], [1], [0, 0, 1, 1], [], []>} : vector<1x256xbf16>, vector<256x512xbf16>, vector<1x512xf32> -> vector<1x512xf32>
    %456 = arith.addf %455, %208 : vector<1x512xf32>
    %457 = vector.extract_strided_slice %456 {offsets = [0, 0], sizes = [1, 128], strides = [1, 1]} : vector<1x512xf32> to vector<1x128xf32>
    %458 = arith.negf %457 : vector<1x128xf32>
    %459 = math.exp %458 : vector<1x128xf32>
    %cst_120 = arith.constant 1.000000e+00 : f32
    %460 = vector.broadcast %cst_120 : f32 to vector<1x128xf32>
    %461 = arith.addf %460, %459 : vector<1x128xf32>
    %462 = arith.divf %460, %461 : vector<1x128xf32>
    %463 = vector.extract_strided_slice %456 {offsets = [0, 128], sizes = [1, 128], strides = [1, 1]} : vector<1x512xf32> to vector<1x128xf32>
    %464 = arith.negf %463 : vector<1x128xf32>
    %465 = math.exp %464 : vector<1x128xf32>
    %cst_121 = arith.constant 1.000000e+00 : f32
    %466 = vector.broadcast %cst_121 : f32 to vector<1x128xf32>
    %467 = arith.addf %466, %465 : vector<1x128xf32>
    %468 = arith.divf %466, %467 : vector<1x128xf32>
    %469 = vector.extract_strided_slice %456 {offsets = [0, 256], sizes = [1, 128], strides = [1, 1]} : vector<1x512xf32> to vector<1x128xf32>
    %470 = math.tanh %469 : vector<1x128xf32>
    %471 = vector.extract_strided_slice %456 {offsets = [0, 384], sizes = [1, 128], strides = [1, 1]} : vector<1x512xf32> to vector<1x128xf32>
    %472 = arith.negf %471 : vector<1x128xf32>
    %473 = math.exp %472 : vector<1x128xf32>
    %cst_122 = arith.constant 1.000000e+00 : f32
    %474 = vector.broadcast %cst_122 : f32 to vector<1x128xf32>
    %475 = arith.addf %474, %473 : vector<1x128xf32>
    %476 = arith.divf %474, %475 : vector<1x128xf32>
    %477 = arith.mulf %468, %380 : vector<1x128xf32>
    %478 = arith.mulf %462, %470 : vector<1x128xf32>
    %479 = arith.addf %477, %478 : vector<1x128xf32>
    %480 = math.tanh %479 : vector<1x128xf32>
    %481 = arith.mulf %476, %480 : vector<1x128xf32>
    %482 = arith.truncf %481 : vector<1x128xf32> to vector<1x128xbf16>
    %cst_123 = arith.constant dense<0.000000e+00> : vector<1x8xf32>
    %483 = tpu.matmul %482, %209, %cst_123 {dimension_numbers = #tpu.dot_dimension_numbers<[1], [0], [0], [1], [0, 0, 1, 1], [], []>} : vector<1x128xbf16>, vector<128x8xbf16>, vector<1x8xf32> -> vector<1x8xf32>
    %484 = arith.addf %483, %210 : vector<1x8xf32>
    %cst_124 = arith.constant dense<0xFF800000> : vector<1xf32>
    %485 = vector.multi_reduction <maximumf>, %484, %cst_124 [1] : vector<1x8xf32> to vector<1xf32>
    %486 = vector.shape_cast %485 : vector<1xf32> to vector<1x1xf32>
    %487 = vector.broadcast %486 : vector<1x1xf32> to vector<1x8xf32>
    %488 = arith.cmpf oeq, %484, %487 : vector<1x8xf32>
    %c8_i32_125 = arith.constant 8 : i32
    %489 = vector.broadcast %c8_i32_125 : i32 to vector<1x8xi32>
    %490 = arith.select %488, %211, %489 : vector<1x8xi1>, vector<1x8xi32>
    %cst_126 = arith.constant dense<2147483647> : vector<1xi32>
    %491 = vector.multi_reduction <minsi>, %490, %cst_126 [1] : vector<1x8xi32> to vector<1xi32>
    %492 = vector.shape_cast %491 : vector<1xi32> to vector<1x1xi32>
    %493 = arith.index_cast %c2_i32_111 : i32 to index
    %494 = memref.load %arg1[%493] : memref<4xi32, #tpu.memory_space<smem>>
    %495 = vector.broadcast %486 : vector<1x1xf32> to vector<1x8xf32>
    %496 = arith.subf %484, %495 : vector<1x8xf32>
    %497 = math.exp %496 : vector<1x8xf32>
    %cst_127 = arith.constant dense<0.000000e+00> : vector<1xf32>
    %498 = vector.multi_reduction <add>, %497, %cst_127 [1] : vector<1x8xf32> to vector<1xf32>
    %499 = vector.shape_cast %498 : vector<1xf32> to vector<1x1xf32>
    %500 = math.log %499 : vector<1x1xf32>
    %501 = arith.addf %486, %500 : vector<1x1xf32>
    %502 = vector.broadcast %494 : i32 to vector<1x8xi32>
    %503 = arith.cmpi eq, %211, %502 : vector<1x8xi32>
    %cst_128 = arith.constant 0.000000e+00 : f32
    %504 = vector.broadcast %cst_128 : f32 to vector<1x8xf32>
    %505 = arith.select %503, %484, %504 : vector<1x8xi1>, vector<1x8xf32>
    %cst_129 = arith.constant dense<0.000000e+00> : vector<1xf32>
    %506 = vector.multi_reduction <add>, %505, %cst_129 [1] : vector<1x8xf32> to vector<1xf32>
    %507 = vector.shape_cast %506 : vector<1xf32> to vector<1x1xf32>
    %c0_i32_130 = arith.constant 0 : i32
    %508 = arith.cmpi eq, %494, %c0_i32_130 : i32
    %509 = arith.subf %501, %507 : vector<1x1xf32>
    %cst_131 = arith.constant 0.000000e+00 : f32
    %510 = vector.broadcast %cst_131 : f32 to vector<1x1xf32>
    %511 = arith.select %508, %510, %509 : vector<1x1xf32>
    %512 = arith.addf %413, %511 : vector<1x1xf32>
    %c3_i32_132 = arith.constant 3 : i32
    %513 = arith.index_cast %c3_i32_132 : i32 to index
    %c0_133 = arith.constant 0 : index
    %514 = vector.load %arg15[%513, %c0_133] : memref<8x512xf32, #tpu.memory_space<vmem>>, vector<1x512xf32>
    %515 = vector.broadcast %492 : vector<1x1xi32> to vector<8x1xi32>
    %516 = arith.cmpi eq, %212, %515 : vector<8x1xi32>
    %cst_134 = arith.constant 0.000000e+00 : f32
    %517 = vector.shape_cast %516 : vector<8x1xi1> to vector<8x1xi1>
    %518 = vector.broadcast %517 : vector<8x1xi1> to vector<8x512xi1>
    %519 = vector.broadcast %cst_134 : f32 to vector<8x512xf32>
    %520 = arith.select %518, %205, %519 : vector<8x512xi1>, vector<8x512xf32>
    %cst_135 = arith.constant dense<0.000000e+00> : vector<512xf32>
    %521 = vector.multi_reduction <add>, %520, %cst_135 [0] : vector<8x512xf32> to vector<512xf32>
    %522 = vector.shape_cast %521 : vector<512xf32> to vector<1x512xf32>
    %523 = arith.addf %514, %522 : vector<1x512xf32>
    %524 = arith.truncf %452 : vector<1x128xf32> to vector<1x128xbf16>
    %cst_136 = arith.constant dense<0.000000e+00> : vector<1x512xf32>
    %525 = tpu.matmul %524, %206, %cst_136 {dimension_numbers = #tpu.dot_dimension_numbers<[1], [0], [0], [1], [0, 0, 1, 1], [], []>} : vector<1x128xbf16>, vector<128x512xbf16>, vector<1x512xf32> -> vector<1x512xf32>
    %526 = arith.addf %523, %525 : vector<1x512xf32>
    %527 = vector.extract_strided_slice %526 {offsets = [0, 0], sizes = [1, 128], strides = [1, 1]} : vector<1x512xf32> to vector<1x128xf32>
    %528 = arith.negf %527 : vector<1x128xf32>
    %529 = math.exp %528 : vector<1x128xf32>
    %cst_137 = arith.constant 1.000000e+00 : f32
    %530 = vector.broadcast %cst_137 : f32 to vector<1x128xf32>
    %531 = arith.addf %530, %529 : vector<1x128xf32>
    %532 = arith.divf %530, %531 : vector<1x128xf32>
    %533 = vector.extract_strided_slice %526 {offsets = [0, 128], sizes = [1, 128], strides = [1, 1]} : vector<1x512xf32> to vector<1x128xf32>
    %534 = arith.negf %533 : vector<1x128xf32>
    %535 = math.exp %534 : vector<1x128xf32>
    %cst_138 = arith.constant 1.000000e+00 : f32
    %536 = vector.broadcast %cst_138 : f32 to vector<1x128xf32>
    %537 = arith.addf %536, %535 : vector<1x128xf32>
    %538 = arith.divf %536, %537 : vector<1x128xf32>
    %539 = vector.extract_strided_slice %526 {offsets = [0, 256], sizes = [1, 128], strides = [1, 1]} : vector<1x512xf32> to vector<1x128xf32>
    %540 = math.tanh %539 : vector<1x128xf32>
    %541 = vector.extract_strided_slice %526 {offsets = [0, 384], sizes = [1, 128], strides = [1, 1]} : vector<1x512xf32> to vector<1x128xf32>
    %542 = arith.negf %541 : vector<1x128xf32>
    %543 = math.exp %542 : vector<1x128xf32>
    %cst_139 = arith.constant 1.000000e+00 : f32
    %544 = vector.broadcast %cst_139 : f32 to vector<1x128xf32>
    %545 = arith.addf %544, %543 : vector<1x128xf32>
    %546 = arith.divf %544, %545 : vector<1x128xf32>
    %547 = arith.mulf %538, %450 : vector<1x128xf32>
    %548 = arith.mulf %532, %540 : vector<1x128xf32>
    %549 = arith.addf %547, %548 : vector<1x128xf32>
    %550 = math.tanh %549 : vector<1x128xf32>
    %551 = arith.mulf %546, %550 : vector<1x128xf32>
    %552 = tpu.concatenate %551, %481 in 1 : vector<1x128xf32>, vector<1x128xf32> -> vector<1x256xf32>
    %553 = arith.truncf %552 : vector<1x256xf32> to vector<1x256xbf16>
    %cst_140 = arith.constant dense<0.000000e+00> : vector<1x512xf32>
    %554 = tpu.matmul %553, %207, %cst_140 {dimension_numbers = #tpu.dot_dimension_numbers<[1], [0], [0], [1], [0, 0, 1, 1], [], []>} : vector<1x256xbf16>, vector<256x512xbf16>, vector<1x512xf32> -> vector<1x512xf32>
    %555 = arith.addf %554, %208 : vector<1x512xf32>
    %556 = vector.extract_strided_slice %555 {offsets = [0, 0], sizes = [1, 128], strides = [1, 1]} : vector<1x512xf32> to vector<1x128xf32>
    %557 = arith.negf %556 : vector<1x128xf32>
    %558 = math.exp %557 : vector<1x128xf32>
    %cst_141 = arith.constant 1.000000e+00 : f32
    %559 = vector.broadcast %cst_141 : f32 to vector<1x128xf32>
    %560 = arith.addf %559, %558 : vector<1x128xf32>
    %561 = arith.divf %559, %560 : vector<1x128xf32>
    %562 = vector.extract_strided_slice %555 {offsets = [0, 128], sizes = [1, 128], strides = [1, 1]} : vector<1x512xf32> to vector<1x128xf32>
    %563 = arith.negf %562 : vector<1x128xf32>
    %564 = math.exp %563 : vector<1x128xf32>
    %cst_142 = arith.constant 1.000000e+00 : f32
    %565 = vector.broadcast %cst_142 : f32 to vector<1x128xf32>
    %566 = arith.addf %565, %564 : vector<1x128xf32>
    %567 = arith.divf %565, %566 : vector<1x128xf32>
    %568 = vector.extract_strided_slice %555 {offsets = [0, 256], sizes = [1, 128], strides = [1, 1]} : vector<1x512xf32> to vector<1x128xf32>
    %569 = math.tanh %568 : vector<1x128xf32>
    %570 = vector.extract_strided_slice %555 {offsets = [0, 384], sizes = [1, 128], strides = [1, 1]} : vector<1x512xf32> to vector<1x128xf32>
    %571 = arith.negf %570 : vector<1x128xf32>
    %572 = math.exp %571 : vector<1x128xf32>
    %cst_143 = arith.constant 1.000000e+00 : f32
    %573 = vector.broadcast %cst_143 : f32 to vector<1x128xf32>
    %574 = arith.addf %573, %572 : vector<1x128xf32>
    %575 = arith.divf %573, %574 : vector<1x128xf32>
    %576 = arith.mulf %567, %479 : vector<1x128xf32>
    %577 = arith.mulf %561, %569 : vector<1x128xf32>
    %578 = arith.addf %576, %577 : vector<1x128xf32>
    %579 = math.tanh %578 : vector<1x128xf32>
    %580 = arith.mulf %575, %579 : vector<1x128xf32>
    %581 = arith.truncf %580 : vector<1x128xf32> to vector<1x128xbf16>
    %cst_144 = arith.constant dense<0.000000e+00> : vector<1x8xf32>
    %582 = tpu.matmul %581, %209, %cst_144 {dimension_numbers = #tpu.dot_dimension_numbers<[1], [0], [0], [1], [0, 0, 1, 1], [], []>} : vector<1x128xbf16>, vector<128x8xbf16>, vector<1x8xf32> -> vector<1x8xf32>
    %583 = arith.addf %582, %210 : vector<1x8xf32>
    %cst_145 = arith.constant dense<0xFF800000> : vector<1xf32>
    %584 = vector.multi_reduction <maximumf>, %583, %cst_145 [1] : vector<1x8xf32> to vector<1xf32>
    %585 = vector.shape_cast %584 : vector<1xf32> to vector<1x1xf32>
    %586 = vector.broadcast %585 : vector<1x1xf32> to vector<1x8xf32>
    %587 = arith.cmpf oeq, %583, %586 : vector<1x8xf32>
    %c8_i32_146 = arith.constant 8 : i32
    %588 = vector.broadcast %c8_i32_146 : i32 to vector<1x8xi32>
    %589 = arith.select %587, %211, %588 : vector<1x8xi1>, vector<1x8xi32>
    %cst_147 = arith.constant dense<2147483647> : vector<1xi32>
    %590 = vector.multi_reduction <minsi>, %589, %cst_147 [1] : vector<1x8xi32> to vector<1xi32>
    %591 = vector.shape_cast %590 : vector<1xi32> to vector<1x1xi32>
    %592 = arith.index_cast %c3_i32_132 : i32 to index
    %593 = memref.load %arg1[%592] : memref<4xi32, #tpu.memory_space<smem>>
    %594 = vector.broadcast %585 : vector<1x1xf32> to vector<1x8xf32>
    %595 = arith.subf %583, %594 : vector<1x8xf32>
    %596 = math.exp %595 : vector<1x8xf32>
    %cst_148 = arith.constant dense<0.000000e+00> : vector<1xf32>
    %597 = vector.multi_reduction <add>, %596, %cst_148 [1] : vector<1x8xf32> to vector<1xf32>
    %598 = vector.shape_cast %597 : vector<1xf32> to vector<1x1xf32>
    %599 = math.log %598 : vector<1x1xf32>
    %600 = arith.addf %585, %599 : vector<1x1xf32>
    %601 = vector.broadcast %593 : i32 to vector<1x8xi32>
    %602 = arith.cmpi eq, %211, %601 : vector<1x8xi32>
    %cst_149 = arith.constant 0.000000e+00 : f32
    %603 = vector.broadcast %cst_149 : f32 to vector<1x8xf32>
    %604 = arith.select %602, %583, %603 : vector<1x8xi1>, vector<1x8xf32>
    %cst_150 = arith.constant dense<0.000000e+00> : vector<1xf32>
    %605 = vector.multi_reduction <add>, %604, %cst_150 [1] : vector<1x8xf32> to vector<1xf32>
    %606 = vector.shape_cast %605 : vector<1xf32> to vector<1x1xf32>
    %c0_i32_151 = arith.constant 0 : i32
    %607 = arith.cmpi eq, %593, %c0_i32_151 : i32
    %608 = arith.subf %600, %606 : vector<1x1xf32>
    %cst_152 = arith.constant 0.000000e+00 : f32
    %609 = vector.broadcast %cst_152 : f32 to vector<1x1xf32>
    %610 = arith.select %607, %609, %608 : vector<1x1xf32>
    %611 = arith.addf %512, %610 : vector<1x1xf32>
    %c4_i32_153 = arith.constant 4 : i32
    %c0_154 = arith.constant 0 : index
    %c0_155 = arith.constant 0 : index
    %612 = vector.load %arg13[%c0_154, %c0_155] : memref<1x1xf32, #tpu.memory_space<vmem>>, vector<1x1xf32>
    tpu.vector_store %arg13[%c0_154, %c0_155], %611 {strides = array<i32>} : memref<1x1xf32, #tpu.memory_space<vmem>>, vector<1x1xf32>,
    return
  }
}

</mosaic_0001>

<llo_original>
// kernel: tpu_custom_call.1
$region0: #{tpu_custom_call.1}
  #allocation0 [shape = 'u32[]', space=smem, size = 0x4, offset = 0x4, fixed_abs, tag = 'smem constant byte address 0x4 - core index']
  #allocation1 [shape = 'u32[72,128]{1,0:T(1,128)}', space=vmem, size = 0x9000, scoped, tag = 'internal scratch']
  #allocation2 [shape = 'f32[6,8,512]{2,1,0:T(8,128)}', space=vmem, size = 0x18000, scoped, tag = 'scratch operand']
  #allocation3 [shape = 'f32[8,512]{1,0:T(8,128)}', space=vmem, size = 0x4000, scoped, tag = 'scratch operand']
  %s0 = inlined_call_operand.vmem [shape: f32[6,8,128], index: 0, kind: input, shape index: {}]
  %s1 = inlined_call_operand.vmem [shape: s32[4], index: 1, kind: input, shape index: {}]
  %s2 = inlined_call_operand.hbm [shape: bf16[128,512], index: 2, kind: input, shape index: {}]
  %s3 = inlined_call_operand.hbm [shape: bf16[128,512], index: 3, kind: input, shape index: {}]
  %s4 = inlined_call_operand.vmem [shape: f32[1,512], index: 4, kind: input, shape index: {}]
  %s5 = inlined_call_operand.hbm [shape: bf16[128,512], index: 5, kind: input, shape index: {}]
  %s6 = inlined_call_operand.hbm [shape: f32[8,512], index: 6, kind: input, shape index: {}]
  %s7 = inlined_call_operand.hbm [shape: bf16[128,512], index: 7, kind: input, shape index: {}]
  %s8 = inlined_call_operand.vmem [shape: f32[1,512], index: 8, kind: input, shape index: {}]
  %s9 = inlined_call_operand.hbm [shape: bf16[256,512], index: 9, kind: input, shape index: {}]
  %s10 = inlined_call_operand.vmem [shape: f32[1,512], index: 10, kind: input, shape index: {}]
  %s11 = inlined_call_operand.vmem [shape: bf16[128,8], index: 11, kind: input, shape index: {}]
  %s12 = inlined_call_operand.vmem [shape: f32[1,8], index: 12, kind: input, shape index: {}]
  %s13 = inlined_call_operand.hbm [shape: f32[1,1], index: 13, kind: output, shape index: {}]
  %s14 = sld [smem:[#allocation0]]
  $region90: #{tpu_custom_call.1} parent=0
    _
  %s16 = ssub.s32 1, %s14
  %s17 = scalar_select 0, %s16, %s14
  $region1: #{tpu_custom_call.1} parent=0
    #allocation4 [shape = 'u8[512]{0}', space=smem, size = 0x200, scoped, tag = 'input window, operand 1, single buffered']
    #allocation5 [shape = 's32[1]{0}', space=sflag, size = 0x4, scoped, tag = 'scoped memory for tpu_custom_call.1']
    #allocation6 [shape = 's32[1]{0}', space=sflag, size = 0x4, scoped, tag = 'scoped memory for tpu_custom_call.1']
    #allocation7 [shape = 's32[1]{0}', space=sflag, size = 0x4, scoped, tag = 'scoped memory for tpu_custom_call.1']
    #allocation8 [shape = 'u8[131072]{0}', space=vmem, size = 0x20000, scoped, tag = 'input window, operand 2, single buffered']
    #allocation9 [shape = 'u8[131072]{0}', space=vmem, size = 0x20000, scoped, tag = 'input window, operand 3, single buffered']
    #allocation10 [shape = 's32[1]{0}', space=sflag, size = 0x4, scoped, tag = 'scoped memory for tpu_custom_call.1']
    #allocation11 [shape = 'u8[131072]{0}', space=vmem, size = 0x20000, scoped, tag = 'input window, operand 5, single buffered']
    #allocation12 [shape = 'u8[16384]{0}', space=vmem, size = 0x4000, scoped, tag = 'input window, operand 6, single buffered']
    #allocation13 [shape = 's32[1]{0}', space=sflag, size = 0x4, scoped, tag = 'scoped memory for tpu_custom_call.1']
    #allocation14 [shape = 'u8[131072]{0}', space=vmem, size = 0x20000, scoped, tag = 'input window, operand 7, single buffered']
    #allocation15 [shape = 'u8[262144]{0}', space=vmem, size = 0x40000, scoped, tag = 'input window, operand 9, single buffered']
    #allocation16 [shape = 's32[1]{0}', space=sflag, size = 0x4, scoped, tag = 'scoped memory for tpu_custom_call.1']
    #allocation17 [shape = 'u8[512]{0}', space=vmem, size = 0x400, scoped, tag = 'output window, operand 0, single buffered']
    %18 = vsyncpa [#allocation7], 0
    %19 = vsyncpa [#allocation5], 0
    %20 = vsyncpa [#allocation10], 0
    %21 = vsyncpa [#allocation13], 0
    %22 = vsyncpa [#allocation16], 0
    %23 = vsyncpa [#allocation6], 0
    // Predicated region
    $region2: #{tpu_custom_call.1} parent=1 // pred_check
      _
    $region3: #{tpu_custom_call.1} parent=1 // pred_check_branch
      %25 = sbr.rel (0) target = $region5
    $region4: #{tpu_custom_call.1} parent=1 // pred_region
      _
    $region5: #{tpu_custom_call.1} parent=1 // pred_fallthru
      _
    // Predicated region
    $region6: #{tpu_custom_call.1} parent=1 // pred_check
      _
    $region7: #{tpu_custom_call.1} parent=1 // pred_check_branch
      %27 = sbr.rel (0) target = $region9
    $region8: #{tpu_custom_call.1} parent=1 // pred_region
      %29 = vsyncadd [#allocation7], 0
      %s31 = sshll.u32 %s1, 4
      %s32 = int_to_ptr.vmem [resolvable:$true] %s31
      %34 = dma.vmem_to_smem %s32, 16, [#allocation4], [#allocation7]
    $region9: #{tpu_custom_call.1} parent=1 // pred_fallthru
      _
    // Predicated region
    $region10: #{tpu_custom_call.1} parent=1 // pred_check
      _
    $region11: #{tpu_custom_call.1} parent=1 // pred_check_branch
      %36 = sbr.rel (0) target = $region13
    $region12: #{tpu_custom_call.1} parent=1 // pred_region
      %38 = vsyncadd [#allocation5], 0
      %s39 = sshll.u32 %s2, 4
      %s40 = int_to_ptr.hbm [resolvable:$true] %s39
      %s41 = sshll.u32 [#allocation8], 4
      %s42 = int_to_ptr.vmem [resolvable:$true] %s41
      %47 = dma.hbm_to_vmem [thread:$0]  %s40, 4096, %s42, [#allocation5], 256, 256, 16
    $region13: #{tpu_custom_call.1} parent=1 // pred_fallthru
      _
    // Predicated region
    $region14: #{tpu_custom_call.1} parent=1 // pred_check
      _
    $region15: #{tpu_custom_call.1} parent=1 // pred_check_branch
      %49 = sbr.rel (0) target = $region17
    $region16: #{tpu_custom_call.1} parent=1 // pred_region
      %51 = vsyncadd [#allocation10], 0
      %s52 = sshll.u32 %s3, 4
      %s53 = int_to_ptr.hbm [resolvable:$true] %s52
      %s54 = sshll.u32 [#allocation9], 4
      %s55 = int_to_ptr.vmem [resolvable:$true] %s54
      %60 = dma.hbm_to_vmem [thread:$0]  %s53, 4096, %s55, [#allocation10], 256, 256, 16
    $region17: #{tpu_custom_call.1} parent=1 // pred_fallthru
      _
    // Predicated region
    $region18: #{tpu_custom_call.1} parent=1 // pred_check
      _
    $region19: #{tpu_custom_call.1} parent=1 // pred_check_branch
      %62 = sbr.rel (0) target = $region21
    $region20: #{tpu_custom_call.1} parent=1 // pred_region
      _
    $region21: #{tpu_custom_call.1} parent=1 // pred_fallthru
      _
    // Predicated region
    $region22: #{tpu_custom_call.1} parent=1 // pred_check
      _
    $region23: #{tpu_custom_call.1} parent=1 // pred_check_branch
      %64 = sbr.rel (0) target = $region25
    $region24: #{tpu_custom_call.1} parent=1 // pred_region
      %66 = vsyncadd [#allocation10], 0
      %s67 = sshll.u32 %s5, 4
      %s68 = int_to_ptr.hbm [resolvable:$true] %s67
      %s69 = sshll.u32 [#allocation11], 4
      %s70 = int_to_ptr.vmem [resolvable:$true] %s69
      %75 = dma.hbm_to_vmem [thread:$0]  %s68, 4096, %s70, [#allocation10], 256, 256, 16
    $region25: #{tpu_custom_call.1} parent=1 // pred_fallthru
      _
    // Predicated region
    $region26: #{tpu_custom_call.1} parent=1 // pred_check
      _
    $region27: #{tpu_custom_call.1} parent=1 // pred_check_branch
      %77 = sbr.rel (0) target = $region29
    $region28: #{tpu_custom_call.1} parent=1 // pred_region
      %79 = vsyncadd [#allocation13], 0
      %s81 = sshll.u32 %s6, 4
      %s82 = int_to_ptr.hbm [resolvable:$true] %s81
      %s83 = sshll.u32 [#allocation12], 4
      %s84 = int_to_ptr.vmem [resolvable:$true] %s83
      %86 = dma.hbm_to_vmem [thread:$0]  %s82, 512, %s84, [#allocation13]
    $region29: #{tpu_custom_call.1} parent=1 // pred_fallthru
      _
    // Predicated region
    $region30: #{tpu_custom_call.1} parent=1 // pred_check
      _
    $region31: #{tpu_custom_call.1} parent=1 // pred_check_branch
      %88 = sbr.rel (0) target = $region33
    $region32: #{tpu_custom_call.1} parent=1 // pred_region
      %90 = vsyncadd [#allocation13], 0
      %s91 = sshll.u32 %s7, 4
      %s92 = int_to_ptr.hbm [resolvable:$true] %s91
      %s93 = sshll.u32 [#allocation14], 4
      %s94 = int_to_ptr.vmem [resolvable:$true] %s93
      %99 = dma.hbm_to_vmem [thread:$0]  %s92, 4096, %s94, [#allocation13], 256, 256, 16
    $region33: #{tpu_custom_call.1} parent=1 // pred_fallthru
      _
    // Predicated region
    $region34: #{tpu_custom_call.1} parent=1 // pred_check
      _
    $region35: #{tpu_custom_call.1} parent=1 // pred_check_branch
      %101 = sbr.rel (0) target = $region37
    $region36: #{tpu_custom_call.1} parent=1 // pred_region
      _
    $region37: #{tpu_custom_call.1} parent=1 // pred_fallthru
      _
    // Predicated region
    $region38: #{tpu_custom_call.1} parent=1 // pred_check
      _
    $region39: #{tpu_custom_call.1} parent=1 // pred_check_branch
      %103 = sbr.rel (0) target = $region41
    $region40: #{tpu_custom_call.1} parent=1 // pred_region
      %105 = vsyncadd [#allocation16], 0
      %s106 = sshll.u32 %s9, 4
      %s107 = int_to_ptr.hbm [resolvable:$true] %s106
      %s108 = sshll.u32 [#allocation15], 4
      %s109 = int_to_ptr.vmem [resolvable:$true] %s108
      %114 = dma.hbm_to_vmem [thread:$0]  %s107, 8192, %s109, [#allocation16], 256, 256, 16
    $region41: #{tpu_custom_call.1} parent=1 // pred_fallthru
      _
    // Predicated region
    $region42: #{tpu_custom_call.1} parent=1 // pred_check
      _
    $region43: #{tpu_custom_call.1} parent=1 // pred_check_branch
      %116 = sbr.rel (0) target = $region45
    $region44: #{tpu_custom_call.1} parent=1 // pred_region
      _
    $region45: #{tpu_custom_call.1} parent=1 // pred_fallthru
      _
    // Predicated region
    $region46: #{tpu_custom_call.1} parent=1 // pred_check
      _
    $region47: #{tpu_custom_call.1} parent=1 // pred_check_branch
      %118 = sbr.rel (0) target = $region49
    $region48: #{tpu_custom_call.1} parent=1 // pred_region
      _
    $region49: #{tpu_custom_call.1} parent=1 // pred_fallthru
      _
    // Predicated region
    $region50: #{tpu_custom_call.1} parent=1 // pred_check
      _
    $region51: #{tpu_custom_call.1} parent=1 // pred_check_branch
      %120 = sbr.rel (0) target = $region53
    $region52: #{tpu_custom_call.1} parent=1 // pred_region
      _
    $region53: #{tpu_custom_call.1} parent=1 // pred_fallthru
      _
    // Predicated region
    $region54: #{tpu_custom_call.1} parent=1 // pred_check
      _
    $region55: #{tpu_custom_call.1} parent=1 // pred_check_branch
      %122 = sbr.rel (0) target = $region57
    $region56: #{tpu_custom_call.1} parent=1 // pred_region
      %124 = dma.done [#allocation7], 16
    $region57: #{tpu_custom_call.1} parent=1 // pred_fallthru
      _
    // Predicated region
    $region58: #{tpu_custom_call.1} parent=1 // pred_check
      _
    $region59: #{tpu_custom_call.1} parent=1 // pred_check_branch
      %126 = sbr.rel (0) target = $region61
    $region60: #{tpu_custom_call.1} parent=1 // pred_region
      %128 = dma.done [#allocation5], 4096
    $region61: #{tpu_custom_call.1} parent=1 // pred_fallthru
      _
    // Predicated region
    $region62: #{tpu_custom_call.1} parent=1 // pred_check
      _
    $region63: #{tpu_custom_call.1} parent=1 // pred_check_branch
      %130 = sbr.rel (0) target = $region65
    $region64: #{tpu_custom_call.1} parent=1 // pred_region
      %132 = dma.done [#allocation10], 4096
    $region65: #{tpu_custom_call.1} parent=1 // pred_fallthru
      _
    // Predicated region
    $region66: #{tpu_custom_call.1} parent=1 // pred_check
      _
    $region67: #{tpu_custom_call.1} parent=1 // pred_check_branch
      %134 = sbr.rel (0) target = $region69
    $region68: #{tpu_custom_call.1} parent=1 // pred_region
      %136 = dma.done [#allocation10], 4096
    $region69: #{tpu_custom_call.1} parent=1 // pred_fallthru
      _
    // Predicated region
    $region70: #{tpu_custom_call.1} parent=1 // pred_check
      _
    $region71: #{tpu_custom_call.1} parent=1 // pred_check_branch
      %138 = sbr.rel (0) target = $region73
    $region72: #{tpu_custom_call.1} parent=1 // pred_region
      %140 = dma.done [#allocation13], 512
    $region73: #{tpu_custom_call.1} parent=1 // pred_fallthru
      _
    // Predicated region
    $region74: #{tpu_custom_call.1} parent=1 // pred_check
      _
    $region75: #{tpu_custom_call.1} parent=1 // pred_check_branch
      %142 = sbr.rel (0) target = $region77
    $region76: #{tpu_custom_call.1} parent=1 // pred_region
      %144 = dma.done [#allocation13], 4096
    $region77: #{tpu_custom_call.1} parent=1 // pred_fallthru
      _
    // Predicated region
    $region78: #{tpu_custom_call.1} parent=1 // pred_check
      _
    $region79: #{tpu_custom_call.1} parent=1 // pred_check_branch
      %146 = sbr.rel (0) target = $region81
    $region80: #{tpu_custom_call.1} parent=1 // pred_region
      %148 = dma.done [#allocation16], 8192
    $region81: #{tpu_custom_call.1} parent=1 // pred_fallthru
      _
    %149 = sfence
    %v151 = vld [vmem:[%s0] sm:$0xff]
    %v152 = vld [vmem:[%s0 + $0x8] sm:$0xff]
    %v153 = vld [vmem:[%s0 + $0x10] sm:$0xff]
    %v154 = vld [vmem:[%s0 + $0x18] sm:$0xff]
    %v155 = vld [vmem:[%s0 + $0x20] sm:$0xff]
    %v156 = vld [vmem:[%s0 + $0x28] sm:$0xff]
    %v157 = vpack.c.bf16 %v152, %v151
    %v158 = vpack.c.bf16 %v154, %v153
    %v159 = vpack.c.bf16 %v156, %v155
    %v160 = vld [vmem:[#allocation8] sm:$0xff]
    %v161 = vld [vmem:[#allocation8 + $0x8] sm:$0xff]
    %v162 = vld [vmem:[#allocation8 + $0x10] sm:$0xff]
    %v163 = vld [vmem:[#allocation8 + $0x18] sm:$0xff]
    %v164 = vld [vmem:[#allocation8 + $0x20] sm:$0xff]
    %v165 = vld [vmem:[#allocation8 + $0x28] sm:$0xff]
    %v166 = vld [vmem:[#allocation8 + $0x30] sm:$0xff]
    %v167 = vld [vmem:[#allocation8 + $0x38] sm:$0xff]
    %v168 = vld [vmem:[#allocation8 + $0x40] sm:$0xff]
    %v169 = vld [vmem:[#allocation8 + $0x48] sm:$0xff]
    %v170 = vld [vmem:[#allocation8 + $0x50] sm:$0xff]
    %v171 = vld [vmem:[#allocation8 + $0x58] sm:$0xff]
    %v172 = vld [vmem:[#allocation8 + $0x60] sm:$0xff]
    %v173 = vld [vmem:[#allocation8 + $0x68] sm:$0xff]
    %v174 = vld [vmem:[#allocation8 + $0x70] sm:$0xff]
    %v175 = vld [vmem:[#allocation8 + $0x78] sm:$0xff]
    %v176 = vld [vmem:[#allocation8 + $0x80] sm:$0xff]
    %v177 = vld [vmem:[#allocation8 + $0x88] sm:$0xff]
    %v178 = vld [vmem:[#allocation8 + $0x90] sm:$0xff]
    %v179 = vld [vmem:[#allocation8 + $0x98] sm:$0xff]
    %v180 = vld [vmem:[#allocation8 + $0xa0] sm:$0xff]
    %v181 = vld [vmem:[#allocation8 + $0xa8] sm:$0xff]
    %v182 = vld [vmem:[#allocation8 + $0xb0] sm:$0xff]
    %v183 = vld [vmem:[#allocation8 + $0xb8] sm:$0xff]
    %v184 = vld [vmem:[#allocation8 + $0xc0] sm:$0xff]
    %v185 = vld [vmem:[#allocation8 + $0xc8] sm:$0xff]
    %v186 = vld [vmem:[#allocation8 + $0xd0] sm:$0xff]
    %v187 = vld [vmem:[#allocation8 + $0xd8] sm:$0xff]
    %v188 = vld [vmem:[#allocation8 + $0xe0] sm:$0xff]
    %v189 = vld [vmem:[#allocation8 + $0xe8] sm:$0xff]
    %v190 = vld [vmem:[#allocation8 + $0xf0] sm:$0xff]
    %v191 = vld [vmem:[#allocation8 + $0xf8] sm:$0xff]
    %v192 = vld [vmem:[%s4] sm:$0xf]
    %v194 = vperm.slane %v192, 0
    %v195 = vperm.slane %v192, 1
    %v196 = vperm.slane %v192, 2
    %v197 = vperm.slane %v192, 3
    %v234 = vunpack.c.l.b16 %v160
    %v235 = vunpack.c.h.b16 %v160
    %v236 = vunpack.c.l.b16 %v161
    %v237 = vunpack.c.h.b16 %v161
    %v238 = vunpack.c.l.b16 %v162
    %v239 = vunpack.c.h.b16 %v162
    %v240 = vunpack.c.l.b16 %v163
    %v241 = vunpack.c.h.b16 %v163
    %v242 = vunpack.c.l.b16 %v164
    %v243 = vunpack.c.h.b16 %v164
    %v244 = vunpack.c.l.b16 %v165
    %v245 = vunpack.c.h.b16 %v165
    %v246 = vunpack.c.l.b16 %v166
    %v247 = vunpack.c.h.b16 %v166
    %v248 = vunpack.c.l.b16 %v167
    %v249 = vunpack.c.h.b16 %v167
    %v250 = vunpack.c.l.b16 %v168
    %v251 = vunpack.c.h.b16 %v168
    %v252 = vunpack.c.l.b16 %v169
    %v253 = vunpack.c.h.b16 %v169
    %v254 = vunpack.c.l.b16 %v170
    %v255 = vunpack.c.h.b16 %v170
    %v256 = vunpack.c.l.b16 %v171
    %v257 = vunpack.c.h.b16 %v171
    %v258 = vunpack.c.l.b16 %v172
    %v259 = vunpack.c.h.b16 %v172
    %v260 = vunpack.c.l.b16 %v173
    %v261 = vunpack.c.h.b16 %v173
    %v262 = vunpack.c.l.b16 %v174
    %v263 = vunpack.c.h.b16 %v174
    %v264 = vunpack.c.l.b16 %v175
    %v265 = vunpack.c.h.b16 %v175
    %v266 = vunpack.c.l.b16 %v176
    %v267 = vunpack.c.h.b16 %v176
    %v268 = vunpack.c.l.b16 %v177
    %v269 = vunpack.c.h.b16 %v177
    %v270 = vunpack.c.l.b16 %v178
    %v271 = vunpack.c.h.b16 %v178
    %v272 = vunpack.c.l.b16 %v179
    %v273 = vunpack.c.h.b16 %v179
    %v274 = vunpack.c.l.b16 %v180
    %v275 = vunpack.c.h.b16 %v180
    %v276 = vunpack.c.l.b16 %v181
    %v277 = vunpack.c.h.b16 %v181
    %v278 = vunpack.c.l.b16 %v182
    %v279 = vunpack.c.h.b16 %v182
    %v280 = vunpack.c.l.b16 %v183
    %v281 = vunpack.c.h.b16 %v183
    %v282 = vunpack.c.l.b16 %v184
    %v283 = vunpack.c.h.b16 %v184
    %v284 = vunpack.c.l.b16 %v185
    %v285 = vunpack.c.h.b16 %v185
    %v286 = vunpack.c.l.b16 %v186
    %v287 = vunpack.c.h.b16 %v186
    %v288 = vunpack.c.l.b16 %v187
    %v289 = vunpack.c.h.b16 %v187
    %v290 = vunpack.c.l.b16 %v188
    %v291 = vunpack.c.h.b16 %v188
    %v292 = vunpack.c.l.b16 %v189
    %v293 = vunpack.c.h.b16 %v189
    %v294 = vunpack.c.l.b16 %v190
    %v295 = vunpack.c.h.b16 %v190
    %v296 = vunpack.c.l.b16 %v191
    %v297 = vunpack.c.h.b16 %v191
    %v298 = vpack.c.b16 %v238, %v234
    %v299 = vpack.c.b16 %v239, %v235
    %v300 = vpack.c.b16 %v240, %v236
    %v301 = vpack.c.b16 %v241, %v237
    %v302 = vpack.c.b16 %v246, %v242
    %v303 = vpack.c.b16 %v247, %v243
    %v304 = vpack.c.b16 %v248, %v244
    %v305 = vpack.c.b16 %v249, %v245
    %v306 = vpack.c.b16 %v254, %v250
    %v307 = vpack.c.b16 %v255, %v251
    %v308 = vpack.c.b16 %v256, %v252
    %v309 = vpack.c.b16 %v257, %v253
    %v310 = vpack.c.b16 %v262, %v258
    %v311 = vpack.c.b16 %v263, %v259
    %v312 = vpack.c.b16 %v264, %v260
    %v313 = vpack.c.b16 %v265, %v261
    %v314 = vpack.c.b16 %v270, %v266
    %v315 = vpack.c.b16 %v271, %v267
    %v316 = vpack.c.b16 %v272, %v268
    %v317 = vpack.c.b16 %v273, %v269
    %v318 = vpack.c.b16 %v278, %v274
    %v319 = vpack.c.b16 %v279, %v275
    %v320 = vpack.c.b16 %v280, %v276
    %v321 = vpack.c.b16 %v281, %v277
    %v322 = vpack.c.b16 %v286, %v282
    %v323 = vpack.c.b16 %v287, %v283
    %v324 = vpack.c.b16 %v288, %v284
    %v325 = vpack.c.b16 %v289, %v285
    %v326 = vpack.c.b16 %v294, %v290
    %v327 = vpack.c.b16 %v295, %v291
    %v328 = vpack.c.b16 %v296, %v292
    %v329 = vpack.c.b16 %v297, %v293
    %362 = vmatpush.bf16.msra.mxu0 %v326
    %363 = vmatpush.bf16.msra.mxu0 %v322
    %364 = vmatpush.bf16.msra.mxu0 %v318
    %365 = vmatpush.bf16.msra.mxu0 %v314
    %366 = vmatpush.bf16.msra.mxu0 %v310
    %367 = vmatpush.bf16.msra.mxu0 %v306
    %368 = vmatpush.bf16.msra.mxu0 %v302
    %369 = vmatpush.bf16.msra.mxu0 %v298
    %370 = vmatmul.bf16.gmra.mxu0 %v157
    %v371 = vpop.f32.mrf.mxu0
    %v372 = vadd.f32 %v194, %v371
    %v373 = vpop.f32.mrf.mxu0
    %v374 = vadd.f32 %v194, %v373
    %375 = vmatmul.bf16.gmra.mxu0 %v158
    %v376 = vpop.f32.mrf.mxu0
    %v377 = vadd.f32 %v194, %v376
    %v378 = vpop.f32.mrf.mxu0
    %v379 = vadd.f32 %v194, %v378
    %380 = vmatmul.bf16.gmra.mxu0 %v159
    %v381 = vpop.f32.mrf.mxu0
    %v382 = vadd.f32 %v194, %v381
    %v383 = vpop.f32.mrf.mxu0
    %v384 = vadd.f32 %v194, %v383
    %385 = vdwg.mxu0
    %386 = vmatpush.bf16.msra.mxu0 %v327
    %387 = vmatpush.bf16.msra.mxu0 %v323
    %388 = vmatpush.bf16.msra.mxu0 %v319
    %389 = vmatpush.bf16.msra.mxu0 %v315
    %390 = vmatpush.bf16.msra.mxu0 %v311
    %391 = vmatpush.bf16.msra.mxu0 %v307
    %392 = vmatpush.bf16.msra.mxu0 %v303
    %393 = vmatpush.bf16.msra.mxu0 %v299
    %394 = vmatmul.bf16.gmra.mxu0 %v157
    %v395 = vpop.f32.mrf.mxu0
    %v396 = vadd.f32 %v195, %v395
    %v397 = vpop.f32.mrf.mxu0
    %v398 = vadd.f32 %v195, %v397
    %399 = vmatmul.bf16.gmra.mxu0 %v158
    %v400 = vpop.f32.mrf.mxu0
    %v401 = vadd.f32 %v195, %v400
    %v402 = vpop.f32.mrf.mxu0
    %v403 = vadd.f32 %v195, %v402
    %404 = vmatmul.bf16.gmra.mxu0 %v159
    %v405 = vpop.f32.mrf.mxu0
    %v406 = vadd.f32 %v195, %v405
    %v407 = vpop.f32.mrf.mxu0
    %v408 = vadd.f32 %v195, %v407
    %409 = vdwg.mxu0
    %410 = vmatpush.bf16.msra.mxu0 %v328
    %411 = vmatpush.bf16.msra.mxu0 %v324
    %412 = vmatpush.bf16.msra.mxu0 %v320
    %413 = vmatpush.bf16.msra.mxu0 %v316
    %414 = vmatpush.bf16.msra.mxu0 %v312
    %415 = vmatpush.bf16.msra.mxu0 %v308
    %416 = vmatpush.bf16.msra.mxu0 %v304
    %417 = vmatpush.bf16.msra.mxu0 %v300
    %418 = vmatmul.bf16.gmra.mxu0 %v157
    %v419 = vpop.f32.mrf.mxu0
    %v420 = vadd.f32 %v196, %v419
    %v421 = vpop.f32.mrf.mxu0
    %v422 = vadd.f32 %v196, %v421
    %423 = vmatmul.bf16.gmra.mxu0 %v158
    %v424 = vpop.f32.mrf.mxu0
    %v425 = vadd.f32 %v196, %v424
    %v426 = vpop.f32.mrf.mxu0
    %v427 = vadd.f32 %v196, %v426
    %428 = vmatmul.bf16.gmra.mxu0 %v159
    %v429 = vpop.f32.mrf.mxu0
    %v430 = vadd.f32 %v196, %v429
    %v431 = vpop.f32.mrf.mxu0
    %v432 = vadd.f32 %v196, %v431
    %433 = vdwg.mxu0
    %434 = vmatpush.bf16.msra.mxu0 %v329
    %435 = vmatpush.bf16.msra.mxu0 %v325
    %436 = vmatpush.bf16.msra.mxu0 %v321
    %437 = vmatpush.bf16.msra.mxu0 %v317
    %438 = vmatpush.bf16.msra.mxu0 %v313
    %439 = vmatpush.bf16.msra.mxu0 %v309
    %440 = vmatpush.bf16.msra.mxu0 %v305
    %441 = vmatpush.bf16.msra.mxu0 %v301
    %442 = vmatmul.bf16.gmra.mxu0 %v157
    %v443 = vpop.f32.mrf.mxu0
    %v444 = vadd.f32 %v197, %v443
    %v445 = vpop.f32.mrf.mxu0
    %v446 = vadd.f32 %v197, %v445
    %447 = vmatmul.bf16.gmra.mxu0 %v158
    %v448 = vpop.f32.mrf.mxu0
    %v449 = vadd.f32 %v197, %v448
    %v450 = vpop.f32.mrf.mxu0
    %v451 = vadd.f32 %v197, %v450
    %452 = vmatmul.bf16.gmra.mxu0 %v159
    %v453 = vpop.f32.mrf.mxu0
    %v454 = vadd.f32 %v197, %v453
    %v455 = vpop.f32.mrf.mxu0
    %v456 = vadd.f32 %v197, %v455
    %457 = vdwg.mxu0
    %458 = vst [vmem:[#allocation2] sm:$0xff] %v372
    %459 = vst [vmem:[#allocation2 + $0x8] sm:$0xff] %v396
    %460 = vst [vmem:[#allocation2 + $0x10] sm:$0xff] %v420
    %461 = vst [vmem:[#allocation2 + $0x18] sm:$0xff] %v444
    %462 = vst [vmem:[#allocation2 + $0x20] sm:$0xff] %v374
    %463 = vst [vmem:[#allocation2 + $0x28] sm:$0xff] %v398
    %464 = vst [vmem:[#allocation2 + $0x30] sm:$0xff] %v422
    %465 = vst [vmem:[#allocation2 + $0x38] sm:$0xff] %v446
    %466 = vst [vmem:[#allocation2 + $0x40] sm:$0xff] %v377
    %467 = vst [vmem:[#allocation2 + $0x48] sm:$0xff] %v401
    %468 = vst [vmem:[#allocation2 + $0x50] sm:$0xff] %v425
    %469 = vst [vmem:[#allocation2 + $0x58] sm:$0xff] %v449
    %470 = vst [vmem:[#allocation2 + $0x60] sm:$0xff] %v379
    %471 = vst [vmem:[#allocation2 + $0x68] sm:$0xff] %v403
    %472 = vst [vmem:[#allocation2 + $0x70] sm:$0xff] %v427
    %473 = vst [vmem:[#allocation2 + $0x78] sm:$0xff] %v451
    %474 = vst [vmem:[#allocation2 + $0x80] sm:$0xff] %v382
    %475 = vst [vmem:[#allocation2 + $0x88] sm:$0xff] %v406
    %476 = vst [vmem:[#allocation2 + $0x90] sm:$0xff] %v430
    %477 = vst [vmem:[#allocation2 + $0x98] sm:$0xff] %v454
    %478 = vst [vmem:[#allocation2 + $0xa0] sm:$0xff] %v384
    %479 = vst [vmem:[#allocation2 + $0xa8] sm:$0xff] %v408
    %480 = vst [vmem:[#allocation2 + $0xb0] sm:$0xff] %v432
    %481 = vst [vmem:[#allocation2 + $0xb8] sm:$0xff] %v456
    %v482 = vld [vmem:[#allocation9] sm:$0xff]
    %v483 = vld [vmem:[#allocation9 + $0x8] sm:$0xff]
    %v484 = vld [vmem:[#allocation9 + $0x10] sm:$0xff]
    %v485 = vld [vmem:[#allocation9 + $0x18] sm:$0xff]
    %v486 = vld [vmem:[#allocation9 + $0x20] sm:$0xff]
    %v487 = vld [vmem:[#allocation9 + $0x28] sm:$0xff]
    %v488 = vld [vmem:[#allocation9 + $0x30] sm:$0xff]
    %v489 = vld [vmem:[#allocation9 + $0x38] sm:$0xff]
    %v490 = vld [vmem:[#allocation9 + $0x40] sm:$0xff]
    %v491 = vld [vmem:[#allocation9 + $0x48] sm:$0xff]
    %v492 = vld [vmem:[#allocation9 + $0x50] sm:$0xff]
    %v493 = vld [vmem:[#allocation9 + $0x58] sm:$0xff]
    %v494 = vld [vmem:[#allocation9 + $0x60] sm:$0xff]
    %v495 = vld [vmem:[#allocation9 + $0x68] sm:$0xff]
    %v496 = vld [vmem:[#allocation9 + $0x70] sm:$0xff]
    %v497 = vld [vmem:[#allocation9 + $0x78] sm:$0xff]
    %v498 = vld [vmem:[#allocation9 + $0x80] sm:$0xff]
    %v499 = vld [vmem:[#allocation9 + $0x88] sm:$0xff]
    %v500 = vld [vmem:[#allocation9 + $0x90] sm:$0xff]
    %v501 = vld [vmem:[#allocation9 + $0x98] sm:$0xff]
    %v502 = vld [vmem:[#allocation9 + $0xa0] sm:$0xff]
    %v503 = vld [vmem:[#allocation9 + $0xa8] sm:$0xff]
    %v504 = vld [vmem:[#allocation9 + $0xb0] sm:$0xff]
    %v505 = vld [vmem:[#allocation9 + $0xb8] sm:$0xff]
    %v506 = vld [vmem:[#allocation9 + $0xc0] sm:$0xff]
    %v507 = vld [vmem:[#allocation9 + $0xc8] sm:$0xff]
    %v508 = vld [vmem:[#allocation9 + $0xd0] sm:$0xff]
    %v509 = vld [vmem:[#allocation9 + $0xd8] sm:$0xff]
    %v510 = vld [vmem:[#allocation9 + $0xe0] sm:$0xff]
    %v511 = vld [vmem:[#allocation9 + $0xe8] sm:$0xff]
    %v512 = vld [vmem:[#allocation9 + $0xf0] sm:$0xff]
    %v513 = vld [vmem:[#allocation9 + $0xf8] sm:$0xff]
    %v514 = vld [vmem:[#allocation2] sm:$0xff]
    %v515 = vld [vmem:[#allocation2 + $0x8] sm:$0xff]
    %v516 = vld [vmem:[#allocation2 + $0x10] sm:$0xff]
    %v517 = vld [vmem:[#allocation2 + $0x18] sm:$0xff]
    %v550 = vunpack.c.l.b16 %v482
    %v551 = vunpack.c.h.b16 %v482
    %v552 = vunpack.c.l.b16 %v483
    %v553 = vunpack.c.h.b16 %v483
    %v554 = vunpack.c.l.b16 %v484
    %v555 = vunpack.c.h.b16 %v484
    %v556 = vunpack.c.l.b16 %v485
    %v557 = vunpack.c.h.b16 %v485
    %v558 = vunpack.c.l.b16 %v486
    %v559 = vunpack.c.h.b16 %v486
    %v560 = vunpack.c.l.b16 %v487
    %v561 = vunpack.c.h.b16 %v487
    %v562 = vunpack.c.l.b16 %v488
    %v563 = vunpack.c.h.b16 %v488
    %v564 = vunpack.c.l.b16 %v489
    %v565 = vunpack.c.h.b16 %v489
    %v566 = vunpack.c.l.b16 %v490
    %v567 = vunpack.c.h.b16 %v490
    %v568 = vunpack.c.l.b16 %v491
    %v569 = vunpack.c.h.b16 %v491
    %v570 = vunpack.c.l.b16 %v492
    %v571 = vunpack.c.h.b16 %v492
    %v572 = vunpack.c.l.b16 %v493
    %v573 = vunpack.c.h.b16 %v493
    %v574 = vunpack.c.l.b16 %v494
    %v575 = vunpack.c.h.b16 %v494
    %v576 = vunpack.c.l.b16 %v495
    %v577 = vunpack.c.h.b16 %v495
    %v578 = vunpack.c.l.b16 %v496
    %v579 = vunpack.c.h.b16 %v496
    %v580 = vunpack.c.l.b16 %v497
    %v581 = vunpack.c.h.b16 %v497
    %v582 = vunpack.c.l.b16 %v498
    %v583 = vunpack.c.h.b16 %v498
    %v584 = vunpack.c.l.b16 %v499
    %v585 = vunpack.c.h.b16 %v499
    %v586 = vunpack.c.l.b16 %v500
    %v587 = vunpack.c.h.b16 %v500
    %v588 = vunpack.c.l.b16 %v501
    %v589 = vunpack.c.h.b16 %v501
    %v590 = vunpack.c.l.b16 %v502
    %v591 = vunpack.c.h.b16 %v502
    %v592 = vunpack.c.l.b16 %v503
    %v593 = vunpack.c.h.b16 %v503
    %v594 = vunpack.c.l.b16 %v504
    %v595 = vunpack.c.h.b16 %v504
    %v596 = vunpack.c.l.b16 %v505
    %v597 = vunpack.c.h.b16 %v505
    %v598 = vunpack.c.l.b16 %v506
    %v599 = vunpack.c.h.b16 %v506
    %v600 = vunpack.c.l.b16 %v507
    %v601 = vunpack.c.h.b16 %v507
    %v602 = vunpack.c.l.b16 %v508
    %v603 = vunpack.c.h.b16 %v508
    %v604 = vunpack.c.l.b16 %v509
    %v605 = vunpack.c.h.b16 %v509
    %v606 = vunpack.c.l.b16 %v510
    %v607 = vunpack.c.h.b16 %v510
    %v608 = vunpack.c.l.b16 %v511
    %v609 = vunpack.c.h.b16 %v511
    %v610 = vunpack.c.l.b16 %v512
    %v611 = vunpack.c.h.b16 %v512
    %v612 = vunpack.c.l.b16 %v513
    %v613 = vunpack.c.h.b16 %v513
    %v614 = vpack.c.b16 %v554, %v550
    %v615 = vpack.c.b16 %v555, %v551
    %v616 = vpack.c.b16 %v556, %v552
    %v617 = vpack.c.b16 %v557, %v553
    %v618 = vpack.c.b16 %v562, %v558
    %v619 = vpack.c.b16 %v563, %v559
    %v620 = vpack.c.b16 %v564, %v560
    %v621 = vpack.c.b16 %v565, %v561
    %v622 = vpack.c.b16 %v570, %v566
    %v623 = vpack.c.b16 %v571, %v567
    %v624 = vpack.c.b16 %v572, %v568
    %v625 = vpack.c.b16 %v573, %v569
    %v626 = vpack.c.b16 %v578, %v574
    %v627 = vpack.c.b16 %v579, %v575
    %v628 = vpack.c.b16 %v580, %v576
    %v629 = vpack.c.b16 %v581, %v577
    %v630 = vpack.c.b16 %v586, %v582
    %v631 = vpack.c.b16 %v587, %v583
    %v632 = vpack.c.b16 %v588, %v584
    %v633 = vpack.c.b16 %v589, %v585
    %v634 = vpack.c.b16 %v594, %v590
    %v635 = vpack.c.b16 %v595, %v591
    %v636 = vpack.c.b16 %v596, %v592
    %v637 = vpack.c.b16 %v597, %v593
    %v638 = vpack.c.b16 %v602, %v598
    %v639 = vpack.c.b16 %v603, %v599
    %v640 = vpack.c.b16 %v604, %v600
    %v641 = vpack.c.b16 %v605, %v601
    %v642 = vpack.c.b16 %v610, %v606
    %v643 = vpack.c.b16 %v611, %v607
    %v644 = vpack.c.b16 %v612, %v608
    %v645 = vpack.c.b16 %v613, %v609
    %678 = vmatpush.bf16.msra.mxu0 %v642
    %679 = vmatpush.bf16.msra.mxu0 %v638
    %680 = vmatpush.bf16.msra.mxu0 %v634
    %681 = vmatpush.bf16.msra.mxu0 %v630
    %682 = vmatpush.bf16.msra.mxu0 %v626
    %683 = vmatpush.bf16.msra.mxu0 %v622
    %684 = vmatpush.bf16.msra.mxu0 %v618
    %685 = vmatpush.bf16.msra.mxu0 %v614
    %686 = vmatmul.bf16.gmra.mxu0 0
    %v687 = vpop.f32.mrf.mxu0
    %v688 = vadd.f32 0.0, %v687
    %v689 = vpop.f32.mrf.mxu0
    %690 = vdwg.mxu0
    %691 = vmatpush.bf16.msra.mxu0 %v643
    %692 = vmatpush.bf16.msra.mxu0 %v639
    %693 = vmatpush.bf16.msra.mxu0 %v635
    %694 = vmatpush.bf16.msra.mxu0 %v631
    %695 = vmatpush.bf16.msra.mxu0 %v627
    %696 = vmatpush.bf16.msra.mxu0 %v623
    %697 = vmatpush.bf16.msra.mxu0 %v619
    %698 = vmatpush.bf16.msra.mxu0 %v615
    %699 = vmatmul.bf16.gmra.mxu0 0
    %v700 = vpop.f32.mrf.mxu0
    %v701 = vadd.f32 0.0, %v700
    %v702 = vpop.f32.mrf.mxu0
    %703 = vdwg.mxu0
    %704 = vmatpush.bf16.msra.mxu0 %v644
    %705 = vmatpush.bf16.msra.mxu0 %v640
    %706 = vmatpush.bf16.msra.mxu0 %v636
    %707 = vmatpush.bf16.msra.mxu0 %v632
    %708 = vmatpush.bf16.msra.mxu0 %v628
    %709 = vmatpush.bf16.msra.mxu0 %v624
    %710 = vmatpush.bf16.msra.mxu0 %v620
    %711 = vmatpush.bf16.msra.mxu0 %v616
    %712 = vmatmul.bf16.gmra.mxu0 0
    %v713 = vpop.f32.mrf.mxu0
    %v714 = vadd.f32 0.0, %v713
    %v715 = vpop.f32.mrf.mxu0
    %716 = vdwg.mxu0
    %717 = vmatpush.bf16.msra.mxu0 %v645
    %718 = vmatpush.bf16.msra.mxu0 %v641
    %719 = vmatpush.bf16.msra.mxu0 %v637
    %720 = vmatpush.bf16.msra.mxu0 %v633
    %721 = vmatpush.bf16.msra.mxu0 %v629
    %722 = vmatpush.bf16.msra.mxu0 %v625
    %723 = vmatpush.bf16.msra.mxu0 %v621
    %724 = vmatpush.bf16.msra.mxu0 %v617
    %725 = vmatmul.bf16.gmra.mxu0 0
    %v726 = vpop.f32.mrf.mxu0
    %v727 = vadd.f32 0.0, %v726
    %v728 = vpop.f32.mrf.mxu0
    %729 = vdwg.mxu0
    %v730 = vadd.f32 %v514, %v688
    %v731 = vadd.f32 %v515, %v701
    %v732 = vadd.f32 %v516, %v714
    %v733 = vadd.f32 %v517, %v727
    %v734 = vxor.u32 %v730, 2147483648
    %v735 = vmul.f32 %v734, 1.442695
    %v736 = vpow.pop %v735
    %v737 = vadd.f32 %v736, 1.0
    %v738 = vrcp.pop %v737
    %v739 = vmul.f32 %v737, %v738
    %v740 = vsub.f32 1.0, %v739
    %v741 = vmul.f32 %v738, %v740
    %v742 = vadd.f32 %v738, %v741
    %vm743 = vweird.f32 %v737
    %vm744 = vweird.f32 %v738
    %vm745 = vmor %vm743, %vm744
    %v746 = vsel %vm745, %v738, %v742
    %v747 = vand.u32 2147483647, %v737
    %vm748 = vcmp.eq.f32.partialorder %v747, 8.507059e+37
    %v749 = vand.u32 %v737, 2147483648
    %v750 = vor.u32 1.1754944e-38, %v749
    %v751 = vsel %vm748, %v750, %v746
    %v752 = vmul.f32 1.0, %v751
    %v753 = vxor.u32 %v731, 2147483648
    %v754 = vmul.f32 %v753, 1.442695
    %v755 = vpow.pop %v754
    %v756 = vadd.f32 %v755, 1.0
    %v757 = vrcp.pop %v756
    %v758 = vmul.f32 %v756, %v757
    %v759 = vsub.f32 1.0, %v758
    %v760 = vmul.f32 %v757, %v759
    %v761 = vadd.f32 %v757, %v760
    %vm762 = vweird.f32 %v756
    %vm763 = vweird.f32 %v757
    %vm764 = vmor %vm762, %vm763
    %v765 = vsel %vm764, %v757, %v761
    %v766 = vand.u32 2147483647, %v756
    %vm767 = vcmp.eq.f32.partialorder %v766, 8.507059e+37
    %v768 = vand.u32 %v756, 2147483648
    %v769 = vor.u32 1.1754944e-38, %v768
    %v770 = vsel %vm767, %v769, %v765
    %v771 = vmul.f32 1.0, %v770
    %v772 = vtanh.pop %v732
    %v773 = vxor.u32 %v733, 2147483648
    %v774 = vmul.f32 %v773, 1.442695
    %v775 = vpow.pop %v774
    %v776 = vadd.f32 %v775, 1.0
    %v777 = vrcp.pop %v776
    %v778 = vmul.f32 %v776, %v777
    %v779 = vsub.f32 1.0, %v778
    %v780 = vmul.f32 %v777, %v779
    %v781 = vadd.f32 %v777, %v780
    %vm782 = vweird.f32 %v776
    %vm783 = vweird.f32 %v777
    %vm784 = vmor %vm782, %vm783
    %v785 = vsel %vm784, %v777, %v781
    %v786 = vand.u32 2147483647, %v776
    %vm787 = vcmp.eq.f32.partialorder %v786, 8.507059e+37
    %v788 = vand.u32 %v776, 2147483648
    %v789 = vor.u32 1.1754944e-38, %v788
    %v790 = vsel %vm787, %v789, %v785
    %v791 = vmul.f32 1.0, %v790
    %v792 = vmul.f32 %v771, 0.0
    %v793 = vmul.f32 %v752, %v772
    %v794 = vadd.f32 %v792, %v793
    %v795 = vtanh.pop %v794
    %v796 = vmul.f32 %v791, %v795
    %s797 = scalar_lea.vmem [#allocation2], 32
    %v798 = vld [vmem:[%s797] sm:$0xff]
    %v799 = vld [vmem:[%s797 + $0x8] sm:$0xff]
    %v800 = vld [vmem:[%s797 + $0x10] sm:$0xff]
    %v801 = vld [vmem:[%s797 + $0x18] sm:$0xff]
    %v802 = vpack.c.bf16 %v796, %v796
    %803 = vmatpush.bf16.msra.mxu0 %v642
    %804 = vmatpush.bf16.msra.mxu0 %v638
    %805 = vmatpush.bf16.msra.mxu0 %v634
    %806 = vmatpush.bf16.msra.mxu0 %v630
    %807 = vmatpush.bf16.msra.mxu0 %v626
    %808 = vmatpush.bf16.msra.mxu0 %v622
    %809 = vmatpush.bf16.msra.mxu0 %v618
    %810 = vmatpush.bf16.msra.mxu0 %v614
    %811 = vmatmul.bf16.gmra.mxu0 %v802
    %v812 = vpop.f32.mrf.mxu0
    %v813 = vadd.f32 0.0, %v812
    %v814 = vpop.f32.mrf.mxu0
    %815 = vdwg.mxu0
    %816 = vmatpush.bf16.msra.mxu0 %v643
    %817 = vmatpush.bf16.msra.mxu0 %v639
    %818 = vmatpush.bf16.msra.mxu0 %v635
    %819 = vmatpush.bf16.msra.mxu0 %v631
    %820 = vmatpush.bf16.msra.mxu0 %v627
    %821 = vmatpush.bf16.msra.mxu0 %v623
    %822 = vmatpush.bf16.msra.mxu0 %v619
    %823 = vmatpush.bf16.msra.mxu0 %v615
    %824 = vmatmul.bf16.gmra.mxu0 %v802
    %v825 = vpop.f32.mrf.mxu0
    %v826 = vadd.f32 0.0, %v825
    %v827 = vpop.f32.mrf.mxu0
    %828 = vdwg.mxu0
    %829 = vmatpush.bf16.msra.mxu0 %v644
    %830 = vmatpush.bf16.msra.mxu0 %v640
    %831 = vmatpush.bf16.msra.mxu0 %v636
    %832 = vmatpush.bf16.msra.mxu0 %v632
    %833 = vmatpush.bf16.msra.mxu0 %v628
    %834 = vmatpush.bf16.msra.mxu0 %v624
    %835 = vmatpush.bf16.msra.mxu0 %v620
    %836 = vmatpush.bf16.msra.mxu0 %v616
    %837 = vmatmul.bf16.gmra.mxu0 %v802
    %v838 = vpop.f32.mrf.mxu0
    %v839 = vadd.f32 0.0, %v838
    %v840 = vpop.f32.mrf.mxu0
    %841 = vdwg.mxu0
    %842 = vmatpush.bf16.msra.mxu0 %v645
    %843 = vmatpush.bf16.msra.mxu0 %v641
    %844 = vmatpush.bf16.msra.mxu0 %v637
    %845 = vmatpush.bf16.msra.mxu0 %v633
    %846 = vmatpush.bf16.msra.mxu0 %v629
    %847 = vmatpush.bf16.msra.mxu0 %v625
    %848 = vmatpush.bf16.msra.mxu0 %v621
    %849 = vmatpush.bf16.msra.mxu0 %v617
    %850 = vmatmul.bf16.gmra.mxu0 %v802
    %v851 = vpop.f32.mrf.mxu0
    %v852 = vadd.f32 0.0, %v851
    %v853 = vpop.f32.mrf.mxu0
    %854 = vdwg.mxu0
    %v855 = vadd.f32 %v798, %v813
    %v856 = vadd.f32 %v799, %v826
    %v857 = vadd.f32 %v800, %v839
    %v858 = vadd.f32 %v801, %v852
    %v859 = vxor.u32 %v855, 2147483648
    %v860 = vmul.f32 %v859, 1.442695
    %v861 = vpow.pop %v860
    %v862 = vadd.f32 %v861, 1.0
    %v863 = vrcp.pop %v862
    %v864 = vmul.f32 %v862, %v863
    %v865 = vsub.f32 1.0, %v864
    %v866 = vmul.f32 %v863, %v865
    %v867 = vadd.f32 %v863, %v866
    %vm868 = vweird.f32 %v862
    %vm869 = vweird.f32 %v863
    %vm870 = vmor %vm868, %vm869
    %v871 = vsel %vm870, %v863, %v867
    %v872 = vand.u32 2147483647, %v862
    %vm873 = vcmp.eq.f32.partialorder %v872, 8.507059e+37
    %v874 = vand.u32 %v862, 2147483648
    %v875 = vor.u32 1.1754944e-38, %v874
    %v876 = vsel %vm873, %v875, %v871
    %v877 = vmul.f32 1.0, %v876
    %v878 = vxor.u32 %v856, 2147483648
    %v879 = vmul.f32 %v878, 1.442695
    %v880 = vpow.pop %v879
    %v881 = vadd.f32 %v880, 1.0
    %v882 = vrcp.pop %v881
    %v883 = vmul.f32 %v881, %v882
    %v884 = vsub.f32 1.0, %v883
    %v885 = vmul.f32 %v882, %v884
    %v886 = vadd.f32 %v882, %v885
    %vm887 = vweird.f32 %v881
    %vm888 = vweird.f32 %v882
    %vm889 = vmor %vm887, %vm888
    %v890 = vsel %vm889, %v882, %v886
    %v891 = vand.u32 2147483647, %v881
    %vm892 = vcmp.eq.f32.partialorder %v891, 8.507059e+37
    %v893 = vand.u32 %v881, 2147483648
    %v894 = vor.u32 1.1754944e-38, %v893
    %v895 = vsel %vm892, %v894, %v890
    %v896 = vmul.f32 1.0, %v895
    %v897 = vtanh.pop %v857
    %v898 = vxor.u32 %v858, 2147483648
    %v899 = vmul.f32 %v898, 1.442695
    %v900 = vpow.pop %v899
    %v901 = vadd.f32 %v900, 1.0
    %v902 = vrcp.pop %v901
    %v903 = vmul.f32 %v901, %v902
    %v904 = vsub.f32 1.0, %v903
    %v905 = vmul.f32 %v902, %v904
    %v906 = vadd.f32 %v902, %v905
    %vm907 = vweird.f32 %v901
    %vm908 = vweird.f32 %v902
    %vm909 = vmor %vm907, %vm908
    %v910 = vsel %vm909, %v902, %v906
    %v911 = vand.u32 2147483647, %v901
    %vm912 = vcmp.eq.f32.partialorder %v911, 8.507059e+37
    %v913 = vand.u32 %v901, 2147483648
    %v914 = vor.u32 1.1754944e-38, %v913
    %v915 = vsel %vm912, %v914, %v910
    %v916 = vmul.f32 1.0, %v915
    %v917 = vmul.f32 %v896, %v794
    %v918 = vmul.f32 %v877, %v897
    %v919 = vadd.f32 %v917, %v918
    %v920 = vtanh.pop %v919
    %v921 = vmul.f32 %v916, %v920
    %s922 = scalar_lea.vmem [#allocation2], 64
    %v923 = vld [vmem:[%s922] sm:$0xff]
    %v924 = vld [vmem:[%s922 + $0x8] sm:$0xff]
    %v925 = vld [vmem:[%s922 + $0x10] sm:$0xff]
    %v926 = vld [vmem:[%s922 + $0x18] sm:$0xff]
    %v927 = vpack.c.bf16 %v921, %v921
    %928 = vmatpush.bf16.msra.mxu0 %v642
    %929 = vmatpush.bf16.msra.mxu0 %v638
    %930 = vmatpush.bf16.msra.mxu0 %v634
    %931 = vmatpush.bf16.msra.mxu0 %v630
    %932 = vmatpush.bf16.msra.mxu0 %v626
    %933 = vmatpush.bf16.msra.mxu0 %v622
    %934 = vmatpush.bf16.msra.mxu0 %v618
    %935 = vmatpush.bf16.msra.mxu0 %v614
    %936 = vmatmul.bf16.gmra.mxu0 %v927
    %v937 = vpop.f32.mrf.mxu0
    %v938 = vadd.f32 0.0, %v937
    %v939 = vpop.f32.mrf.mxu0
    %940 = vdwg.mxu0
    %941 = vmatpush.bf16.msra.mxu0 %v643
    %942 = vmatpush.bf16.msra.mxu0 %v639
    %943 = vmatpush.bf16.msra.mxu0 %v635
    %944 = vmatpush.bf16.msra.mxu0 %v631
    %945 = vmatpush.bf16.msra.mxu0 %v627
    %946 = vmatpush.bf16.msra.mxu0 %v623
    %947 = vmatpush.bf16.msra.mxu0 %v619
    %948 = vmatpush.bf16.msra.mxu0 %v615
    %949 = vmatmul.bf16.gmra.mxu0 %v927
    %v950 = vpop.f32.mrf.mxu0
    %v951 = vadd.f32 0.0, %v950
    %v952 = vpop.f32.mrf.mxu0
    %953 = vdwg.mxu0
    %954 = vmatpush.bf16.msra.mxu0 %v644
    %955 = vmatpush.bf16.msra.mxu0 %v640
    %956 = vmatpush.bf16.msra.mxu0 %v636
    %957 = vmatpush.bf16.msra.mxu0 %v632
    %958 = vmatpush.bf16.msra.mxu0 %v628
    %959 = vmatpush.bf16.msra.mxu0 %v624
    %960 = vmatpush.bf16.msra.mxu0 %v620
    %961 = vmatpush.bf16.msra.mxu0 %v616
    %962 = vmatmul.bf16.gmra.mxu0 %v927
    %v963 = vpop.f32.mrf.mxu0
    %v964 = vadd.f32 0.0, %v963
    %v965 = vpop.f32.mrf.mxu0
    %966 = vdwg.mxu0
    %967 = vmatpush.bf16.msra.mxu0 %v645
    %968 = vmatpush.bf16.msra.mxu0 %v641
    %969 = vmatpush.bf16.msra.mxu0 %v637
    %970 = vmatpush.bf16.msra.mxu0 %v633
    %971 = vmatpush.bf16.msra.mxu0 %v629
    %972 = vmatpush.bf16.msra.mxu0 %v625
    %973 = vmatpush.bf16.msra.mxu0 %v621
    %974 = vmatpush.bf16.msra.mxu0 %v617
    %975 = vmatmul.bf16.gmra.mxu0 %v927
    %v976 = vpop.f32.mrf.mxu0
    %v977 = vadd.f32 0.0, %v976
    %v978 = vpop.f32.mrf.mxu0
    %979 = vdwg.mxu0
    %v980 = vadd.f32 %v923, %v938
    %v981 = vadd.f32 %v924, %v951
    %v982 = vadd.f32 %v925, %v964
    %v983 = vadd.f32 %v926, %v977
    %v984 = vxor.u32 %v980, 2147483648
    %v985 = vmul.f32 %v984, 1.442695
    %v986 = vpow.pop %v985
    %v987 = vadd.f32 %v986, 1.0
    %v988 = vrcp.pop %v987
    %v989 = vmul.f32 %v987, %v988
    %v990 = vsub.f32 1.0, %v989
    %v991 = vmul.f32 %v988, %v990
    %v992 = vadd.f32 %v988, %v991
    %vm993 = vweird.f32 %v987
    %vm994 = vweird.f32 %v988
    %vm995 = vmor %vm993, %vm994
    %v996 = vsel %vm995, %v988, %v992
    %v997 = vand.u32 2147483647, %v987
    %vm998 = vcmp.eq.f32.partialorder %v997, 8.507059e+37
    %v999 = vand.u32 %v987, 2147483648
    %v1000 = vor.u32 1.1754944e-38, %v999
    %v1001 = vsel %vm998, %v1000, %v996
    %v1002 = vmul.f32 1.0, %v1001
    %v1003 = vxor.u32 %v981, 2147483648
    %v1004 = vmul.f32 %v1003, 1.442695
    %v1005 = vpow.pop %v1004
    %v1006 = vadd.f32 %v1005, 1.0
    %v1007 = vrcp.pop %v1006
    %v1008 = vmul.f32 %v1006, %v1007
    %v1009 = vsub.f32 1.0, %v1008
    %v1010 = vmul.f32 %v1007, %v1009
    %v1011 = vadd.f32 %v1007, %v1010
    %vm1012 = vweird.f32 %v1006
    %vm1013 = vweird.f32 %v1007
    %vm1014 = vmor %vm1012, %vm1013
    %v1015 = vsel %vm1014, %v1007, %v1011
    %v1016 = vand.u32 2147483647, %v1006
    %vm1017 = vcmp.eq.f32.partialorder %v1016, 8.507059e+37
    %v1018 = vand.u32 %v1006, 2147483648
    %v1019 = vor.u32 1.1754944e-38, %v1018
    %v1020 = vsel %vm1017, %v1019, %v1015
    %v1021 = vmul.f32 1.0, %v1020
    %v1022 = vtanh.pop %v982
    %v1023 = vxor.u32 %v983, 2147483648
    %v1024 = vmul.f32 %v1023, 1.442695
    %v1025 = vpow.pop %v1024
    %v1026 = vadd.f32 %v1025, 1.0
    %v1027 = vrcp.pop %v1026
    %v1028 = vmul.f32 %v1026, %v1027
    %v1029 = vsub.f32 1.0, %v1028
    %v1030 = vmul.f32 %v1027, %v1029
    %v1031 = vadd.f32 %v1027, %v1030
    %vm1032 = vweird.f32 %v1026
    %vm1033 = vweird.f32 %v1027
    %vm1034 = vmor %vm1032, %vm1033
    %v1035 = vsel %vm1034, %v1027, %v1031
    %v1036 = vand.u32 2147483647, %v1026
    %vm1037 = vcmp.eq.f32.partialorder %v1036, 8.507059e+37
    %v1038 = vand.u32 %v1026, 2147483648
    %v1039 = vor.u32 1.1754944e-38, %v1038
    %v1040 = vsel %vm1037, %v1039, %v1035
    %v1041 = vmul.f32 1.0, %v1040
    %v1042 = vmul.f32 %v1021, %v919
    %v1043 = vmul.f32 %v1002, %v1022
    %v1044 = vadd.f32 %v1042, %v1043
    %v1045 = vtanh.pop %v1044
    %v1046 = vmul.f32 %v1041, %v1045
    %s1047 = scalar_lea.vmem [#allocation2], 96
    %v1048 = vld [vmem:[%s1047] sm:$0xff]
    %v1049 = vld [vmem:[%s1047 + $0x8] sm:$0xff]
    %v1050 = vld [vmem:[%s1047 + $0x10] sm:$0xff]
    %v1051 = vld [vmem:[%s1047 + $0x18] sm:$0xff]
    %v1052 = vpack.c.bf16 %v1046, %v1046
    %1053 = vmatpush.bf16.msra.mxu0 %v642
    %1054 = vmatpush.bf16.msra.mxu0 %v638
    %1055 = vmatpush.bf16.msra.mxu0 %v634
    %1056 = vmatpush.bf16.msra.mxu0 %v630
    %1057 = vmatpush.bf16.msra.mxu0 %v626
    %1058 = vmatpush.bf16.msra.mxu0 %v622
    %1059 = vmatpush.bf16.msra.mxu0 %v618
    %1060 = vmatpush.bf16.msra.mxu0 %v614
    %1061 = vmatmul.bf16.gmra.mxu0 %v1052
    %v1062 = vpop.f32.mrf.mxu0
    %v1063 = vadd.f32 0.0, %v1062
    %v1064 = vpop.f32.mrf.mxu0
    %1065 = vdwg.mxu0
    %1066 = vmatpush.bf16.msra.mxu0 %v643
    %1067 = vmatpush.bf16.msra.mxu0 %v639
    %1068 = vmatpush.bf16.msra.mxu0 %v635
    %1069 = vmatpush.bf16.msra.mxu0 %v631
    %1070 = vmatpush.bf16.msra.mxu0 %v627
    %1071 = vmatpush.bf16.msra.mxu0 %v623
    %1072 = vmatpush.bf16.msra.mxu0 %v619
    %1073 = vmatpush.bf16.msra.mxu0 %v615
    %1074 = vmatmul.bf16.gmra.mxu0 %v1052
    %v1075 = vpop.f32.mrf.mxu0
    %v1076 = vadd.f32 0.0, %v1075
    %v1077 = vpop.f32.mrf.mxu0
    %1078 = vdwg.mxu0
    %1079 = vmatpush.bf16.msra.mxu0 %v644
    %1080 = vmatpush.bf16.msra.mxu0 %v640
    %1081 = vmatpush.bf16.msra.mxu0 %v636
    %1082 = vmatpush.bf16.msra.mxu0 %v632
    %1083 = vmatpush.bf16.msra.mxu0 %v628
    %1084 = vmatpush.bf16.msra.mxu0 %v624
    %1085 = vmatpush.bf16.msra.mxu0 %v620
    %1086 = vmatpush.bf16.msra.mxu0 %v616
    %1087 = vmatmul.bf16.gmra.mxu0 %v1052
    %v1088 = vpop.f32.mrf.mxu0
    %v1089 = vadd.f32 0.0, %v1088
    %v1090 = vpop.f32.mrf.mxu0
    %1091 = vdwg.mxu0
    %1092 = vmatpush.bf16.msra.mxu0 %v645
    %1093 = vmatpush.bf16.msra.mxu0 %v641
    %1094 = vmatpush.bf16.msra.mxu0 %v637
    %1095 = vmatpush.bf16.msra.mxu0 %v633
    %1096 = vmatpush.bf16.msra.mxu0 %v629
    %1097 = vmatpush.bf16.msra.mxu0 %v625
    %1098 = vmatpush.bf16.msra.mxu0 %v621
    %1099 = vmatpush.bf16.msra.mxu0 %v617
    %1100 = vmatmul.bf16.gmra.mxu0 %v1052
    %v1101 = vpop.f32.mrf.mxu0
    %v1102 = vadd.f32 0.0, %v1101
    %v1103 = vpop.f32.mrf.mxu0
    %1104 = vdwg.mxu0
    %v1105 = vadd.f32 %v1048, %v1063
    %v1106 = vadd.f32 %v1049, %v1076
    %v1107 = vadd.f32 %v1050, %v1089
    %v1108 = vadd.f32 %v1051, %v1102
    %v1109 = vxor.u32 %v1105, 2147483648
    %v1110 = vmul.f32 %v1109, 1.442695
    %v1111 = vpow.pop %v1110
    %v1112 = vadd.f32 %v1111, 1.0
    %v1113 = vrcp.pop %v1112
    %v1114 = vmul.f32 %v1112, %v1113
    %v1115 = vsub.f32 1.0, %v1114
    %v1116 = vmul.f32 %v1113, %v1115
    %v1117 = vadd.f32 %v1113, %v1116
    %vm1118 = vweird.f32 %v1112
    %vm1119 = vweird.f32 %v1113
    %vm1120 = vmor %vm1118, %vm1119
    %v1121 = vsel %vm1120, %v1113, %v1117
    %v1122 = vand.u32 2147483647, %v1112
    %vm1123 = vcmp.eq.f32.partialorder %v1122, 8.507059e+37
    %v1124 = vand.u32 %v1112, 2147483648
    %v1125 = vor.u32 1.1754944e-38, %v1124
    %v1126 = vsel %vm1123, %v1125, %v1121
    %v1127 = vmul.f32 1.0, %v1126
    %v1128 = vxor.u32 %v1106, 2147483648
    %v1129 = vmul.f32 %v1128, 1.442695
    %v1130 = vpow.pop %v1129
    %v1131 = vadd.f32 %v1130, 1.0
    %v1132 = vrcp.pop %v1131
    %v1133 = vmul.f32 %v1131, %v1132
    %v1134 = vsub.f32 1.0, %v1133
    %v1135 = vmul.f32 %v1132, %v1134
    %v1136 = vadd.f32 %v1132, %v1135
    %vm1137 = vweird.f32 %v1131
    %vm1138 = vweird.f32 %v1132
    %vm1139 = vmor %vm1137, %vm1138
    %v1140 = vsel %vm1139, %v1132, %v1136
    %v1141 = vand.u32 2147483647, %v1131
    %vm1142 = vcmp.eq.f32.partialorder %v1141, 8.507059e+37
    %v1143 = vand.u32 %v1131, 2147483648
    %v1144 = vor.u32 1.1754944e-38, %v1143
    %v1145 = vsel %vm1142, %v1144, %v1140
    %v1146 = vmul.f32 1.0, %v1145
    %v1147 = vtanh.pop %v1107
    %v1148 = vxor.u32 %v1108, 2147483648
    %v1149 = vmul.f32 %v1148, 1.442695
    %v1150 = vpow.pop %v1149
    %v1151 = vadd.f32 %v1150, 1.0
    %v1152 = vrcp.pop %v1151
    %v1153 = vmul.f32 %v1151, %v1152
    %v1154 = vsub.f32 1.0, %v1153
    %v1155 = vmul.f32 %v1152, %v1154
    %v1156 = vadd.f32 %v1152, %v1155
    %vm1157 = vweird.f32 %v1151
    %vm1158 = vweird.f32 %v1152
    %vm1159 = vmor %vm1157, %vm1158
    %v1160 = vsel %vm1159, %v1152, %v1156
    %v1161 = vand.u32 2147483647, %v1151
    %vm1162 = vcmp.eq.f32.partialorder %v1161, 8.507059e+37
    %v1163 = vand.u32 %v1151, 2147483648
    %v1164 = vor.u32 1.1754944e-38, %v1163
    %v1165 = vsel %vm1162, %v1164, %v1160
    %v1166 = vmul.f32 1.0, %v1165
    %v1167 = vmul.f32 %v1146, %v1044
    %v1168 = vmul.f32 %v1127, %v1147
    %v1169 = vadd.f32 %v1167, %v1168
    %v1170 = vtanh.pop %v1169
    %v1171 = vmul.f32 %v1166, %v1170
    %s1172 = scalar_lea.vmem [#allocation2], 128
    %v1173 = vld [vmem:[%s1172] sm:$0xff]
    %v1174 = vld [vmem:[%s1172 + $0x8] sm:$0xff]
    %v1175 = vld [vmem:[%s1172 + $0x10] sm:$0xff]
    %v1176 = vld [vmem:[%s1172 + $0x18] sm:$0xff]
    %v1177 = vpack.c.bf16 %v1171, %v1171
    %1178 = vmatpush.bf16.msra.mxu0 %v642
    %1179 = vmatpush.bf16.msra.mxu0 %v638
    %1180 = vmatpush.bf16.msra.mxu0 %v634
    %1181 = vmatpush.bf16.msra.mxu0 %v630
    %1182 = vmatpush.bf16.msra.mxu0 %v626
    %1183 = vmatpush.bf16.msra.mxu0 %v622
    %1184 = vmatpush.bf16.msra.mxu0 %v618
    %1185 = vmatpush.bf16.msra.mxu0 %v614
    %1186 = vmatmul.bf16.gmra.mxu0 %v1177
    %v1187 = vpop.f32.mrf.mxu0
    %v1188 = vadd.f32 0.0, %v1187
    %v1189 = vpop.f32.mrf.mxu0
    %1190 = vdwg.mxu0
    %1191 = vmatpush.bf16.msra.mxu0 %v643
    %1192 = vmatpush.bf16.msra.mxu0 %v639
    %1193 = vmatpush.bf16.msra.mxu0 %v635
    %1194 = vmatpush.bf16.msra.mxu0 %v631
    %1195 = vmatpush.bf16.msra.mxu0 %v627
    %1196 = vmatpush.bf16.msra.mxu0 %v623
    %1197 = vmatpush.bf16.msra.mxu0 %v619
    %1198 = vmatpush.bf16.msra.mxu0 %v615
    %1199 = vmatmul.bf16.gmra.mxu0 %v1177
    %v1200 = vpop.f32.mrf.mxu0
    %v1201 = vadd.f32 0.0, %v1200
    %v1202 = vpop.f32.mrf.mxu0
    %1203 = vdwg.mxu0
    %1204 = vmatpush.bf16.msra.mxu0 %v644
    %1205 = vmatpush.bf16.msra.mxu0 %v640
    %1206 = vmatpush.bf16.msra.mxu0 %v636
    %1207 = vmatpush.bf16.msra.mxu0 %v632
    %1208 = vmatpush.bf16.msra.mxu0 %v628
    %1209 = vmatpush.bf16.msra.mxu0 %v624
    %1210 = vmatpush.bf16.msra.mxu0 %v620
    %1211 = vmatpush.bf16.msra.mxu0 %v616
    %1212 = vmatmul.bf16.gmra.mxu0 %v1177
    %v1213 = vpop.f32.mrf.mxu0
    %v1214 = vadd.f32 0.0, %v1213
    %v1215 = vpop.f32.mrf.mxu0
    %1216 = vdwg.mxu0
    %1217 = vmatpush.bf16.msra.mxu0 %v645
    %1218 = vmatpush.bf16.msra.mxu0 %v641
    %1219 = vmatpush.bf16.msra.mxu0 %v637
    %1220 = vmatpush.bf16.msra.mxu0 %v633
    %1221 = vmatpush.bf16.msra.mxu0 %v629
    %1222 = vmatpush.bf16.msra.mxu0 %v625
    %1223 = vmatpush.bf16.msra.mxu0 %v621
    %1224 = vmatpush.bf16.msra.mxu0 %v617
    %1225 = vmatmul.bf16.gmra.mxu0 %v1177
    %v1226 = vpop.f32.mrf.mxu0
    %v1227 = vadd.f32 0.0, %v1226
    %v1228 = vpop.f32.mrf.mxu0
    %1229 = vdwg.mxu0
    %v1230 = vadd.f32 %v1173, %v1188
    %v1231 = vadd.f32 %v1174, %v1201
    %v1232 = vadd.f32 %v1175, %v1214
    %v1233 = vadd.f32 %v1176, %v1227
    %v1234 = vxor.u32 %v1230, 2147483648
    %v1235 = vmul.f32 %v1234, 1.442695
    %v1236 = vpow.pop %v1235
    %v1237 = vadd.f32 %v1236, 1.0
    %v1238 = vrcp.pop %v1237
    %v1239 = vmul.f32 %v1237, %v1238
    %v1240 = vsub.f32 1.0, %v1239
    %v1241 = vmul.f32 %v1238, %v1240
    %v1242 = vadd.f32 %v1238, %v1241
    %vm1243 = vweird.f32 %v1237
    %vm1244 = vweird.f32 %v1238
    %vm1245 = vmor %vm1243, %vm1244
    %v1246 = vsel %vm1245, %v1238, %v1242
    %v1247 = vand.u32 2147483647, %v1237
    %vm1248 = vcmp.eq.f32.partialorder %v1247, 8.507059e+37
    %v1249 = vand.u32 %v1237, 2147483648
    %v1250 = vor.u32 1.1754944e-38, %v1249
    %v1251 = vsel %vm1248, %v1250, %v1246
    %v1252 = vmul.f32 1.0, %v1251
    %v1253 = vxor.u32 %v1231, 2147483648
    %v1254 = vmul.f32 %v1253, 1.442695
    %v1255 = vpow.pop %v1254
    %v1256 = vadd.f32 %v1255, 1.0
    %v1257 = vrcp.pop %v1256
    %v1258 = vmul.f32 %v1256, %v1257
    %v1259 = vsub.f32 1.0, %v1258
    %v1260 = vmul.f32 %v1257, %v1259
    %v1261 = vadd.f32 %v1257, %v1260
    %vm1262 = vweird.f32 %v1256
    %vm1263 = vweird.f32 %v1257
    %vm1264 = vmor %vm1262, %vm1263
    %v1265 = vsel %vm1264, %v1257, %v1261
    %v1266 = vand.u32 2147483647, %v1256
    %vm1267 = vcmp.eq.f32.partialorder %v1266, 8.507059e+37
    %v1268 = vand.u32 %v1256, 2147483648
    %v1269 = vor.u32 1.1754944e-38, %v1268
    %v1270 = vsel %vm1267, %v1269, %v1265
    %v1271 = vmul.f32 1.0, %v1270
    %v1272 = vtanh.pop %v1232
    %v1273 = vxor.u32 %v1233, 2147483648
    %v1274 = vmul.f32 %v1273, 1.442695
    %v1275 = vpow.pop %v1274
    %v1276 = vadd.f32 %v1275, 1.0
    %v1277 = vrcp.pop %v1276
    %v1278 = vmul.f32 %v1276, %v1277
    %v1279 = vsub.f32 1.0, %v1278
    %v1280 = vmul.f32 %v1277, %v1279
    %v1281 = vadd.f32 %v1277, %v1280
    %vm1282 = vweird.f32 %v1276
    %vm1283 = vweird.f32 %v1277
    %vm1284 = vmor %vm1282, %vm1283
    %v1285 = vsel %vm1284, %v1277, %v1281
    %v1286 = vand.u32 2147483647, %v1276
    %vm1287 = vcmp.eq.f32.partialorder %v1286, 8.507059e+37
    %v1288 = vand.u32 %v1276, 2147483648
    %v1289 = vor.u32 1.1754944e-38, %v1288
    %v1290 = vsel %vm1287, %v1289, %v1285
    %v1291 = vmul.f32 1.0, %v1290
    %v1292 = vmul.f32 %v1271, %v1169
    %v1293 = vmul.f32 %v1252, %v1272
    %v1294 = vadd.f32 %v1292, %v1293
    %v1295 = vtanh.pop %v1294
    %v1296 = vmul.f32 %v1291, %v1295
    %s1297 = scalar_lea.vmem [#allocation2], 160
    %v1298 = vld [vmem:[%s1297] sm:$0xff]
    %v1299 = vld [vmem:[%s1297 + $0x8] sm:$0xff]
    %v1300 = vld [vmem:[%s1297 + $0x10] sm:$0xff]
    %v1301 = vld [vmem:[%s1297 + $0x18] sm:$0xff]
    %v1302 = vpack.c.bf16 %v1296, %v1296
    %1303 = vmatpush.bf16.msra.mxu0 %v642
    %1304 = vmatpush.bf16.msra.mxu0 %v638
    %1305 = vmatpush.bf16.msra.mxu0 %v634
    %1306 = vmatpush.bf16.msra.mxu0 %v630
    %1307 = vmatpush.bf16.msra.mxu0 %v626
    %1308 = vmatpush.bf16.msra.mxu0 %v622
    %1309 = vmatpush.bf16.msra.mxu0 %v618
    %1310 = vmatpush.bf16.msra.mxu0 %v614
    %1311 = vmatmul.bf16.gmra.mxu0 %v1302
    %v1312 = vpop.f32.mrf.mxu0
    %v1313 = vadd.f32 0.0, %v1312
    %v1314 = vpop.f32.mrf.mxu0
    %1315 = vdwg.mxu0
    %1316 = vmatpush.bf16.msra.mxu0 %v643
    %1317 = vmatpush.bf16.msra.mxu0 %v639
    %1318 = vmatpush.bf16.msra.mxu0 %v635
    %1319 = vmatpush.bf16.msra.mxu0 %v631
    %1320 = vmatpush.bf16.msra.mxu0 %v627
    %1321 = vmatpush.bf16.msra.mxu0 %v623
    %1322 = vmatpush.bf16.msra.mxu0 %v619
    %1323 = vmatpush.bf16.msra.mxu0 %v615
    %1324 = vmatmul.bf16.gmra.mxu0 %v1302
    %v1325 = vpop.f32.mrf.mxu0
    %v1326 = vadd.f32 0.0, %v1325
    %v1327 = vpop.f32.mrf.mxu0
    %1328 = vdwg.mxu0
    %1329 = vmatpush.bf16.msra.mxu0 %v644
    %1330 = vmatpush.bf16.msra.mxu0 %v640
    %1331 = vmatpush.bf16.msra.mxu0 %v636
    %1332 = vmatpush.bf16.msra.mxu0 %v632
    %1333 = vmatpush.bf16.msra.mxu0 %v628
    %1334 = vmatpush.bf16.msra.mxu0 %v624
    %1335 = vmatpush.bf16.msra.mxu0 %v620
    %1336 = vmatpush.bf16.msra.mxu0 %v616
    %1337 = vmatmul.bf16.gmra.mxu0 %v1302
    %v1338 = vpop.f32.mrf.mxu0
    %v1339 = vadd.f32 0.0, %v1338
    %v1340 = vpop.f32.mrf.mxu0
    %1341 = vdwg.mxu0
    %1342 = vmatpush.bf16.msra.mxu0 %v645
    %1343 = vmatpush.bf16.msra.mxu0 %v641
    %1344 = vmatpush.bf16.msra.mxu0 %v637
    %1345 = vmatpush.bf16.msra.mxu0 %v633
    %1346 = vmatpush.bf16.msra.mxu0 %v629
    %1347 = vmatpush.bf16.msra.mxu0 %v625
    %1348 = vmatpush.bf16.msra.mxu0 %v621
    %1349 = vmatpush.bf16.msra.mxu0 %v617
    %1350 = vmatmul.bf16.gmra.mxu0 %v1302
    %v1351 = vpop.f32.mrf.mxu0
    %v1352 = vadd.f32 0.0, %v1351
    %v1353 = vpop.f32.mrf.mxu0
    %1354 = vdwg.mxu0
    %v1355 = vadd.f32 %v1298, %v1313
    %v1356 = vadd.f32 %v1299, %v1326
    %v1357 = vadd.f32 %v1300, %v1339
    %v1358 = vadd.f32 %v1301, %v1352
    %v1359 = vxor.u32 %v1355, 2147483648
    %v1360 = vmul.f32 %v1359, 1.442695
    %v1361 = vpow.pop %v1360
    %v1362 = vadd.f32 %v1361, 1.0
    %v1363 = vrcp.pop %v1362
    %v1364 = vmul.f32 %v1362, %v1363
    %v1365 = vsub.f32 1.0, %v1364
    %v1366 = vmul.f32 %v1363, %v1365
    %v1367 = vadd.f32 %v1363, %v1366
    %vm1368 = vweird.f32 %v1362
    %vm1369 = vweird.f32 %v1363
    %vm1370 = vmor %vm1368, %vm1369
    %v1371 = vsel %vm1370, %v1363, %v1367
    %v1372 = vand.u32 2147483647, %v1362
    %vm1373 = vcmp.eq.f32.partialorder %v1372, 8.507059e+37
    %v1374 = vand.u32 %v1362, 2147483648
    %v1375 = vor.u32 1.1754944e-38, %v1374
    %v1376 = vsel %vm1373, %v1375, %v1371
    %v1377 = vmul.f32 1.0, %v1376
    %v1378 = vxor.u32 %v1356, 2147483648
    %v1379 = vmul.f32 %v1378, 1.442695
    %v1380 = vpow.pop %v1379
    %v1381 = vadd.f32 %v1380, 1.0
    %v1382 = vrcp.pop %v1381
    %v1383 = vmul.f32 %v1381, %v1382
    %v1384 = vsub.f32 1.0, %v1383
    %v1385 = vmul.f32 %v1382, %v1384
    %v1386 = vadd.f32 %v1382, %v1385
    %vm1387 = vweird.f32 %v1381
    %vm1388 = vweird.f32 %v1382
    %vm1389 = vmor %vm1387, %vm1388
    %v1390 = vsel %vm1389, %v1382, %v1386
    %v1391 = vand.u32 2147483647, %v1381
    %vm1392 = vcmp.eq.f32.partialorder %v1391, 8.507059e+37
    %v1393 = vand.u32 %v1381, 2147483648
    %v1394 = vor.u32 1.1754944e-38, %v1393
    %v1395 = vsel %vm1392, %v1394, %v1390
    %v1396 = vmul.f32 1.0, %v1395
    %v1397 = vtanh.pop %v1357
    %v1398 = vxor.u32 %v1358, 2147483648
    %v1399 = vmul.f32 %v1398, 1.442695
    %v1400 = vpow.pop %v1399
    %v1401 = vadd.f32 %v1400, 1.0
    %v1402 = vrcp.pop %v1401
    %v1403 = vmul.f32 %v1401, %v1402
    %v1404 = vsub.f32 1.0, %v1403
    %v1405 = vmul.f32 %v1402, %v1404
    %v1406 = vadd.f32 %v1402, %v1405
    %vm1407 = vweird.f32 %v1401
    %vm1408 = vweird.f32 %v1402
    %vm1409 = vmor %vm1407, %vm1408
    %v1410 = vsel %vm1409, %v1402, %v1406
    %v1411 = vand.u32 2147483647, %v1401
    %vm1412 = vcmp.eq.f32.partialorder %v1411, 8.507059e+37
    %v1413 = vand.u32 %v1401, 2147483648
    %v1414 = vor.u32 1.1754944e-38, %v1413
    %v1415 = vsel %vm1412, %v1414, %v1410
    %v1416 = vmul.f32 1.0, %v1415
    %v1417 = vmul.f32 %v1396, %v1294
    %v1418 = vmul.f32 %v1377, %v1397
    %v1419 = vadd.f32 %v1417, %v1418
    %v1420 = vtanh.pop %v1419
    %v1421 = vmul.f32 %v1416, %v1420
    %v1422 = vpack.c.bf16 %v1421, %v1421
    %v1423 = vld [vmem:[#allocation11] sm:$0xff]
    %v1424 = vld [vmem:[#allocation11 + $0x8] sm:$0xff]
    %v1425 = vld [vmem:[#allocation11 + $0x10] sm:$0xff]
    %v1426 = vld [vmem:[#allocation11 + $0x18] sm:$0xff]
    %v1427 = vld [vmem:[#allocation11 + $0x20] sm:$0xff]
    %v1428 = vld [vmem:[#allocation11 + $0x28] sm:$0xff]
    %v1429 = vld [vmem:[#allocation11 + $0x30] sm:$0xff]
    %v1430 = vld [vmem:[#allocation11 + $0x38] sm:$0xff]
    %v1431 = vld [vmem:[#allocation11 + $0x40] sm:$0xff]
    %v1432 = vld [vmem:[#allocation11 + $0x48] sm:$0xff]
    %v1433 = vld [vmem:[#allocation11 + $0x50] sm:$0xff]
    %v1434 = vld [vmem:[#allocation11 + $0x58] sm:$0xff]
    %v1435 = vld [vmem:[#allocation11 + $0x60] sm:$0xff]
    %v1436 = vld [vmem:[#allocation11 + $0x68] sm:$0xff]
    %v1437 = vld [vmem:[#allocation11 + $0x70] sm:$0xff]
    %v1438 = vld [vmem:[#allocation11 + $0x78] sm:$0xff]
    %v1439 = vld [vmem:[#allocation11 + $0x80] sm:$0xff]
    %v1440 = vld [vmem:[#allocation11 + $0x88] sm:$0xff]
    %v1441 = vld [vmem:[#allocation11 + $0x90] sm:$0xff]
    %v1442 = vld [vmem:[#allocation11 + $0x98] sm:$0xff]
    %v1443 = vld [vmem:[#allocation11 + $0xa0] sm:$0xff]
    %v1444 = vld [vmem:[#allocation11 + $0xa8] sm:$0xff]
    %v1445 = vld [vmem:[#allocation11 + $0xb0] sm:$0xff]
    %v1446 = vld [vmem:[#allocation11 + $0xb8] sm:$0xff]
    %v1447 = vld [vmem:[#allocation11 + $0xc0] sm:$0xff]
    %v1448 = vld [vmem:[#allocation11 + $0xc8] sm:$0xff]
    %v1449 = vld [vmem:[#allocation11 + $0xd0] sm:$0xff]
    %v1450 = vld [vmem:[#allocation11 + $0xd8] sm:$0xff]
    %v1451 = vld [vmem:[#allocation11 + $0xe0] sm:$0xff]
    %v1452 = vld [vmem:[#allocation11 + $0xe8] sm:$0xff]
    %v1453 = vld [vmem:[#allocation11 + $0xf0] sm:$0xff]
    %v1454 = vld [vmem:[#allocation11 + $0xf8] sm:$0xff]
    %v1455 = vld [vmem:[%s8] sm:$0xf]
    %v1457 = vperm.slane %v1455, 0
    %v1458 = vperm.slane %v1455, 1
    %v1459 = vperm.slane %v1455, 2
    %v1460 = vperm.slane %v1455, 3
    %v1497 = vunpack.c.l.b16 %v1423
    %v1498 = vunpack.c.h.b16 %v1423
    %v1499 = vunpack.c.l.b16 %v1424
    %v1500 = vunpack.c.h.b16 %v1424
    %v1501 = vunpack.c.l.b16 %v1425
    %v1502 = vunpack.c.h.b16 %v1425
    %v1503 = vunpack.c.l.b16 %v1426
    %v1504 = vunpack.c.h.b16 %v1426
    %v1505 = vunpack.c.l.b16 %v1427
    %v1506 = vunpack.c.h.b16 %v1427
    %v1507 = vunpack.c.l.b16 %v1428
    %v1508 = vunpack.c.h.b16 %v1428
    %v1509 = vunpack.c.l.b16 %v1429
    %v1510 = vunpack.c.h.b16 %v1429
    %v1511 = vunpack.c.l.b16 %v1430
    %v1512 = vunpack.c.h.b16 %v1430
    %v1513 = vunpack.c.l.b16 %v1431
    %v1514 = vunpack.c.h.b16 %v1431
    %v1515 = vunpack.c.l.b16 %v1432
    %v1516 = vunpack.c.h.b16 %v1432
    %v1517 = vunpack.c.l.b16 %v1433
    %v1518 = vunpack.c.h.b16 %v1433
    %v1519 = vunpack.c.l.b16 %v1434
    %v1520 = vunpack.c.h.b16 %v1434
    %v1521 = vunpack.c.l.b16 %v1435
    %v1522 = vunpack.c.h.b16 %v1435
    %v1523 = vunpack.c.l.b16 %v1436
    %v1524 = vunpack.c.h.b16 %v1436
    %v1525 = vunpack.c.l.b16 %v1437
    %v1526 = vunpack.c.h.b16 %v1437
    %v1527 = vunpack.c.l.b16 %v1438
    %v1528 = vunpack.c.h.b16 %v1438
    %v1529 = vunpack.c.l.b16 %v1439
    %v1530 = vunpack.c.h.b16 %v1439
    %v1531 = vunpack.c.l.b16 %v1440
    %v1532 = vunpack.c.h.b16 %v1440
    %v1533 = vunpack.c.l.b16 %v1441
    %v1534 = vunpack.c.h.b16 %v1441
    %v1535 = vunpack.c.l.b16 %v1442
    %v1536 = vunpack.c.h.b16 %v1442
    %v1537 = vunpack.c.l.b16 %v1443
    %v1538 = vunpack.c.h.b16 %v1443
    %v1539 = vunpack.c.l.b16 %v1444
    %v1540 = vunpack.c.h.b16 %v1444
    %v1541 = vunpack.c.l.b16 %v1445
    %v1542 = vunpack.c.h.b16 %v1445
    %v1543 = vunpack.c.l.b16 %v1446
    %v1544 = vunpack.c.h.b16 %v1446
    %v1545 = vunpack.c.l.b16 %v1447
    %v1546 = vunpack.c.h.b16 %v1447
    %v1547 = vunpack.c.l.b16 %v1448
    %v1548 = vunpack.c.h.b16 %v1448
    %v1549 = vunpack.c.l.b16 %v1449
    %v1550 = vunpack.c.h.b16 %v1449
    %v1551 = vunpack.c.l.b16 %v1450
    %v1552 = vunpack.c.h.b16 %v1450
    %v1553 = vunpack.c.l.b16 %v1451
    %v1554 = vunpack.c.h.b16 %v1451
    %v1555 = vunpack.c.l.b16 %v1452
    %v1556 = vunpack.c.h.b16 %v1452
    %v1557 = vunpack.c.l.b16 %v1453
    %v1558 = vunpack.c.h.b16 %v1453
    %v1559 = vunpack.c.l.b16 %v1454
    %v1560 = vunpack.c.h.b16 %v1454
    %v1561 = vpack.c.b16 %v1501, %v1497
    %v1562 = vpack.c.b16 %v1502, %v1498
    %v1563 = vpack.c.b16 %v1503, %v1499
    %v1564 = vpack.c.b16 %v1504, %v1500
    %v1565 = vpack.c.b16 %v1509, %v1505
    %v1566 = vpack.c.b16 %v1510, %v1506
    %v1567 = vpack.c.b16 %v1511, %v1507
    %v1568 = vpack.c.b16 %v1512, %v1508
    %v1569 = vpack.c.b16 %v1517, %v1513
    %v1570 = vpack.c.b16 %v1518, %v1514
    %v1571 = vpack.c.b16 %v1519, %v1515
    %v1572 = vpack.c.b16 %v1520, %v1516
    %v1573 = vpack.c.b16 %v1525, %v1521
    %v1574 = vpack.c.b16 %v1526, %v1522
    %v1575 = vpack.c.b16 %v1527, %v1523
    %v1576 = vpack.c.b16 %v1528, %v1524
    %v1577 = vpack.c.b16 %v1533, %v1529
    %v1578 = vpack.c.b16 %v1534, %v1530
    %v1579 = vpack.c.b16 %v1535, %v1531
    %v1580 = vpack.c.b16 %v1536, %v1532
    %v1581 = vpack.c.b16 %v1541, %v1537
    %v1582 = vpack.c.b16 %v1542, %v1538
    %v1583 = vpack.c.b16 %v1543, %v1539
    %v1584 = vpack.c.b16 %v1544, %v1540
    %v1585 = vpack.c.b16 %v1549, %v1545
    %v1586 = vpack.c.b16 %v1550, %v1546
    %v1587 = vpack.c.b16 %v1551, %v1547
    %v1588 = vpack.c.b16 %v1552, %v1548
    %v1589 = vpack.c.b16 %v1557, %v1553
    %v1590 = vpack.c.b16 %v1558, %v1554
    %v1591 = vpack.c.b16 %v1559, %v1555
    %v1592 = vpack.c.b16 %v1560, %v1556
    %1625 = vmatpush.bf16.msra.mxu0 %v1589
    %1626 = vmatpush.bf16.msra.mxu0 %v1585
    %1627 = vmatpush.bf16.msra.mxu0 %v1581
    %1628 = vmatpush.bf16.msra.mxu0 %v1577
    %1629 = vmatpush.bf16.msra.mxu0 %v1573
    %1630 = vmatpush.bf16.msra.mxu0 %v1569
    %1631 = vmatpush.bf16.msra.mxu0 %v1565
    %1632 = vmatpush.bf16.msra.mxu0 %v1561
    %1633 = vmatmul.bf16.gmra.mxu0 %v1422
    %v1634 = vpop.f32.mrf.mxu0
    %v1635 = vadd.f32 %v1457, %v1634
    %v1636 = vpop.f32.mrf.mxu0
    %1637 = vdwg.mxu0
    %1638 = vmatpush.bf16.msra.mxu0 %v1590
    %1639 = vmatpush.bf16.msra.mxu0 %v1586
    %1640 = vmatpush.bf16.msra.mxu0 %v1582
    %1641 = vmatpush.bf16.msra.mxu0 %v1578
    %1642 = vmatpush.bf16.msra.mxu0 %v1574
    %1643 = vmatpush.bf16.msra.mxu0 %v1570
    %1644 = vmatpush.bf16.msra.mxu0 %v1566
    %1645 = vmatpush.bf16.msra.mxu0 %v1562
    %1646 = vmatmul.bf16.gmra.mxu0 %v1422
    %v1647 = vpop.f32.mrf.mxu0
    %v1648 = vadd.f32 %v1458, %v1647
    %v1649 = vpop.f32.mrf.mxu0
    %1650 = vdwg.mxu0
    %1651 = vmatpush.bf16.msra.mxu0 %v1591
    %1652 = vmatpush.bf16.msra.mxu0 %v1587
    %1653 = vmatpush.bf16.msra.mxu0 %v1583
    %1654 = vmatpush.bf16.msra.mxu0 %v1579
    %1655 = vmatpush.bf16.msra.mxu0 %v1575
    %1656 = vmatpush.bf16.msra.mxu0 %v1571
    %1657 = vmatpush.bf16.msra.mxu0 %v1567
    %1658 = vmatpush.bf16.msra.mxu0 %v1563
    %1659 = vmatmul.bf16.gmra.mxu0 %v1422
    %v1660 = vpop.f32.mrf.mxu0
    %v1661 = vadd.f32 %v1459, %v1660
    %v1662 = vpop.f32.mrf.mxu0
    %1663 = vdwg.mxu0
    %1664 = vmatpush.bf16.msra.mxu0 %v1592
    %1665 = vmatpush.bf16.msra.mxu0 %v1588
    %1666 = vmatpush.bf16.msra.mxu0 %v1584
    %1667 = vmatpush.bf16.msra.mxu0 %v1580
    %1668 = vmatpush.bf16.msra.mxu0 %v1576
    %1669 = vmatpush.bf16.msra.mxu0 %v1572
    %1670 = vmatpush.bf16.msra.mxu0 %v1568
    %1671 = vmatpush.bf16.msra.mxu0 %v1564
    %1672 = vmatmul.bf16.gmra.mxu0 %v1422
    %v1673 = vpop.f32.mrf.mxu0
    %v1674 = vadd.f32 %v1460, %v1673
    %v1675 = vpop.f32.mrf.mxu0
    %1676 = vdwg.mxu0
    %1677 = vst [vmem:[#allocation3] sm:$0xff] %v1635
    %1678 = vst [vmem:[#allocation3 + $0x8] sm:$0xff] %v1648
    %1679 = vst [vmem:[#allocation3 + $0x10] sm:$0xff] %v1661
    %1680 = vst [vmem:[#allocation3 + $0x18] sm:$0xff] %v1674
    %v1681 = vld [vmem:[#allocation12] sm:$0xff]
    %v1682 = vld [vmem:[#allocation12 + $0x8] sm:$0xff]
    %v1683 = vld [vmem:[#allocation12 + $0x10] sm:$0xff]
    %v1684 = vld [vmem:[#allocation12 + $0x18] sm:$0xff]
    %v1685 = vld [vmem:[#allocation14] sm:$0xff]
    %v1686 = vld [vmem:[#allocation14 + $0x8] sm:$0xff]
    %v1687 = vld [vmem:[#allocation14 + $0x10] sm:$0xff]
    %v1688 = vld [vmem:[#allocation14 + $0x18] sm:$0xff]
    %v1689 = vld [vmem:[#allocation14 + $0x20] sm:$0xff]
    %v1690 = vld [vmem:[#allocation14 + $0x28] sm:$0xff]
    %v1691 = vld [vmem:[#allocation14 + $0x30] sm:$0xff]
    %v1692 = vld [vmem:[#allocation14 + $0x38] sm:$0xff]
    %v1693 = vld [vmem:[#allocation14 + $0x40] sm:$0xff]
    %v1694 = vld [vmem:[#allocation14 + $0x48] sm:$0xff]
    %v1695 = vld [vmem:[#allocation14 + $0x50] sm:$0xff]
    %v1696 = vld [vmem:[#allocation14 + $0x58] sm:$0xff]
    %v1697 = vld [vmem:[#allocation14 + $0x60] sm:$0xff]
    %v1698 = vld [vmem:[#allocation14 + $0x68] sm:$0xff]
    %v1699 = vld [vmem:[#allocation14 + $0x70] sm:$0xff]
    %v1700 = vld [vmem:[#allocation14 + $0x78] sm:$0xff]
    %v1701 = vld [vmem:[#allocation14 + $0x80] sm:$0xff]
    %v1702 = vld [vmem:[#allocation14 + $0x88] sm:$0xff]
    %v1703 = vld [vmem:[#allocation14 + $0x90] sm:$0xff]
    %v1704 = vld [vmem:[#allocation14 + $0x98] sm:$0xff]
    %v1705 = vld [vmem:[#allocation14 + $0xa0] sm:$0xff]
    %v1706 = vld [vmem:[#allocation14 + $0xa8] sm:$0xff]
    %v1707 = vld [vmem:[#allocation14 + $0xb0] sm:$0xff]
    %v1708 = vld [vmem:[#allocation14 + $0xb8] sm:$0xff]
    %v1709 = vld [vmem:[#allocation14 + $0xc0] sm:$0xff]
    %v1710 = vld [vmem:[#allocation14 + $0xc8] sm:$0xff]
    %v1711 = vld [vmem:[#allocation14 + $0xd0] sm:$0xff]
    %v1712 = vld [vmem:[#allocation14 + $0xd8] sm:$0xff]
    %v1713 = vld [vmem:[#allocation14 + $0xe0] sm:$0xff]
    %v1714 = vld [vmem:[#allocation14 + $0xe8] sm:$0xff]
    %v1715 = vld [vmem:[#allocation14 + $0xf0] sm:$0xff]
    %v1716 = vld [vmem:[#allocation14 + $0xf8] sm:$0xff]
    %v1717 = vld [vmem:[#allocation15] sm:$0xff]
    %v1718 = vld [vmem:[#allocation15 + $0x8] sm:$0xff]
    %v1719 = vld [vmem:[#allocation15 + $0x10] sm:$0xff]
    %v1720 = vld [vmem:[#allocation15 + $0x18] sm:$0xff]
    %v1721 = vld [vmem:[#allocation15 + $0x20] sm:$0xff]
    %v1722 = vld [vmem:[#allocation15 + $0x28] sm:$0xff]
    %v1723 = vld [vmem:[#allocation15 + $0x30] sm:$0xff]
    %v1724 = vld [vmem:[#allocation15 + $0x38] sm:$0xff]
    %v1725 = vld [vmem:[#allocation15 + $0x40] sm:$0xff]
    %v1726 = vld [vmem:[#allocation15 + $0x48] sm:$0xff]
    %v1727 = vld [vmem:[#allocation15 + $0x50] sm:$0xff]
    %v1728 = vld [vmem:[#allocation15 + $0x58] sm:$0xff]
    %v1729 = vld [vmem:[#allocation15 + $0x60] sm:$0xff]
    %v1730 = vld [vmem:[#allocation15 + $0x68] sm:$0xff]
    %v1731 = vld [vmem:[#allocation15 + $0x70] sm:$0xff]
    %v1732 = vld [vmem:[#allocation15 + $0x78] sm:$0xff]
    %v1733 = vld [vmem:[#allocation15 + $0x80] sm:$0xff]
    %v1734 = vld [vmem:[#allocation15 + $0x88] sm:$0xff]
    %v1735 = vld [vmem:[#allocation15 + $0x90] sm:$0xff]
    %v1736 = vld [vmem:[#allocation15 + $0x98] sm:$0xff]
    %v1737 = vld [vmem:[#allocation15 + $0xa0] sm:$0xff]
    %v1738 = vld [vmem:[#allocation15 + $0xa8] sm:$0xff]
    %v1739 = vld [vmem:[#allocation15 + $0xb0] sm:$0xff]
    %v1740 = vld [vmem:[#allocation15 + $0xb8] sm:$0xff]
    %v1741 = vld [vmem:[#allocation15 + $0xc0] sm:$0xff]
    %v1742 = vld [vmem:[#allocation15 + $0xc8] sm:$0xff]
    %v1743 = vld [vmem:[#allocation15 + $0xd0] sm:$0xff]
    %v1744 = vld [vmem:[#allocation15 + $0xd8] sm:$0xff]
    %v1745 = vld [vmem:[#allocation15 + $0xe0] sm:$0xff]
    %v1746 = vld [vmem:[#allocation15 + $0xe8] sm:$0xff]
    %v1747 = vld [vmem:[#allocation15 + $0xf0] sm:$0xff]
    %v1748 = vld [vmem:[#allocation15 + $0xf8] sm:$0xff]
    %v1749 = vld [vmem:[#allocation15 + $0x100] sm:$0xff]
    %v1750 = vld [vmem:[#allocation15 + $0x108] sm:$0xff]
    %v1751 = vld [vmem:[#allocation15 + $0x110] sm:$0xff]
    %v1752 = vld [vmem:[#allocation15 + $0x118] sm:$0xff]
    %v1753 = vld [vmem:[#allocation15 + $0x120] sm:$0xff]
    %v1754 = vld [vmem:[#allocation15 + $0x128] sm:$0xff]
    %v1755 = vld [vmem:[#allocation15 + $0x130] sm:$0xff]
    %v1756 = vld [vmem:[#allocation15 + $0x138] sm:$0xff]
    %v1757 = vld [vmem:[#allocation15 + $0x140] sm:$0xff]
    %v1758 = vld [vmem:[#allocation15 + $0x148] sm:$0xff]
    %v1759 = vld [vmem:[#allocation15 + $0x150] sm:$0xff]
    %v1760 = vld [vmem:[#allocation15 + $0x158] sm:$0xff]
    %v1761 = vld [vmem:[#allocation15 + $0x160] sm:$0xff]
    %v1762 = vld [vmem:[#allocation15 + $0x168] sm:$0xff]
    %v1763 = vld [vmem:[#allocation15 + $0x170] sm:$0xff]
    %v1764 = vld [vmem:[#allocation15 + $0x178] sm:$0xff]
    %v1765 = vld [vmem:[#allocation15 + $0x180] sm:$0xff]
    %v1766 = vld [vmem:[#allocation15 + $0x188] sm:$0xff]
    %v1767 = vld [vmem:[#allocation15 + $0x190] sm:$0xff]
    %v1768 = vld [vmem:[#allocation15 + $0x198] sm:$0xff]
    %v1769 = vld [vmem:[#allocation15 + $0x1a0] sm:$0xff]
    %v1770 = vld [vmem:[#allocation15 + $0x1a8] sm:$0xff]
    %v1771 = vld [vmem:[#allocation15 + $0x1b0] sm:$0xff]
    %v1772 = vld [vmem:[#allocation15 + $0x1b8] sm:$0xff]
    %v1773 = vld [vmem:[#allocation15 + $0x1c0] sm:$0xff]
    %v1774 = vld [vmem:[#allocation15 + $0x1c8] sm:$0xff]
    %v1775 = vld [vmem:[#allocation15 + $0x1d0] sm:$0xff]
    %v1776 = vld [vmem:[#allocation15 + $0x1d8] sm:$0xff]
    %v1777 = vld [vmem:[#allocation15 + $0x1e0] sm:$0xff]
    %v1778 = vld [vmem:[#allocation15 + $0x1e8] sm:$0xff]
    %v1779 = vld [vmem:[#allocation15 + $0x1f0] sm:$0xff]
    %v1780 = vld [vmem:[#allocation15 + $0x1f8] sm:$0xff]
    %v1781 = vld [vmem:[%s10] sm:$0xf]
    %v1782 = vld [vmem:[%s11] sm:$0xf]
    %v1783 = vld [vmem:[%s11 + $0x4] sm:$0xf]
    %v1784 = vld [vmem:[%s11 + $0x8] sm:$0xf]
    %v1785 = vld [vmem:[%s11 + $0xc] sm:$0xf]
    %v1786 = vld [vmem:[%s11 + $0x10] sm:$0xf]
    %v1787 = vld [vmem:[%s11 + $0x14] sm:$0xf]
    %v1788 = vld [vmem:[%s11 + $0x18] sm:$0xf]
    %v1789 = vld [vmem:[%s11 + $0x1c] sm:$0xf]
    %v1790 = vld [vmem:[%s11 + $0x20] sm:$0xf]
    %v1791 = vld [vmem:[%s11 + $0x24] sm:$0xf]
    %v1792 = vld [vmem:[%s11 + $0x28] sm:$0xf]
    %v1793 = vld [vmem:[%s11 + $0x2c] sm:$0xf]
    %v1794 = vld [vmem:[%s11 + $0x30] sm:$0xf]
    %v1795 = vld [vmem:[%s11 + $0x34] sm:$0xf]
    %v1796 = vld [vmem:[%s11 + $0x38] sm:$0xf]
    %v1797 = vld [vmem:[%s11 + $0x3c] sm:$0xf]
    %v1798 = vld [vmem:[%s12] sm:$0x1]
    %v1799 = vlaneseq
    %v1800 = vand.u32 %v1799, 127
    %v1801 = vlaneseq
    %v1802 = vshrl.u32 %v1801, 7
    %v1803 = vld [vmem:[#allocation3] ss:$8 sm:$0xf]
    %vm1804 = vcmp.eq.s32.totalorder %v1802, 0
    %v1805 = vsel %vm1804, 1, 0
    %vm1806 = vcmp.eq.s32.totalorder %v1805, 1
    %v1807 = vsel %vm1806, %v1681, 0.0
    %v1808 = vsel %vm1806, %v1682, 0.0
    %v1809 = vsel %vm1806, %v1683, 0.0
    %v1810 = vsel %vm1806, %v1684, 0.0
    %v1811 = vrot.slane %v1807, 4
    %v1812 = vadd.f32 %v1807, %v1811
    %v1813 = vrot.slane %v1812, 2
    %v1814 = vadd.f32 %v1812, %v1813
    %v1815 = vrot.slane %v1814, 1
    %v1816 = vadd.f32 %v1814, %v1815
    %v1817 = vrot.slane %v1808, 4
    %v1818 = vadd.f32 %v1808, %v1817
    %v1819 = vrot.slane %v1818, 2
    %v1820 = vadd.f32 %v1818, %v1819
    %v1821 = vrot.slane %v1820, 1
    %v1822 = vadd.f32 %v1820, %v1821
    %v1823 = vrot.slane %v1809, 4
    %v1824 = vadd.f32 %v1809, %v1823
    %v1825 = vrot.slane %v1824, 2
    %v1826 = vadd.f32 %v1824, %v1825
    %v1827 = vrot.slane %v1826, 1
    %v1828 = vadd.f32 %v1826, %v1827
    %v1829 = vrot.slane %v1810, 4
    %v1830 = vadd.f32 %v1810, %v1829
    %v1831 = vrot.slane %v1830, 2
    %v1832 = vadd.f32 %v1830, %v1831
    %v1833 = vrot.slane %v1832, 1
    %v1834 = vadd.f32 %v1832, %v1833
    %v1839 = vrot.slane %v1822, 7
    %v1840 = vrot.slane %v1828, 6
    %v1841 = vrot.slane %v1834, 5
    %vm1842 = vcmask 1040384
    %v1843 = vsel %vm1842, %v1816, %v1839
    %vm1844 = vcmask 1042434
    %v1845 = vsel %vm1844, %v1840, %v1841
    %vm1846 = vcmask 1041408
    %v1847 = vsel %vm1846, %v1843, %v1845
    %v1849 = vadd.f32 %v1803, %v1847
    %v1882 = vunpack.c.l.b16 %v1685
    %v1883 = vunpack.c.h.b16 %v1685
    %v1884 = vunpack.c.l.b16 %v1686
    %v1885 = vunpack.c.h.b16 %v1686
    %v1886 = vunpack.c.l.b16 %v1687
    %v1887 = vunpack.c.h.b16 %v1687
    %v1888 = vunpack.c.l.b16 %v1688
    %v1889 = vunpack.c.h.b16 %v1688
    %v1890 = vunpack.c.l.b16 %v1689
    %v1891 = vunpack.c.h.b16 %v1689
    %v1892 = vunpack.c.l.b16 %v1690
    %v1893 = vunpack.c.h.b16 %v1690
    %v1894 = vunpack.c.l.b16 %v1691
    %v1895 = vunpack.c.h.b16 %v1691
    %v1896 = vunpack.c.l.b16 %v1692
    %v1897 = vunpack.c.h.b16 %v1692
    %v1898 = vunpack.c.l.b16 %v1693
    %v1899 = vunpack.c.h.b16 %v1693
    %v1900 = vunpack.c.l.b16 %v1694
    %v1901 = vunpack.c.h.b16 %v1694
    %v1902 = vunpack.c.l.b16 %v1695
    %v1903 = vunpack.c.h.b16 %v1695
    %v1904 = vunpack.c.l.b16 %v1696
    %v1905 = vunpack.c.h.b16 %v1696
    %v1906 = vunpack.c.l.b16 %v1697
    %v1907 = vunpack.c.h.b16 %v1697
    %v1908 = vunpack.c.l.b16 %v1698
    %v1909 = vunpack.c.h.b16 %v1698
    %v1910 = vunpack.c.l.b16 %v1699
    %v1911 = vunpack.c.h.b16 %v1699
    %v1912 = vunpack.c.l.b16 %v1700
    %v1913 = vunpack.c.h.b16 %v1700
    %v1914 = vunpack.c.l.b16 %v1701
    %v1915 = vunpack.c.h.b16 %v1701
    %v1916 = vunpack.c.l.b16 %v1702
    %v1917 = vunpack.c.h.b16 %v1702
    %v1918 = vunpack.c.l.b16 %v1703
    %v1919 = vunpack.c.h.b16 %v1703
    %v1920 = vunpack.c.l.b16 %v1704
    %v1921 = vunpack.c.h.b16 %v1704
    %v1922 = vunpack.c.l.b16 %v1705
    %v1923 = vunpack.c.h.b16 %v1705
    %v1924 = vunpack.c.l.b16 %v1706
    %v1925 = vunpack.c.h.b16 %v1706
    %v1926 = vunpack.c.l.b16 %v1707
    %v1927 = vunpack.c.h.b16 %v1707
    %v1928 = vunpack.c.l.b16 %v1708
    %v1929 = vunpack.c.h.b16 %v1708
    %v1930 = vunpack.c.l.b16 %v1709
    %v1931 = vunpack.c.h.b16 %v1709
    %v1932 = vunpack.c.l.b16 %v1710
    %v1933 = vunpack.c.h.b16 %v1710
    %v1934 = vunpack.c.l.b16 %v1711
    %v1935 = vunpack.c.h.b16 %v1711
    %v1936 = vunpack.c.l.b16 %v1712
    %v1937 = vunpack.c.h.b16 %v1712
    %v1938 = vunpack.c.l.b16 %v1713
    %v1939 = vunpack.c.h.b16 %v1713
    %v1940 = vunpack.c.l.b16 %v1714
    %v1941 = vunpack.c.h.b16 %v1714
    %v1942 = vunpack.c.l.b16 %v1715
    %v1943 = vunpack.c.h.b16 %v1715
    %v1944 = vunpack.c.l.b16 %v1716
    %v1945 = vunpack.c.h.b16 %v1716
    %v1946 = vpack.c.b16 %v1886, %v1882
    %v1947 = vpack.c.b16 %v1887, %v1883
    %v1948 = vpack.c.b16 %v1888, %v1884
    %v1949 = vpack.c.b16 %v1889, %v1885
    %v1950 = vpack.c.b16 %v1894, %v1890
    %v1951 = vpack.c.b16 %v1895, %v1891
    %v1952 = vpack.c.b16 %v1896, %v1892
    %v1953 = vpack.c.b16 %v1897, %v1893
    %v1954 = vpack.c.b16 %v1902, %v1898
    %v1955 = vpack.c.b16 %v1903, %v1899
    %v1956 = vpack.c.b16 %v1904, %v1900
    %v1957 = vpack.c.b16 %v1905, %v1901
    %v1958 = vpack.c.b16 %v1910, %v1906
    %v1959 = vpack.c.b16 %v1911, %v1907
    %v1960 = vpack.c.b16 %v1912, %v1908
    %v1961 = vpack.c.b16 %v1913, %v1909
    %v1962 = vpack.c.b16 %v1918, %v1914
    %v1963 = vpack.c.b16 %v1919, %v1915
    %v1964 = vpack.c.b16 %v1920, %v1916
    %v1965 = vpack.c.b16 %v1921, %v1917
    %v1966 = vpack.c.b16 %v1926, %v1922
    %v1967 = vpack.c.b16 %v1927, %v1923
    %v1968 = vpack.c.b16 %v1928, %v1924
    %v1969 = vpack.c.b16 %v1929, %v1925
    %v1970 = vpack.c.b16 %v1934, %v1930
    %v1971 = vpack.c.b16 %v1935, %v1931
    %v1972 = vpack.c.b16 %v1936, %v1932
    %v1973 = vpack.c.b16 %v1937, %v1933
    %v1974 = vpack.c.b16 %v1942, %v1938
    %v1975 = vpack.c.b16 %v1943, %v1939
    %v1976 = vpack.c.b16 %v1944, %v1940
    %v1977 = vpack.c.b16 %v1945, %v1941
    %2010 = vmatpush.bf16.msra.mxu0 %v1974
    %2011 = vmatpush.bf16.msra.mxu0 %v1970
    %2012 = vmatpush.bf16.msra.mxu0 %v1966
    %2013 = vmatpush.bf16.msra.mxu0 %v1962
    %2014 = vmatpush.bf16.msra.mxu0 %v1958
    %2015 = vmatpush.bf16.msra.mxu0 %v1954
    %2016 = vmatpush.bf16.msra.mxu0 %v1950
    %2017 = vmatpush.bf16.msra.mxu0 %v1946
    %2018 = vmatmul.bf16.gmra.mxu0 0
    %v2019 = vpop.f32.mrf.mxu0
    %v2020 = vadd.f32 0.0, %v2019
    %v2021 = vpop.f32.mrf.mxu0
    %2022 = vdwg.mxu0
    %2023 = vmatpush.bf16.msra.mxu0 %v1975
    %2024 = vmatpush.bf16.msra.mxu0 %v1971
    %2025 = vmatpush.bf16.msra.mxu0 %v1967
    %2026 = vmatpush.bf16.msra.mxu0 %v1963
    %2027 = vmatpush.bf16.msra.mxu0 %v1959
    %2028 = vmatpush.bf16.msra.mxu0 %v1955
    %2029 = vmatpush.bf16.msra.mxu0 %v1951
    %2030 = vmatpush.bf16.msra.mxu0 %v1947
    %2031 = vmatmul.bf16.gmra.mxu0 0
    %v2032 = vpop.f32.mrf.mxu0
    %v2033 = vadd.f32 0.0, %v2032
    %v2034 = vpop.f32.mrf.mxu0
    %2035 = vdwg.mxu0
    %2036 = vmatpush.bf16.msra.mxu0 %v1976
    %2037 = vmatpush.bf16.msra.mxu0 %v1972
    %2038 = vmatpush.bf16.msra.mxu0 %v1968
    %2039 = vmatpush.bf16.msra.mxu0 %v1964
    %2040 = vmatpush.bf16.msra.mxu0 %v1960
    %2041 = vmatpush.bf16.msra.mxu0 %v1956
    %2042 = vmatpush.bf16.msra.mxu0 %v1952
    %2043 = vmatpush.bf16.msra.mxu0 %v1948
    %2044 = vmatmul.bf16.gmra.mxu0 0
    %v2045 = vpop.f32.mrf.mxu0
    %v2046 = vadd.f32 0.0, %v2045
    %v2047 = vpop.f32.mrf.mxu0
    %2048 = vdwg.mxu0
    %2049 = vmatpush.bf16.msra.mxu0 %v1977
    %2050 = vmatpush.bf16.msra.mxu0 %v1973
    %2051 = vmatpush.bf16.msra.mxu0 %v1969
    %2052 = vmatpush.bf16.msra.mxu0 %v1965
    %2053 = vmatpush.bf16.msra.mxu0 %v1961
    %2054 = vmatpush.bf16.msra.mxu0 %v1957
    %2055 = vmatpush.bf16.msra.mxu0 %v1953
    %2056 = vmatpush.bf16.msra.mxu0 %v1949
    %2057 = vmatmul.bf16.gmra.mxu0 0
    %v2058 = vpop.f32.mrf.mxu0
    %v2059 = vadd.f32 0.0, %v2058
    %v2060 = vpop.f32.mrf.mxu0
    %2061 = vdwg.mxu0
    %v2066 = vrot.slane %v2033, 7
    %v2067 = vrot.slane %v2046, 6
    %v2068 = vrot.slane %v2059, 5
    %v2069 = vsel %vm1842, %v2020, %v2066
    %v2070 = vsel %vm1844, %v2067, %v2068
    %v2071 = vsel %vm1846, %v2069, %v2070
    %v2073 = vadd.f32 %v1849, %v2071
    %v2074 = vxor.u32 %v2073, 2147483648
    %v2075 = vmul.f32 %v2074, 1.442695
    %v2076 = vpow.pop %v2075
    %v2077 = vadd.f32 %v2076, 1.0
    %v2078 = vrcp.pop %v2077
    %v2079 = vmul.f32 %v2077, %v2078
    %v2080 = vsub.f32 1.0, %v2079
    %v2081 = vmul.f32 %v2078, %v2080
    %v2082 = vadd.f32 %v2078, %v2081
    %vm2083 = vweird.f32 %v2077
    %vm2084 = vweird.f32 %v2078
    %vm2085 = vmor %vm2083, %vm2084
    %v2086 = vsel %vm2085, %v2078, %v2082
    %v2087 = vand.u32 2147483647, %v2077
    %vm2088 = vcmp.eq.f32.partialorder %v2087, 8.507059e+37
    %v2089 = vand.u32 %v2077, 2147483648
    %v2090 = vor.u32 1.1754944e-38, %v2089
    %v2091 = vsel %vm2088, %v2090, %v2086
    %v2092 = vmul.f32 1.0, %v2091
    %v2094 = vrot.slane %v2073, 1
    %v2096 = vxor.u32 %v2094, 2147483648
    %v2097 = vmul.f32 %v2096, 1.442695
    %v2098 = vpow.pop %v2097
    %v2099 = vadd.f32 %v2098, 1.0
    %v2100 = vrcp.pop %v2099
    %v2101 = vmul.f32 %v2099, %v2100
    %v2102 = vsub.f32 1.0, %v2101
    %v2103 = vmul.f32 %v2100, %v2102
    %v2104 = vadd.f32 %v2100, %v2103
    %vm2105 = vweird.f32 %v2099
    %vm2106 = vweird.f32 %v2100
    %vm2107 = vmor %vm2105, %vm2106
    %v2108 = vsel %vm2107, %v2100, %v2104
    %v2109 = vand.u32 2147483647, %v2099
    %vm2110 = vcmp.eq.f32.partialorder %v2109, 8.507059e+37
    %v2111 = vand.u32 %v2099, 2147483648
    %v2112 = vor.u32 1.1754944e-38, %v2111
    %v2113 = vsel %vm2110, %v2112, %v2108
    %v2114 = vmul.f32 1.0, %v2113
    %v2115 = vrot.slane %v2073, 2
    %v2117 = vtanh.pop %v2115
    %v2118 = vrot.slane %v2073, 3
    %v2120 = vxor.u32 %v2118, 2147483648
    %v2121 = vmul.f32 %v2120, 1.442695
    %v2122 = vpow.pop %v2121
    %v2123 = vadd.f32 %v2122, 1.0
    %v2124 = vrcp.pop %v2123
    %v2125 = vmul.f32 %v2123, %v2124
    %v2126 = vsub.f32 1.0, %v2125
    %v2127 = vmul.f32 %v2124, %v2126
    %v2128 = vadd.f32 %v2124, %v2127
    %vm2129 = vweird.f32 %v2123
    %vm2130 = vweird.f32 %v2124
    %vm2131 = vmor %vm2129, %vm2130
    %v2132 = vsel %vm2131, %v2124, %v2128
    %v2133 = vand.u32 2147483647, %v2123
    %vm2134 = vcmp.eq.f32.partialorder %v2133, 8.507059e+37
    %v2135 = vand.u32 %v2123, 2147483648
    %v2136 = vor.u32 1.1754944e-38, %v2135
    %v2137 = vsel %vm2134, %v2136, %v2132
    %v2138 = vmul.f32 1.0, %v2137
    %v2139 = vmul.f32 %v2114, 0.0
    %v2140 = vmul.f32 %v2092, %v2117
    %v2141 = vadd.f32 %v2139, %v2140
    %v2142 = vtanh.pop %v2141
    %v2143 = vmul.f32 %v2138, %v2142
    %v2144 = vpack.c.bf16 %v2143, %v2143
    %v2145 = vpack.c.bf16 0.0, 0.0
    %v2210 = vunpack.c.l.b16 %v1717
    %v2211 = vunpack.c.h.b16 %v1717
    %v2212 = vunpack.c.l.b16 %v1718
    %v2213 = vunpack.c.h.b16 %v1718
    %v2214 = vunpack.c.l.b16 %v1719
    %v2215 = vunpack.c.h.b16 %v1719
    %v2216 = vunpack.c.l.b16 %v1720
    %v2217 = vunpack.c.h.b16 %v1720
    %v2218 = vunpack.c.l.b16 %v1721
    %v2219 = vunpack.c.h.b16 %v1721
    %v2220 = vunpack.c.l.b16 %v1722
    %v2221 = vunpack.c.h.b16 %v1722
    %v2222 = vunpack.c.l.b16 %v1723
    %v2223 = vunpack.c.h.b16 %v1723
    %v2224 = vunpack.c.l.b16 %v1724
    %v2225 = vunpack.c.h.b16 %v1724
    %v2226 = vunpack.c.l.b16 %v1725
    %v2227 = vunpack.c.h.b16 %v1725
    %v2228 = vunpack.c.l.b16 %v1726
    %v2229 = vunpack.c.h.b16 %v1726
    %v2230 = vunpack.c.l.b16 %v1727
    %v2231 = vunpack.c.h.b16 %v1727
    %v2232 = vunpack.c.l.b16 %v1728
    %v2233 = vunpack.c.h.b16 %v1728
    %v2234 = vunpack.c.l.b16 %v1729
    %v2235 = vunpack.c.h.b16 %v1729
    %v2236 = vunpack.c.l.b16 %v1730
    %v2237 = vunpack.c.h.b16 %v1730
    %v2238 = vunpack.c.l.b16 %v1731
    %v2239 = vunpack.c.h.b16 %v1731
    %v2240 = vunpack.c.l.b16 %v1732
    %v2241 = vunpack.c.h.b16 %v1732
    %v2242 = vunpack.c.l.b16 %v1733
    %v2243 = vunpack.c.h.b16 %v1733
    %v2244 = vunpack.c.l.b16 %v1734
    %v2245 = vunpack.c.h.b16 %v1734
    %v2246 = vunpack.c.l.b16 %v1735
    %v2247 = vunpack.c.h.b16 %v1735
    %v2248 = vunpack.c.l.b16 %v1736
    %v2249 = vunpack.c.h.b16 %v1736
    %v2250 = vunpack.c.l.b16 %v1737
    %v2251 = vunpack.c.h.b16 %v1737
    %v2252 = vunpack.c.l.b16 %v1738
    %v2253 = vunpack.c.h.b16 %v1738
    %v2254 = vunpack.c.l.b16 %v1739
    %v2255 = vunpack.c.h.b16 %v1739
    %v2256 = vunpack.c.l.b16 %v1740
    %v2257 = vunpack.c.h.b16 %v1740
    %v2258 = vunpack.c.l.b16 %v1741
    %v2259 = vunpack.c.h.b16 %v1741
    %v2260 = vunpack.c.l.b16 %v1742
    %v2261 = vunpack.c.h.b16 %v1742
    %v2262 = vunpack.c.l.b16 %v1743
    %v2263 = vunpack.c.h.b16 %v1743
    %v2264 = vunpack.c.l.b16 %v1744
    %v2265 = vunpack.c.h.b16 %v1744
    %v2266 = vunpack.c.l.b16 %v1745
    %v2267 = vunpack.c.h.b16 %v1745
    %v2268 = vunpack.c.l.b16 %v1746
    %v2269 = vunpack.c.h.b16 %v1746
    %v2270 = vunpack.c.l.b16 %v1747
    %v2271 = vunpack.c.h.b16 %v1747
    %v2272 = vunpack.c.l.b16 %v1748
    %v2273 = vunpack.c.h.b16 %v1748
    %v2274 = vunpack.c.l.b16 %v1749
    %v2275 = vunpack.c.h.b16 %v1749
    %v2276 = vunpack.c.l.b16 %v1750
    %v2277 = vunpack.c.h.b16 %v1750
    %v2278 = vunpack.c.l.b16 %v1751
    %v2279 = vunpack.c.h.b16 %v1751
    %v2280 = vunpack.c.l.b16 %v1752
    %v2281 = vunpack.c.h.b16 %v1752
    %v2282 = vunpack.c.l.b16 %v1753
    %v2283 = vunpack.c.h.b16 %v1753
    %v2284 = vunpack.c.l.b16 %v1754
    %v2285 = vunpack.c.h.b16 %v1754
    %v2286 = vunpack.c.l.b16 %v1755
    %v2287 = vunpack.c.h.b16 %v1755
    %v2288 = vunpack.c.l.b16 %v1756
    %v2289 = vunpack.c.h.b16 %v1756
    %v2290 = vunpack.c.l.b16 %v1757
    %v2291 = vunpack.c.h.b16 %v1757
    %v2292 = vunpack.c.l.b16 %v1758
    %v2293 = vunpack.c.h.b16 %v1758
    %v2294 = vunpack.c.l.b16 %v1759
    %v2295 = vunpack.c.h.b16 %v1759
    %v2296 = vunpack.c.l.b16 %v1760
    %v2297 = vunpack.c.h.b16 %v1760
    %v2298 = vunpack.c.l.b16 %v1761
    %v2299 = vunpack.c.h.b16 %v1761
    %v2300 = vunpack.c.l.b16 %v1762
    %v2301 = vunpack.c.h.b16 %v1762
    %v2302 = vunpack.c.l.b16 %v1763
    %v2303 = vunpack.c.h.b16 %v1763
    %v2304 = vunpack.c.l.b16 %v1764
    %v2305 = vunpack.c.h.b16 %v1764
    %v2306 = vunpack.c.l.b16 %v1765
    %v2307 = vunpack.c.h.b16 %v1765
    %v2308 = vunpack.c.l.b16 %v1766
    %v2309 = vunpack.c.h.b16 %v1766
    %v2310 = vunpack.c.l.b16 %v1767
    %v2311 = vunpack.c.h.b16 %v1767
    %v2312 = vunpack.c.l.b16 %v1768
    %v2313 = vunpack.c.h.b16 %v1768
    %v2314 = vunpack.c.l.b16 %v1769
    %v2315 = vunpack.c.h.b16 %v1769
    %v2316 = vunpack.c.l.b16 %v1770
    %v2317 = vunpack.c.h.b16 %v1770
    %v2318 = vunpack.c.l.b16 %v1771
    %v2319 = vunpack.c.h.b16 %v1771
    %v2320 = vunpack.c.l.b16 %v1772
    %v2321 = vunpack.c.h.b16 %v1772
    %v2322 = vunpack.c.l.b16 %v1773
    %v2323 = vunpack.c.h.b16 %v1773
    %v2324 = vunpack.c.l.b16 %v1774
    %v2325 = vunpack.c.h.b16 %v1774
    %v2326 = vunpack.c.l.b16 %v1775
    %v2327 = vunpack.c.h.b16 %v1775
    %v2328 = vunpack.c.l.b16 %v1776
    %v2329 = vunpack.c.h.b16 %v1776
    %v2330 = vunpack.c.l.b16 %v1777
    %v2331 = vunpack.c.h.b16 %v1777
    %v2332 = vunpack.c.l.b16 %v1778
    %v2333 = vunpack.c.h.b16 %v1778
    %v2334 = vunpack.c.l.b16 %v1779
    %v2335 = vunpack.c.h.b16 %v1779
    %v2336 = vunpack.c.l.b16 %v1780
    %v2337 = vunpack.c.h.b16 %v1780
    %v2338 = vpack.c.b16 %v2214, %v2210
    %v2339 = vpack.c.b16 %v2215, %v2211
    %v2340 = vpack.c.b16 %v2216, %v2212
    %v2341 = vpack.c.b16 %v2217, %v2213
    %v2342 = vpack.c.b16 %v2222, %v2218
    %v2343 = vpack.c.b16 %v2223, %v2219
    %v2344 = vpack.c.b16 %v2224, %v2220
    %v2345 = vpack.c.b16 %v2225, %v2221
    %v2346 = vpack.c.b16 %v2230, %v2226
    %v2347 = vpack.c.b16 %v2231, %v2227
    %v2348 = vpack.c.b16 %v2232, %v2228
    %v2349 = vpack.c.b16 %v2233, %v2229
    %v2350 = vpack.c.b16 %v2238, %v2234
    %v2351 = vpack.c.b16 %v2239, %v2235
    %v2352 = vpack.c.b16 %v2240, %v2236
    %v2353 = vpack.c.b16 %v2241, %v2237
    %v2354 = vpack.c.b16 %v2246, %v2242
    %v2355 = vpack.c.b16 %v2247, %v2243
    %v2356 = vpack.c.b16 %v2248, %v2244
    %v2357 = vpack.c.b16 %v2249, %v2245
    %v2358 = vpack.c.b16 %v2254, %v2250
    %v2359 = vpack.c.b16 %v2255, %v2251
    %v2360 = vpack.c.b16 %v2256, %v2252
    %v2361 = vpack.c.b16 %v2257, %v2253
    %v2362 = vpack.c.b16 %v2262, %v2258
    %v2363 = vpack.c.b16 %v2263, %v2259
    %v2364 = vpack.c.b16 %v2264, %v2260
    %v2365 = vpack.c.b16 %v2265, %v2261
    %v2366 = vpack.c.b16 %v2270, %v2266
    %v2367 = vpack.c.b16 %v2271, %v2267
    %v2368 = vpack.c.b16 %v2272, %v2268
    %v2369 = vpack.c.b16 %v2273, %v2269
    %v2370 = vpack.c.b16 %v2278, %v2274
    %v2371 = vpack.c.b16 %v2279, %v2275
    %v2372 = vpack.c.b16 %v2280, %v2276
    %v2373 = vpack.c.b16 %v2281, %v2277
    %v2374 = vpack.c.b16 %v2286, %v2282
    %v2375 = vpack.c.b16 %v2287, %v2283
    %v2376 = vpack.c.b16 %v2288, %v2284
    %v2377 = vpack.c.b16 %v2289, %v2285
    %v2378 = vpack.c.b16 %v2294, %v2290
    %v2379 = vpack.c.b16 %v2295, %v2291
    %v2380 = vpack.c.b16 %v2296, %v2292
    %v2381 = vpack.c.b16 %v2297, %v2293
    %v2382 = vpack.c.b16 %v2302, %v2298
    %v2383 = vpack.c.b16 %v2303, %v2299
    %v2384 = vpack.c.b16 %v2304, %v2300
    %v2385 = vpack.c.b16 %v2305, %v2301
    %v2386 = vpack.c.b16 %v2310, %v2306
    %v2387 = vpack.c.b16 %v2311, %v2307
    %v2388 = vpack.c.b16 %v2312, %v2308
    %v2389 = vpack.c.b16 %v2313, %v2309
    %v2390 = vpack.c.b16 %v2318, %v2314
    %v2391 = vpack.c.b16 %v2319, %v2315
    %v2392 = vpack.c.b16 %v2320, %v2316
    %v2393 = vpack.c.b16 %v2321, %v2317
    %v2394 = vpack.c.b16 %v2326, %v2322
    %v2395 = vpack.c.b16 %v2327, %v2323
    %v2396 = vpack.c.b16 %v2328, %v2324
    %v2397 = vpack.c.b16 %v2329, %v2325
    %v2398 = vpack.c.b16 %v2334, %v2330
    %v2399 = vpack.c.b16 %v2335, %v2331
    %v2400 = vpack.c.b16 %v2336, %v2332
    %v2401 = vpack.c.b16 %v2337, %v2333
    %v2467 = vperm.slane %v1781, 0
    %v2468 = vperm.slane %v1781, 1
    %v2469 = vperm.slane %v1781, 2
    %v2470 = vperm.slane %v1781, 3
    %2475 = vmatpush.bf16.msra.mxu0 %v2366
    %2476 = vmatpush.bf16.msra.mxu0 %v2362
    %2477 = vmatpush.bf16.msra.mxu0 %v2358
    %2478 = vmatpush.bf16.msra.mxu0 %v2354
    %2479 = vmatpush.bf16.msra.mxu0 %v2350
    %2480 = vmatpush.bf16.msra.mxu0 %v2346
    %2481 = vmatpush.bf16.msra.mxu0 %v2342
    %2482 = vmatpush.bf16.msra.mxu0 %v2338
    %2483 = vmatmul.bf16.gmra.mxu0 %v2144
    %v2484 = vpop.f32.mrf.mxu0
    %v2485 = vadd.f32 %v2467, %v2484
    %v2486 = vpop.f32.mrf.mxu0
    %2487 = vdwg.mxu0
    %2488 = vmatpush.bf16.msra.mxu0 %v2398
    %2489 = vmatpush.bf16.msra.mxu0 %v2394
    %2490 = vmatpush.bf16.msra.mxu0 %v2390
    %2491 = vmatpush.bf16.msra.mxu0 %v2386
    %2492 = vmatpush.bf16.msra.mxu0 %v2382
    %2493 = vmatpush.bf16.msra.mxu0 %v2378
    %2494 = vmatpush.bf16.msra.mxu0 %v2374
    %2495 = vmatpush.bf16.msra.mxu0 %v2370
    %2496 = vmatmul.bf16.gmra.mxu0 %v2145
    %v2497 = vpop.f32.mrf.mxu0
    %v2498 = vadd.f32 %v2485, %v2497
    %v2499 = vpop.f32.mrf.mxu0
    %2500 = vdwg.mxu0
    %2501 = vmatpush.bf16.msra.mxu0 %v2367
    %2502 = vmatpush.bf16.msra.mxu0 %v2363
    %2503 = vmatpush.bf16.msra.mxu0 %v2359
    %2504 = vmatpush.bf16.msra.mxu0 %v2355
    %2505 = vmatpush.bf16.msra.mxu0 %v2351
    %2506 = vmatpush.bf16.msra.mxu0 %v2347
    %2507 = vmatpush.bf16.msra.mxu0 %v2343
    %2508 = vmatpush.bf16.msra.mxu0 %v2339
    %2509 = vmatmul.bf16.gmra.mxu0 %v2144
    %v2510 = vpop.f32.mrf.mxu0
    %v2511 = vadd.f32 %v2468, %v2510
    %v2512 = vpop.f32.mrf.mxu0
    %2513 = vdwg.mxu0
    %2514 = vmatpush.bf16.msra.mxu0 %v2399
    %2515 = vmatpush.bf16.msra.mxu0 %v2395
    %2516 = vmatpush.bf16.msra.mxu0 %v2391
    %2517 = vmatpush.bf16.msra.mxu0 %v2387
    %2518 = vmatpush.bf16.msra.mxu0 %v2383
    %2519 = vmatpush.bf16.msra.mxu0 %v2379
    %2520 = vmatpush.bf16.msra.mxu0 %v2375
    %2521 = vmatpush.bf16.msra.mxu0 %v2371
    %2522 = vmatmul.bf16.gmra.mxu0 %v2145
    %v2523 = vpop.f32.mrf.mxu0
    %v2524 = vadd.f32 %v2511, %v2523
    %v2525 = vpop.f32.mrf.mxu0
    %2526 = vdwg.mxu0
    %2527 = vmatpush.bf16.msra.mxu0 %v2368
    %2528 = vmatpush.bf16.msra.mxu0 %v2364
    %2529 = vmatpush.bf16.msra.mxu0 %v2360
    %2530 = vmatpush.bf16.msra.mxu0 %v2356
    %2531 = vmatpush.bf16.msra.mxu0 %v2352
    %2532 = vmatpush.bf16.msra.mxu0 %v2348
    %2533 = vmatpush.bf16.msra.mxu0 %v2344
    %2534 = vmatpush.bf16.msra.mxu0 %v2340
    %2535 = vmatmul.bf16.gmra.mxu0 %v2144
    %v2536 = vpop.f32.mrf.mxu0
    %v2537 = vadd.f32 %v2469, %v2536
    %v2538 = vpop.f32.mrf.mxu0
    %2539 = vdwg.mxu0
    %2540 = vmatpush.bf16.msra.mxu0 %v2400
    %2541 = vmatpush.bf16.msra.mxu0 %v2396
    %2542 = vmatpush.bf16.msra.mxu0 %v2392
    %2543 = vmatpush.bf16.msra.mxu0 %v2388
    %2544 = vmatpush.bf16.msra.mxu0 %v2384
    %2545 = vmatpush.bf16.msra.mxu0 %v2380
    %2546 = vmatpush.bf16.msra.mxu0 %v2376
    %2547 = vmatpush.bf16.msra.mxu0 %v2372
    %2548 = vmatmul.bf16.gmra.mxu0 %v2145
    %v2549 = vpop.f32.mrf.mxu0
    %v2550 = vadd.f32 %v2537, %v2549
    %v2551 = vpop.f32.mrf.mxu0
    %2552 = vdwg.mxu0
    %2553 = vmatpush.bf16.msra.mxu0 %v2369
    %2554 = vmatpush.bf16.msra.mxu0 %v2365
    %2555 = vmatpush.bf16.msra.mxu0 %v2361
    %2556 = vmatpush.bf16.msra.mxu0 %v2357
    %2557 = vmatpush.bf16.msra.mxu0 %v2353
    %2558 = vmatpush.bf16.msra.mxu0 %v2349
    %2559 = vmatpush.bf16.msra.mxu0 %v2345
    %2560 = vmatpush.bf16.msra.mxu0 %v2341
    %2561 = vmatmul.bf16.gmra.mxu0 %v2144
    %v2562 = vpop.f32.mrf.mxu0
    %v2563 = vadd.f32 %v2470, %v2562
    %v2564 = vpop.f32.mrf.mxu0
    %2565 = vdwg.mxu0
    %2566 = vmatpush.bf16.msra.mxu0 %v2401
    %2567 = vmatpush.bf16.msra.mxu0 %v2397
    %2568 = vmatpush.bf16.msra.mxu0 %v2393
    %2569 = vmatpush.bf16.msra.mxu0 %v2389
    %2570 = vmatpush.bf16.msra.mxu0 %v2385
    %2571 = vmatpush.bf16.msra.mxu0 %v2381
    %2572 = vmatpush.bf16.msra.mxu0 %v2377
    %2573 = vmatpush.bf16.msra.mxu0 %v2373
    %2574 = vmatmul.bf16.gmra.mxu0 %v2145
    %v2575 = vpop.f32.mrf.mxu0
    %v2576 = vadd.f32 %v2563, %v2575
    %v2577 = vpop.f32.mrf.mxu0
    %2578 = vdwg.mxu0
    %v2579 = vxor.u32 %v2498, 2147483648
    %v2580 = vmul.f32 %v2579, 1.442695
    %v2581 = vpow.pop %v2580
    %v2582 = vadd.f32 %v2581, 1.0
    %v2583 = vrcp.pop %v2582
    %v2584 = vmul.f32 %v2582, %v2583
    %v2585 = vsub.f32 1.0, %v2584
    %v2586 = vmul.f32 %v2583, %v2585
    %v2587 = vadd.f32 %v2583, %v2586
    %vm2588 = vweird.f32 %v2582
    %vm2589 = vweird.f32 %v2583
    %vm2590 = vmor %vm2588, %vm2589
    %v2591 = vsel %vm2590, %v2583, %v2587
    %v2592 = vand.u32 2147483647, %v2582
    %vm2593 = vcmp.eq.f32.partialorder %v2592, 8.507059e+37
    %v2594 = vand.u32 %v2582, 2147483648
    %v2595 = vor.u32 1.1754944e-38, %v2594
    %v2596 = vsel %vm2593, %v2595, %v2591
    %v2597 = vmul.f32 1.0, %v2596
    %v2598 = vxor.u32 %v2524, 2147483648
    %v2599 = vmul.f32 %v2598, 1.442695
    %v2600 = vpow.pop %v2599
    %v2601 = vadd.f32 %v2600, 1.0
    %v2602 = vrcp.pop %v2601
    %v2603 = vmul.f32 %v2601, %v2602
    %v2604 = vsub.f32 1.0, %v2603
    %v2605 = vmul.f32 %v2602, %v2604
    %v2606 = vadd.f32 %v2602, %v2605
    %vm2607 = vweird.f32 %v2601
    %vm2608 = vweird.f32 %v2602
    %vm2609 = vmor %vm2607, %vm2608
    %v2610 = vsel %vm2609, %v2602, %v2606
    %v2611 = vand.u32 2147483647, %v2601
    %vm2612 = vcmp.eq.f32.partialorder %v2611, 8.507059e+37
    %v2613 = vand.u32 %v2601, 2147483648
    %v2614 = vor.u32 1.1754944e-38, %v2613
    %v2615 = vsel %vm2612, %v2614, %v2610
    %v2616 = vmul.f32 1.0, %v2615
    %v2617 = vtanh.pop %v2550
    %v2618 = vxor.u32 %v2576, 2147483648
    %v2619 = vmul.f32 %v2618, 1.442695
    %v2620 = vpow.pop %v2619
    %v2621 = vadd.f32 %v2620, 1.0
    %v2622 = vrcp.pop %v2621
    %v2623 = vmul.f32 %v2621, %v2622
    %v2624 = vsub.f32 1.0, %v2623
    %v2625 = vmul.f32 %v2622, %v2624
    %v2626 = vadd.f32 %v2622, %v2625
    %vm2627 = vweird.f32 %v2621
    %vm2628 = vweird.f32 %v2622
    %vm2629 = vmor %vm2627, %vm2628
    %v2630 = vsel %vm2629, %v2622, %v2626
    %v2631 = vand.u32 2147483647, %v2621
    %vm2632 = vcmp.eq.f32.partialorder %v2631, 8.507059e+37
    %v2633 = vand.u32 %v2621, 2147483648
    %v2634 = vor.u32 1.1754944e-38, %v2633
    %v2635 = vsel %vm2632, %v2634, %v2630
    %v2636 = vmul.f32 1.0, %v2635
    %v2637 = vmul.f32 %v2616, 0.0
    %v2638 = vmul.f32 %v2597, %v2617
    %v2639 = vadd.f32 %v2637, %v2638
    %v2640 = vtanh.pop %v2639
    %v2641 = vmul.f32 %v2636, %v2640
    %v2642 = vpack.c.bf16 %v2641, %v2641
    %v2659 = vunpack.c.l.b16 %v1782
    %v2660 = vunpack.c.l.b16 %v1783
    %v2661 = vunpack.c.l.b16 %v1784
    %v2662 = vunpack.c.l.b16 %v1785
    %v2663 = vunpack.c.l.b16 %v1786
    %v2664 = vunpack.c.l.b16 %v1787
    %v2665 = vunpack.c.l.b16 %v1788
    %v2666 = vunpack.c.l.b16 %v1789
    %v2667 = vunpack.c.l.b16 %v1790
    %v2668 = vunpack.c.l.b16 %v1791
    %v2669 = vunpack.c.l.b16 %v1792
    %v2670 = vunpack.c.l.b16 %v1793
    %v2671 = vunpack.c.l.b16 %v1794
    %v2672 = vunpack.c.l.b16 %v1795
    %v2673 = vunpack.c.l.b16 %v1796
    %v2674 = vunpack.c.l.b16 %v1797
    %v2675 = vpack.c.b16 %v2660, %v2659
    %v2676 = vpack.c.b16 %v2662, %v2661
    %v2677 = vpack.c.b16 %v2664, %v2663
    %v2678 = vpack.c.b16 %v2666, %v2665
    %v2679 = vpack.c.b16 %v2668, %v2667
    %v2680 = vpack.c.b16 %v2670, %v2669
    %v2681 = vpack.c.b16 %v2672, %v2671
    %v2682 = vpack.c.b16 %v2674, %v2673
    %2691 = vmatpush.bf16.msra.mxu0 %v2682
    %2692 = vmatpush.bf16.msra.mxu0 %v2681
    %2693 = vmatpush.bf16.msra.mxu0 %v2680
    %2694 = vmatpush.bf16.msra.mxu0 %v2679
    %2695 = vmatpush.bf16.msra.mxu0 %v2678
    %2696 = vmatpush.bf16.msra.mxu0 %v2677
    %2697 = vmatpush.bf16.msra.mxu0 %v2676
    %2698 = vmatpush.bf16.msra.mxu0 %v2675
    %2699 = vmatmul.bf16.gmra.mxu0 %v2642
    %v2700 = vpop.f32.mrf.mxu0
    %v2701 = vadd.f32 %v1798, %v2700
    %v2702 = vpop.f32.mrf.mxu0
    %2703 = vdwg.mxu0
    %vm2704 = vcmask 57344
    %v2705 = vsel %vm2704, %v2701, -inf
    %2706 = vmax.xlane.f32.xlu0 %v2705
    %v2707 = vpop.xlane.xlu0 %2706
    %vm2708 = vcmp.eq.f32.partialorder %v2701, %v2707
    %v2709 = vsel %vm2708, %v1800, 8
    %v2710 = vsel %vm2704, %v2709, 2147483647
    %v2711 = vand.u32 %v2710, 65535
    %v2712 = vshra.s32 %v2710, 16
    %v2713 = vcvt.s32.f32 %v2711
    %v2714 = vcvt.s32.f32 %v2712
    %2715 = vmin.xlane.f32.xlu0 %v2714
    %v2716 = vpop.xlane.xlu0 %2715
    %vm2717 = vcmp.eq.f32.partialorder %v2714, %v2716
    %v2718 = vsel %vm2717, %v2713, inf
    %2719 = vmin.xlane.f32.xlu0 %v2718
    %v2720 = vpop.xlane.xlu0 %2719
    %v2721 = vcvt.f32.s32 %v2720
    %v2722 = vcvt.f32.s32 %v2716
    %v2723 = vshll.u32 %v2722, 16
    %v2724 = vadd.s32 %v2723, %v2721
    %s2725 = sld [smem:[#allocation4]]
    %v2726 = vsub.f32 %v2701, %v2707
    %v2727 = vmul.f32 %v2726, 1.442695
    %v2728 = vpow.pop %v2727
    %v2729 = vsel %vm2704, %v2728, 0.0
    %2730 = vadd.xlane.f32.xlu0 %v2729
    %v2731 = vpop.xlane.xlu0 %2730
    %v2732 = vlog2.pop %v2731
    %v2733 = vmul.f32 %v2732, 0.6931472
    %v2734 = vadd.f32 %v2707, %v2733
    %v2735 = vstv %s2725
    %vm2736 = vcmp.eq.s32.totalorder %v1800, %v2735
    %v2737 = vsel %vm2736, %v2701, 0.0
    %v2738 = vsel %vm2704, %v2737, 0.0
    %2739 = vadd.xlane.f32.xlu0 %v2738
    %v2740 = vpop.xlane.xlu0 %2739
    %p2741 = scmp.eq.s32.totalorder %s2725, 0
    %v2742 = vsub.f32 %v2734, %v2740
    %s2743 = scalar_select %p2741, 1, 0
    %v2744 = vstv %s2743
    %vm2745 = vcmp.eq.s32.totalorder %v2744, 1
    %v2746 = vsel %vm2745, 0.0, %v2742
    %v2747 = vadd.f32 %v2746, 0.0
    %s2748 = scalar_lea.vmem [#allocation3], 1
    %v2749 = vld [vmem:[%s2748] ss:$8 sm:$0xf]
    %v2750 = vperm.slane %v2724, 0
    %vm2751 = vcmp.eq.s32.totalorder %v1802, %v2750
    %v2752 = vsel %vm2751, 1, 0
    %vm2753 = vcmp.eq.s32.totalorder %v2752, 1
    %v2754 = vsel %vm2753, %v1681, 0.0
    %v2755 = vsel %vm2753, %v1682, 0.0
    %v2756 = vsel %vm2753, %v1683, 0.0
    %v2757 = vsel %vm2753, %v1684, 0.0
    %v2758 = vrot.slane %v2754, 4
    %v2759 = vadd.f32 %v2754, %v2758
    %v2760 = vrot.slane %v2759, 2
    %v2761 = vadd.f32 %v2759, %v2760
    %v2762 = vrot.slane %v2761, 1
    %v2763 = vadd.f32 %v2761, %v2762
    %v2764 = vrot.slane %v2755, 4
    %v2765 = vadd.f32 %v2755, %v2764
    %v2766 = vrot.slane %v2765, 2
    %v2767 = vadd.f32 %v2765, %v2766
    %v2768 = vrot.slane %v2767, 1
    %v2769 = vadd.f32 %v2767, %v2768
    %v2770 = vrot.slane %v2756, 4
    %v2771 = vadd.f32 %v2756, %v2770
    %v2772 = vrot.slane %v2771, 2
    %v2773 = vadd.f32 %v2771, %v2772
    %v2774 = vrot.slane %v2773, 1
    %v2775 = vadd.f32 %v2773, %v2774
    %v2776 = vrot.slane %v2757, 4
    %v2777 = vadd.f32 %v2757, %v2776
    %v2778 = vrot.slane %v2777, 2
    %v2779 = vadd.f32 %v2777, %v2778
    %v2780 = vrot.slane %v2779, 1
    %v2781 = vadd.f32 %v2779, %v2780
    %v2786 = vrot.slane %v2769, 7
    %v2787 = vrot.slane %v2775, 6
    %v2788 = vrot.slane %v2781, 5
    %v2789 = vsel %vm1842, %v2763, %v2786
    %v2790 = vsel %vm1844, %v2787, %v2788
    %v2791 = vsel %vm1846, %v2789, %v2790
    %v2793 = vadd.f32 %v2749, %v2791
    %2794 = vmatpush.bf16.msra.mxu0 %v1974
    %2795 = vmatpush.bf16.msra.mxu0 %v1970
    %2796 = vmatpush.bf16.msra.mxu0 %v1966
    %2797 = vmatpush.bf16.msra.mxu0 %v1962
    %2798 = vmatpush.bf16.msra.mxu0 %v1958
    %2799 = vmatpush.bf16.msra.mxu0 %v1954
    %2800 = vmatpush.bf16.msra.mxu0 %v1950
    %2801 = vmatpush.bf16.msra.mxu0 %v1946
    %2802 = vmatmul.bf16.gmra.mxu0 %v2144
    %v2803 = vpop.f32.mrf.mxu0
    %v2804 = vadd.f32 0.0, %v2803
    %v2805 = vpop.f32.mrf.mxu0
    %2806 = vdwg.mxu0
    %2807 = vmatpush.bf16.msra.mxu0 %v1975
    %2808 = vmatpush.bf16.msra.mxu0 %v1971
    %2809 = vmatpush.bf16.msra.mxu0 %v1967
    %2810 = vmatpush.bf16.msra.mxu0 %v1963
    %2811 = vmatpush.bf16.msra.mxu0 %v1959
    %2812 = vmatpush.bf16.msra.mxu0 %v1955
    %2813 = vmatpush.bf16.msra.mxu0 %v1951
    %2814 = vmatpush.bf16.msra.mxu0 %v1947
    %2815 = vmatmul.bf16.gmra.mxu0 %v2144
    %v2816 = vpop.f32.mrf.mxu0
    %v2817 = vadd.f32 0.0, %v2816
    %v2818 = vpop.f32.mrf.mxu0
    %2819 = vdwg.mxu0
    %2820 = vmatpush.bf16.msra.mxu0 %v1976
    %2821 = vmatpush.bf16.msra.mxu0 %v1972
    %2822 = vmatpush.bf16.msra.mxu0 %v1968
    %2823 = vmatpush.bf16.msra.mxu0 %v1964
    %2824 = vmatpush.bf16.msra.mxu0 %v1960
    %2825 = vmatpush.bf16.msra.mxu0 %v1956
    %2826 = vmatpush.bf16.msra.mxu0 %v1952
    %2827 = vmatpush.bf16.msra.mxu0 %v1948
    %2828 = vmatmul.bf16.gmra.mxu0 %v2144
    %v2829 = vpop.f32.mrf.mxu0
    %v2830 = vadd.f32 0.0, %v2829
    %v2831 = vpop.f32.mrf.mxu0
    %2832 = vdwg.mxu0
    %2833 = vmatpush.bf16.msra.mxu0 %v1977
    %2834 = vmatpush.bf16.msra.mxu0 %v1973
    %2835 = vmatpush.bf16.msra.mxu0 %v1969
    %2836 = vmatpush.bf16.msra.mxu0 %v1965
    %2837 = vmatpush.bf16.msra.mxu0 %v1961
    %2838 = vmatpush.bf16.msra.mxu0 %v1957
    %2839 = vmatpush.bf16.msra.mxu0 %v1953
    %2840 = vmatpush.bf16.msra.mxu0 %v1949
    %2841 = vmatmul.bf16.gmra.mxu0 %v2144
    %v2842 = vpop.f32.mrf.mxu0
    %v2843 = vadd.f32 0.0, %v2842
    %v2844 = vpop.f32.mrf.mxu0
    %2845 = vdwg.mxu0
    %v2850 = vrot.slane %v2817, 7
    %v2851 = vrot.slane %v2830, 6
    %v2852 = vrot.slane %v2843, 5
    %v2853 = vsel %vm1842, %v2804, %v2850
    %v2854 = vsel %vm1844, %v2851, %v2852
    %v2855 = vsel %vm1846, %v2853, %v2854
    %v2857 = vadd.f32 %v2793, %v2855
    %v2858 = vxor.u32 %v2857, 2147483648
    %v2859 = vmul.f32 %v2858, 1.442695
    %v2860 = vpow.pop %v2859
    %v2861 = vadd.f32 %v2860, 1.0
    %v2862 = vrcp.pop %v2861
    %v2863 = vmul.f32 %v2861, %v2862
    %v2864 = vsub.f32 1.0, %v2863
    %v2865 = vmul.f32 %v2862, %v2864
    %v2866 = vadd.f32 %v2862, %v2865
    %vm2867 = vweird.f32 %v2861
    %vm2868 = vweird.f32 %v2862
    %vm2869 = vmor %vm2867, %vm2868
    %v2870 = vsel %vm2869, %v2862, %v2866
    %v2871 = vand.u32 2147483647, %v2861
    %vm2872 = vcmp.eq.f32.partialorder %v2871, 8.507059e+37
    %v2873 = vand.u32 %v2861, 2147483648
    %v2874 = vor.u32 1.1754944e-38, %v2873
    %v2875 = vsel %vm2872, %v2874, %v2870
    %v2876 = vmul.f32 1.0, %v2875
    %v2878 = vrot.slane %v2857, 1
    %v2880 = vxor.u32 %v2878, 2147483648
    %v2881 = vmul.f32 %v2880, 1.442695
    %v2882 = vpow.pop %v2881
    %v2883 = vadd.f32 %v2882, 1.0
    %v2884 = vrcp.pop %v2883
    %v2885 = vmul.f32 %v2883, %v2884
    %v2886 = vsub.f32 1.0, %v2885
    %v2887 = vmul.f32 %v2884, %v2886
    %v2888 = vadd.f32 %v2884, %v2887
    %vm2889 = vweird.f32 %v2883
    %vm2890 = vweird.f32 %v2884
    %vm2891 = vmor %vm2889, %vm2890
    %v2892 = vsel %vm2891, %v2884, %v2888
    %v2893 = vand.u32 2147483647, %v2883
    %vm2894 = vcmp.eq.f32.partialorder %v2893, 8.507059e+37
    %v2895 = vand.u32 %v2883, 2147483648
    %v2896 = vor.u32 1.1754944e-38, %v2895
    %v2897 = vsel %vm2894, %v2896, %v2892
    %v2898 = vmul.f32 1.0, %v2897
    %v2899 = vrot.slane %v2857, 2
    %v2901 = vtanh.pop %v2899
    %v2902 = vrot.slane %v2857, 3
    %v2904 = vxor.u32 %v2902, 2147483648
    %v2905 = vmul.f32 %v2904, 1.442695
    %v2906 = vpow.pop %v2905
    %v2907 = vadd.f32 %v2906, 1.0
    %v2908 = vrcp.pop %v2907
    %v2909 = vmul.f32 %v2907, %v2908
    %v2910 = vsub.f32 1.0, %v2909
    %v2911 = vmul.f32 %v2908, %v2910
    %v2912 = vadd.f32 %v2908, %v2911
    %vm2913 = vweird.f32 %v2907
    %vm2914 = vweird.f32 %v2908
    %vm2915 = vmor %vm2913, %vm2914
    %v2916 = vsel %vm2915, %v2908, %v2912
    %v2917 = vand.u32 2147483647, %v2907
    %vm2918 = vcmp.eq.f32.partialorder %v2917, 8.507059e+37
    %v2919 = vand.u32 %v2907, 2147483648
    %v2920 = vor.u32 1.1754944e-38, %v2919
    %v2921 = vsel %vm2918, %v2920, %v2916
    %v2922 = vmul.f32 1.0, %v2921
    %v2923 = vmul.f32 %v2898, %v2141
    %v2924 = vmul.f32 %v2876, %v2901
    %v2925 = vadd.f32 %v2923, %v2924
    %v2926 = vtanh.pop %v2925
    %v2927 = vmul.f32 %v2922, %v2926
    %v2928 = vpack.c.bf16 %v2927, %v2927
    %2929 = vmatpush.bf16.msra.mxu0 %v2366
    %2930 = vmatpush.bf16.msra.mxu0 %v2362
    %2931 = vmatpush.bf16.msra.mxu0 %v2358
    %2932 = vmatpush.bf16.msra.mxu0 %v2354
    %2933 = vmatpush.bf16.msra.mxu0 %v2350
    %2934 = vmatpush.bf16.msra.mxu0 %v2346
    %2935 = vmatpush.bf16.msra.mxu0 %v2342
    %2936 = vmatpush.bf16.msra.mxu0 %v2338
    %2937 = vmatmul.bf16.gmra.mxu0 %v2928
    %v2938 = vpop.f32.mrf.mxu0
    %v2939 = vadd.f32 %v2467, %v2938
    %v2940 = vpop.f32.mrf.mxu0
    %2941 = vdwg.mxu0
    %2942 = vmatpush.bf16.msra.mxu0 %v2398
    %2943 = vmatpush.bf16.msra.mxu0 %v2394
    %2944 = vmatpush.bf16.msra.mxu0 %v2390
    %2945 = vmatpush.bf16.msra.mxu0 %v2386
    %2946 = vmatpush.bf16.msra.mxu0 %v2382
    %2947 = vmatpush.bf16.msra.mxu0 %v2378
    %2948 = vmatpush.bf16.msra.mxu0 %v2374
    %2949 = vmatpush.bf16.msra.mxu0 %v2370
    %2950 = vmatmul.bf16.gmra.mxu0 %v2642
    %v2951 = vpop.f32.mrf.mxu0
    %v2952 = vadd.f32 %v2939, %v2951
    %v2953 = vpop.f32.mrf.mxu0
    %2954 = vdwg.mxu0
    %2955 = vmatpush.bf16.msra.mxu0 %v2367
    %2956 = vmatpush.bf16.msra.mxu0 %v2363
    %2957 = vmatpush.bf16.msra.mxu0 %v2359
    %2958 = vmatpush.bf16.msra.mxu0 %v2355
    %2959 = vmatpush.bf16.msra.mxu0 %v2351
    %2960 = vmatpush.bf16.msra.mxu0 %v2347
    %2961 = vmatpush.bf16.msra.mxu0 %v2343
    %2962 = vmatpush.bf16.msra.mxu0 %v2339
    %2963 = vmatmul.bf16.gmra.mxu0 %v2928
    %v2964 = vpop.f32.mrf.mxu0
    %v2965 = vadd.f32 %v2468, %v2964
    %v2966 = vpop.f32.mrf.mxu0
    %2967 = vdwg.mxu0
    %2968 = vmatpush.bf16.msra.mxu0 %v2399
    %2969 = vmatpush.bf16.msra.mxu0 %v2395
    %2970 = vmatpush.bf16.msra.mxu0 %v2391
    %2971 = vmatpush.bf16.msra.mxu0 %v2387
    %2972 = vmatpush.bf16.msra.mxu0 %v2383
    %2973 = vmatpush.bf16.msra.mxu0 %v2379
    %2974 = vmatpush.bf16.msra.mxu0 %v2375
    %2975 = vmatpush.bf16.msra.mxu0 %v2371
    %2976 = vmatmul.bf16.gmra.mxu0 %v2642
    %v2977 = vpop.f32.mrf.mxu0
    %v2978 = vadd.f32 %v2965, %v2977
    %v2979 = vpop.f32.mrf.mxu0
    %2980 = vdwg.mxu0
    %2981 = vmatpush.bf16.msra.mxu0 %v2368
    %2982 = vmatpush.bf16.msra.mxu0 %v2364
    %2983 = vmatpush.bf16.msra.mxu0 %v2360
    %2984 = vmatpush.bf16.msra.mxu0 %v2356
    %2985 = vmatpush.bf16.msra.mxu0 %v2352
    %2986 = vmatpush.bf16.msra.mxu0 %v2348
    %2987 = vmatpush.bf16.msra.mxu0 %v2344
    %2988 = vmatpush.bf16.msra.mxu0 %v2340
    %2989 = vmatmul.bf16.gmra.mxu0 %v2928
    %v2990 = vpop.f32.mrf.mxu0
    %v2991 = vadd.f32 %v2469, %v2990
    %v2992 = vpop.f32.mrf.mxu0
    %2993 = vdwg.mxu0
    %2994 = vmatpush.bf16.msra.mxu0 %v2400
    %2995 = vmatpush.bf16.msra.mxu0 %v2396
    %2996 = vmatpush.bf16.msra.mxu0 %v2392
    %2997 = vmatpush.bf16.msra.mxu0 %v2388
    %2998 = vmatpush.bf16.msra.mxu0 %v2384
    %2999 = vmatpush.bf16.msra.mxu0 %v2380
    %3000 = vmatpush.bf16.msra.mxu0 %v2376
    %3001 = vmatpush.bf16.msra.mxu0 %v2372
    %3002 = vmatmul.bf16.gmra.mxu0 %v2642
    %v3003 = vpop.f32.mrf.mxu0
    %v3004 = vadd.f32 %v2991, %v3003
    %v3005 = vpop.f32.mrf.mxu0
    %3006 = vdwg.mxu0
    %3007 = vmatpush.bf16.msra.mxu0 %v2369
    %3008 = vmatpush.bf16.msra.mxu0 %v2365
    %3009 = vmatpush.bf16.msra.mxu0 %v2361
    %3010 = vmatpush.bf16.msra.mxu0 %v2357
    %3011 = vmatpush.bf16.msra.mxu0 %v2353
    %3012 = vmatpush.bf16.msra.mxu0 %v2349
    %3013 = vmatpush.bf16.msra.mxu0 %v2345
    %3014 = vmatpush.bf16.msra.mxu0 %v2341
    %3015 = vmatmul.bf16.gmra.mxu0 %v2928
    %v3016 = vpop.f32.mrf.mxu0
    %v3017 = vadd.f32 %v2470, %v3016
    %v3018 = vpop.f32.mrf.mxu0
    %3019 = vdwg.mxu0
    %3020 = vmatpush.bf16.msra.mxu0 %v2401
    %3021 = vmatpush.bf16.msra.mxu0 %v2397
    %3022 = vmatpush.bf16.msra.mxu0 %v2393
    %3023 = vmatpush.bf16.msra.mxu0 %v2389
    %3024 = vmatpush.bf16.msra.mxu0 %v2385
    %3025 = vmatpush.bf16.msra.mxu0 %v2381
    %3026 = vmatpush.bf16.msra.mxu0 %v2377
    %3027 = vmatpush.bf16.msra.mxu0 %v2373
    %3028 = vmatmul.bf16.gmra.mxu0 %v2642
    %v3029 = vpop.f32.mrf.mxu0
    %v3030 = vadd.f32 %v3017, %v3029
    %v3031 = vpop.f32.mrf.mxu0
    %3032 = vdwg.mxu0
    %v3033 = vxor.u32 %v2952, 2147483648
    %v3034 = vmul.f32 %v3033, 1.442695
    %v3035 = vpow.pop %v3034
    %v3036 = vadd.f32 %v3035, 1.0
    %v3037 = vrcp.pop %v3036
    %v3038 = vmul.f32 %v3036, %v3037
    %v3039 = vsub.f32 1.0, %v3038
    %v3040 = vmul.f32 %v3037, %v3039
    %v3041 = vadd.f32 %v3037, %v3040
    %vm3042 = vweird.f32 %v3036
    %vm3043 = vweird.f32 %v3037
    %vm3044 = vmor %vm3042, %vm3043
    %v3045 = vsel %vm3044, %v3037, %v3041
    %v3046 = vand.u32 2147483647, %v3036
    %vm3047 = vcmp.eq.f32.partialorder %v3046, 8.507059e+37
    %v3048 = vand.u32 %v3036, 2147483648
    %v3049 = vor.u32 1.1754944e-38, %v3048
    %v3050 = vsel %vm3047, %v3049, %v3045
    %v3051 = vmul.f32 1.0, %v3050
    %v3052 = vxor.u32 %v2978, 2147483648
    %v3053 = vmul.f32 %v3052, 1.442695
    %v3054 = vpow.pop %v3053
    %v3055 = vadd.f32 %v3054, 1.0
    %v3056 = vrcp.pop %v3055
    %v3057 = vmul.f32 %v3055, %v3056
    %v3058 = vsub.f32 1.0, %v3057
    %v3059 = vmul.f32 %v3056, %v3058
    %v3060 = vadd.f32 %v3056, %v3059
    %vm3061 = vweird.f32 %v3055
    %vm3062 = vweird.f32 %v3056
    %vm3063 = vmor %vm3061, %vm3062
    %v3064 = vsel %vm3063, %v3056, %v3060
    %v3065 = vand.u32 2147483647, %v3055
    %vm3066 = vcmp.eq.f32.partialorder %v3065, 8.507059e+37
    %v3067 = vand.u32 %v3055, 2147483648
    %v3068 = vor.u32 1.1754944e-38, %v3067
    %v3069 = vsel %vm3066, %v3068, %v3064
    %v3070 = vmul.f32 1.0, %v3069
    %v3071 = vtanh.pop %v3004
    %v3072 = vxor.u32 %v3030, 2147483648
    %v3073 = vmul.f32 %v3072, 1.442695
    %v3074 = vpow.pop %v3073
    %v3075 = vadd.f32 %v3074, 1.0
    %v3076 = vrcp.pop %v3075
    %v3077 = vmul.f32 %v3075, %v3076
    %v3078 = vsub.f32 1.0, %v3077
    %v3079 = vmul.f32 %v3076, %v3078
    %v3080 = vadd.f32 %v3076, %v3079
    %vm3081 = vweird.f32 %v3075
    %vm3082 = vweird.f32 %v3076
    %vm3083 = vmor %vm3081, %vm3082
    %v3084 = vsel %vm3083, %v3076, %v3080
    %v3085 = vand.u32 2147483647, %v3075
    %vm3086 = vcmp.eq.f32.partialorder %v3085, 8.507059e+37
    %v3087 = vand.u32 %v3075, 2147483648
    %v3088 = vor.u32 1.1754944e-38, %v3087
    %v3089 = vsel %vm3086, %v3088, %v3084
    %v3090 = vmul.f32 1.0, %v3089
    %v3091 = vmul.f32 %v3070, %v2639
    %v3092 = vmul.f32 %v3051, %v3071
    %v3093 = vadd.f32 %v3091, %v3092
    %v3094 = vtanh.pop %v3093
    %v3095 = vmul.f32 %v3090, %v3094
    %v3096 = vpack.c.bf16 %v3095, %v3095
    %3097 = vmatpush.bf16.msra.mxu0 %v2682
    %3098 = vmatpush.bf16.msra.mxu0 %v2681
    %3099 = vmatpush.bf16.msra.mxu0 %v2680
    %3100 = vmatpush.bf16.msra.mxu0 %v2679
    %3101 = vmatpush.bf16.msra.mxu0 %v2678
    %3102 = vmatpush.bf16.msra.mxu0 %v2677
    %3103 = vmatpush.bf16.msra.mxu0 %v2676
    %3104 = vmatpush.bf16.msra.mxu0 %v2675
    %3105 = vmatmul.bf16.gmra.mxu0 %v3096
    %v3106 = vpop.f32.mrf.mxu0
    %v3107 = vadd.f32 %v1798, %v3106
    %v3108 = vpop.f32.mrf.mxu0
    %3109 = vdwg.mxu0
    %v3110 = vsel %vm2704, %v3107, -inf
    %3111 = vmax.xlane.f32.xlu0 %v3110
    %v3112 = vpop.xlane.xlu0 %3111
    %vm3113 = vcmp.eq.f32.partialorder %v3107, %v3112
    %v3114 = vsel %vm3113, %v1800, 8
    %v3115 = vsel %vm2704, %v3114, 2147483647
    %v3116 = vand.u32 %v3115, 65535
    %v3117 = vshra.s32 %v3115, 16
    %v3118 = vcvt.s32.f32 %v3116
    %v3119 = vcvt.s32.f32 %v3117
    %3120 = vmin.xlane.f32.xlu0 %v3119
    %v3121 = vpop.xlane.xlu0 %3120
    %vm3122 = vcmp.eq.f32.partialorder %v3119, %v3121
    %v3123 = vsel %vm3122, %v3118, inf
    %3124 = vmin.xlane.f32.xlu0 %v3123
    %v3125 = vpop.xlane.xlu0 %3124
    %v3126 = vcvt.f32.s32 %v3125
    %v3127 = vcvt.f32.s32 %v3121
    %v3128 = vshll.u32 %v3127, 16
    %v3129 = vadd.s32 %v3128, %v3126
    %s3130 = sld [smem:[#allocation4 + $0x1]]
    %v3131 = vsub.f32 %v3107, %v3112
    %v3132 = vmul.f32 %v3131, 1.442695
    %v3133 = vpow.pop %v3132
    %v3134 = vsel %vm2704, %v3133, 0.0
    %3135 = vadd.xlane.f32.xlu0 %v3134
    %v3136 = vpop.xlane.xlu0 %3135
    %v3137 = vlog2.pop %v3136
    %v3138 = vmul.f32 %v3137, 0.6931472
    %v3139 = vadd.f32 %v3112, %v3138
    %v3140 = vstv %s3130
    %vm3141 = vcmp.eq.s32.totalorder %v1800, %v3140
    %v3142 = vsel %vm3141, %v3107, 0.0
    %v3143 = vsel %vm2704, %v3142, 0.0
    %3144 = vadd.xlane.f32.xlu0 %v3143
    %v3145 = vpop.xlane.xlu0 %3144
    %p3146 = scmp.eq.s32.totalorder %s3130, 0
    %v3147 = vsub.f32 %v3139, %v3145
    %s3148 = scalar_select %p3146, 1, 0
    %v3149 = vstv %s3148
    %vm3150 = vcmp.eq.s32.totalorder %v3149, 1
    %v3151 = vsel %vm3150, 0.0, %v3147
    %v3152 = vadd.f32 %v2747, %v3151
    %s3153 = scalar_lea.vmem [#allocation3], 2
    %v3154 = vld [vmem:[%s3153] ss:$8 sm:$0xf]
    %v3155 = vperm.slane %v3129, 0
    %vm3156 = vcmp.eq.s32.totalorder %v1802, %v3155
    %v3157 = vsel %vm3156, 1, 0
    %vm3158 = vcmp.eq.s32.totalorder %v3157, 1
    %v3159 = vsel %vm3158, %v1681, 0.0
    %v3160 = vsel %vm3158, %v1682, 0.0
    %v3161 = vsel %vm3158, %v1683, 0.0
    %v3162 = vsel %vm3158, %v1684, 0.0
    %v3163 = vrot.slane %v3159, 4
    %v3164 = vadd.f32 %v3159, %v3163
    %v3165 = vrot.slane %v3164, 2
    %v3166 = vadd.f32 %v3164, %v3165
    %v3167 = vrot.slane %v3166, 1
    %v3168 = vadd.f32 %v3166, %v3167
    %v3169 = vrot.slane %v3160, 4
    %v3170 = vadd.f32 %v3160, %v3169
    %v3171 = vrot.slane %v3170, 2
    %v3172 = vadd.f32 %v3170, %v3171
    %v3173 = vrot.slane %v3172, 1
    %v3174 = vadd.f32 %v3172, %v3173
    %v3175 = vrot.slane %v3161, 4
    %v3176 = vadd.f32 %v3161, %v3175
    %v3177 = vrot.slane %v3176, 2
    %v3178 = vadd.f32 %v3176, %v3177
    %v3179 = vrot.slane %v3178, 1
    %v3180 = vadd.f32 %v3178, %v3179
    %v3181 = vrot.slane %v3162, 4
    %v3182 = vadd.f32 %v3162, %v3181
    %v3183 = vrot.slane %v3182, 2
    %v3184 = vadd.f32 %v3182, %v3183
    %v3185 = vrot.slane %v3184, 1
    %v3186 = vadd.f32 %v3184, %v3185
    %v3191 = vrot.slane %v3174, 7
    %v3192 = vrot.slane %v3180, 6
    %v3193 = vrot.slane %v3186, 5
    %v3194 = vsel %vm1842, %v3168, %v3191
    %v3195 = vsel %vm1844, %v3192, %v3193
    %v3196 = vsel %vm1846, %v3194, %v3195
    %v3198 = vadd.f32 %v3154, %v3196
    %3199 = vmatpush.bf16.msra.mxu0 %v1974
    %3200 = vmatpush.bf16.msra.mxu0 %v1970
    %3201 = vmatpush.bf16.msra.mxu0 %v1966
    %3202 = vmatpush.bf16.msra.mxu0 %v1962
    %3203 = vmatpush.bf16.msra.mxu0 %v1958
    %3204 = vmatpush.bf16.msra.mxu0 %v1954
    %3205 = vmatpush.bf16.msra.mxu0 %v1950
    %3206 = vmatpush.bf16.msra.mxu0 %v1946
    %3207 = vmatmul.bf16.gmra.mxu0 %v2928
    %v3208 = vpop.f32.mrf.mxu0
    %v3209 = vadd.f32 0.0, %v3208
    %v3210 = vpop.f32.mrf.mxu0
    %3211 = vdwg.mxu0
    %3212 = vmatpush.bf16.msra.mxu0 %v1975
    %3213 = vmatpush.bf16.msra.mxu0 %v1971
    %3214 = vmatpush.bf16.msra.mxu0 %v1967
    %3215 = vmatpush.bf16.msra.mxu0 %v1963
    %3216 = vmatpush.bf16.msra.mxu0 %v1959
    %3217 = vmatpush.bf16.msra.mxu0 %v1955
    %3218 = vmatpush.bf16.msra.mxu0 %v1951
    %3219 = vmatpush.bf16.msra.mxu0 %v1947
    %3220 = vmatmul.bf16.gmra.mxu0 %v2928
    %v3221 = vpop.f32.mrf.mxu0
    %v3222 = vadd.f32 0.0, %v3221
    %v3223 = vpop.f32.mrf.mxu0
    %3224 = vdwg.mxu0
    %3225 = vmatpush.bf16.msra.mxu0 %v1976
    %3226 = vmatpush.bf16.msra.mxu0 %v1972
    %3227 = vmatpush.bf16.msra.mxu0 %v1968
    %3228 = vmatpush.bf16.msra.mxu0 %v1964
    %3229 = vmatpush.bf16.msra.mxu0 %v1960
    %3230 = vmatpush.bf16.msra.mxu0 %v1956
    %3231 = vmatpush.bf16.msra.mxu0 %v1952
    %3232 = vmatpush.bf16.msra.mxu0 %v1948
    %3233 = vmatmul.bf16.gmra.mxu0 %v2928
    %v3234 = vpop.f32.mrf.mxu0
    %v3235 = vadd.f32 0.0, %v3234
    %v3236 = vpop.f32.mrf.mxu0
    %3237 = vdwg.mxu0
    %3238 = vmatpush.bf16.msra.mxu0 %v1977
    %3239 = vmatpush.bf16.msra.mxu0 %v1973
    %3240 = vmatpush.bf16.msra.mxu0 %v1969
    %3241 = vmatpush.bf16.msra.mxu0 %v1965
    %3242 = vmatpush.bf16.msra.mxu0 %v1961
    %3243 = vmatpush.bf16.msra.mxu0 %v1957
    %3244 = vmatpush.bf16.msra.mxu0 %v1953
    %3245 = vmatpush.bf16.msra.mxu0 %v1949
    %3246 = vmatmul.bf16.gmra.mxu0 %v2928
    %v3247 = vpop.f32.mrf.mxu0
    %v3248 = vadd.f32 0.0, %v3247
    %v3249 = vpop.f32.mrf.mxu0
    %3250 = vdwg.mxu0
    %v3255 = vrot.slane %v3222, 7
    %v3256 = vrot.slane %v3235, 6
    %v3257 = vrot.slane %v3248, 5
    %v3258 = vsel %vm1842, %v3209, %v3255
    %v3259 = vsel %vm1844, %v3256, %v3257
    %v3260 = vsel %vm1846, %v3258, %v3259
    %v3262 = vadd.f32 %v3198, %v3260
    %v3263 = vxor.u32 %v3262, 2147483648
    %v3264 = vmul.f32 %v3263, 1.442695
    %v3265 = vpow.pop %v3264
    %v3266 = vadd.f32 %v3265, 1.0
    %v3267 = vrcp.pop %v3266
    %v3268 = vmul.f32 %v3266, %v3267
    %v3269 = vsub.f32 1.0, %v3268
    %v3270 = vmul.f32 %v3267, %v3269
    %v3271 = vadd.f32 %v3267, %v3270
    %vm3272 = vweird.f32 %v3266
    %vm3273 = vweird.f32 %v3267
    %vm3274 = vmor %vm3272, %vm3273
    %v3275 = vsel %vm3274, %v3267, %v3271
    %v3276 = vand.u32 2147483647, %v3266
    %vm3277 = vcmp.eq.f32.partialorder %v3276, 8.507059e+37
    %v3278 = vand.u32 %v3266, 2147483648
    %v3279 = vor.u32 1.1754944e-38, %v3278
    %v3280 = vsel %vm3277, %v3279, %v3275
    %v3281 = vmul.f32 1.0, %v3280
    %v3283 = vrot.slane %v3262, 1
    %v3285 = vxor.u32 %v3283, 2147483648
    %v3286 = vmul.f32 %v3285, 1.442695
    %v3287 = vpow.pop %v3286
    %v3288 = vadd.f32 %v3287, 1.0
    %v3289 = vrcp.pop %v3288
    %v3290 = vmul.f32 %v3288, %v3289
    %v3291 = vsub.f32 1.0, %v3290
    %v3292 = vmul.f32 %v3289, %v3291
    %v3293 = vadd.f32 %v3289, %v3292
    %vm3294 = vweird.f32 %v3288
    %vm3295 = vweird.f32 %v3289
    %vm3296 = vmor %vm3294, %vm3295
    %v3297 = vsel %vm3296, %v3289, %v3293
    %v3298 = vand.u32 2147483647, %v3288
    %vm3299 = vcmp.eq.f32.partialorder %v3298, 8.507059e+37
    %v3300 = vand.u32 %v3288, 2147483648
    %v3301 = vor.u32 1.1754944e-38, %v3300
    %v3302 = vsel %vm3299, %v3301, %v3297
    %v3303 = vmul.f32 1.0, %v3302
    %v3304 = vrot.slane %v3262, 2
    %v3306 = vtanh.pop %v3304
    %v3307 = vrot.slane %v3262, 3
    %v3309 = vxor.u32 %v3307, 2147483648
    %v3310 = vmul.f32 %v3309, 1.442695
    %v3311 = vpow.pop %v3310
    %v3312 = vadd.f32 %v3311, 1.0
    %v3313 = vrcp.pop %v3312
    %v3314 = vmul.f32 %v3312, %v3313
    %v3315 = vsub.f32 1.0, %v3314
    %v3316 = vmul.f32 %v3313, %v3315
    %v3317 = vadd.f32 %v3313, %v3316
    %vm3318 = vweird.f32 %v3312
    %vm3319 = vweird.f32 %v3313
    %vm3320 = vmor %vm3318, %vm3319
    %v3321 = vsel %vm3320, %v3313, %v3317
    %v3322 = vand.u32 2147483647, %v3312
    %vm3323 = vcmp.eq.f32.partialorder %v3322, 8.507059e+37
    %v3324 = vand.u32 %v3312, 2147483648
    %v3325 = vor.u32 1.1754944e-38, %v3324
    %v3326 = vsel %vm3323, %v3325, %v3321
    %v3327 = vmul.f32 1.0, %v3326
    %v3328 = vmul.f32 %v3303, %v2925
    %v3329 = vmul.f32 %v3281, %v3306
    %v3330 = vadd.f32 %v3328, %v3329
    %v3331 = vtanh.pop %v3330
    %v3332 = vmul.f32 %v3327, %v3331
    %v3333 = vpack.c.bf16 %v3332, %v3332
    %3334 = vmatpush.bf16.msra.mxu0 %v2366
    %3335 = vmatpush.bf16.msra.mxu0 %v2362
    %3336 = vmatpush.bf16.msra.mxu0 %v2358
    %3337 = vmatpush.bf16.msra.mxu0 %v2354
    %3338 = vmatpush.bf16.msra.mxu0 %v2350
    %3339 = vmatpush.bf16.msra.mxu0 %v2346
    %3340 = vmatpush.bf16.msra.mxu0 %v2342
    %3341 = vmatpush.bf16.msra.mxu0 %v2338
    %3342 = vmatmul.bf16.gmra.mxu0 %v3333
    %v3343 = vpop.f32.mrf.mxu0
    %v3344 = vadd.f32 %v2467, %v3343
    %v3345 = vpop.f32.mrf.mxu0
    %3346 = vdwg.mxu0
    %3347 = vmatpush.bf16.msra.mxu0 %v2398
    %3348 = vmatpush.bf16.msra.mxu0 %v2394
    %3349 = vmatpush.bf16.msra.mxu0 %v2390
    %3350 = vmatpush.bf16.msra.mxu0 %v2386
    %3351 = vmatpush.bf16.msra.mxu0 %v2382
    %3352 = vmatpush.bf16.msra.mxu0 %v2378
    %3353 = vmatpush.bf16.msra.mxu0 %v2374
    %3354 = vmatpush.bf16.msra.mxu0 %v2370
    %3355 = vmatmul.bf16.gmra.mxu0 %v3096
    %v3356 = vpop.f32.mrf.mxu0
    %v3357 = vadd.f32 %v3344, %v3356
    %v3358 = vpop.f32.mrf.mxu0
    %3359 = vdwg.mxu0
    %3360 = vmatpush.bf16.msra.mxu0 %v2367
    %3361 = vmatpush.bf16.msra.mxu0 %v2363
    %3362 = vmatpush.bf16.msra.mxu0 %v2359
    %3363 = vmatpush.bf16.msra.mxu0 %v2355
    %3364 = vmatpush.bf16.msra.mxu0 %v2351
    %3365 = vmatpush.bf16.msra.mxu0 %v2347
    %3366 = vmatpush.bf16.msra.mxu0 %v2343
    %3367 = vmatpush.bf16.msra.mxu0 %v2339
    %3368 = vmatmul.bf16.gmra.mxu0 %v3333
    %v3369 = vpop.f32.mrf.mxu0
    %v3370 = vadd.f32 %v2468, %v3369
    %v3371 = vpop.f32.mrf.mxu0
    %3372 = vdwg.mxu0
    %3373 = vmatpush.bf16.msra.mxu0 %v2399
    %3374 = vmatpush.bf16.msra.mxu0 %v2395
    %3375 = vmatpush.bf16.msra.mxu0 %v2391
    %3376 = vmatpush.bf16.msra.mxu0 %v2387
    %3377 = vmatpush.bf16.msra.mxu0 %v2383
    %3378 = vmatpush.bf16.msra.mxu0 %v2379
    %3379 = vmatpush.bf16.msra.mxu0 %v2375
    %3380 = vmatpush.bf16.msra.mxu0 %v2371
    %3381 = vmatmul.bf16.gmra.mxu0 %v3096
    %v3382 = vpop.f32.mrf.mxu0
    %v3383 = vadd.f32 %v3370, %v3382
    %v3384 = vpop.f32.mrf.mxu0
    %3385 = vdwg.mxu0
    %3386 = vmatpush.bf16.msra.mxu0 %v2368
    %3387 = vmatpush.bf16.msra.mxu0 %v2364
    %3388 = vmatpush.bf16.msra.mxu0 %v2360
    %3389 = vmatpush.bf16.msra.mxu0 %v2356
    %3390 = vmatpush.bf16.msra.mxu0 %v2352
    %3391 = vmatpush.bf16.msra.mxu0 %v2348
    %3392 = vmatpush.bf16.msra.mxu0 %v2344
    %3393 = vmatpush.bf16.msra.mxu0 %v2340
    %3394 = vmatmul.bf16.gmra.mxu0 %v3333
    %v3395 = vpop.f32.mrf.mxu0
    %v3396 = vadd.f32 %v2469, %v3395
    %v3397 = vpop.f32.mrf.mxu0
    %3398 = vdwg.mxu0
    %3399 = vmatpush.bf16.msra.mxu0 %v2400
    %3400 = vmatpush.bf16.msra.mxu0 %v2396
    %3401 = vmatpush.bf16.msra.mxu0 %v2392
    %3402 = vmatpush.bf16.msra.mxu0 %v2388
    %3403 = vmatpush.bf16.msra.mxu0 %v2384
    %3404 = vmatpush.bf16.msra.mxu0 %v2380
    %3405 = vmatpush.bf16.msra.mxu0 %v2376
    %3406 = vmatpush.bf16.msra.mxu0 %v2372
    %3407 = vmatmul.bf16.gmra.mxu0 %v3096
    %v3408 = vpop.f32.mrf.mxu0
    %v3409 = vadd.f32 %v3396, %v3408
    %v3410 = vpop.f32.mrf.mxu0
    %3411 = vdwg.mxu0
    %3412 = vmatpush.bf16.msra.mxu0 %v2369
    %3413 = vmatpush.bf16.msra.mxu0 %v2365
    %3414 = vmatpush.bf16.msra.mxu0 %v2361
    %3415 = vmatpush.bf16.msra.mxu0 %v2357
    %3416 = vmatpush.bf16.msra.mxu0 %v2353
    %3417 = vmatpush.bf16.msra.mxu0 %v2349
    %3418 = vmatpush.bf16.msra.mxu0 %v2345
    %3419 = vmatpush.bf16.msra.mxu0 %v2341
    %3420 = vmatmul.bf16.gmra.mxu0 %v3333
    %v3421 = vpop.f32.mrf.mxu0
    %v3422 = vadd.f32 %v2470, %v3421
    %v3423 = vpop.f32.mrf.mxu0
    %3424 = vdwg.mxu0
    %3425 = vmatpush.bf16.msra.mxu0 %v2401
    %3426 = vmatpush.bf16.msra.mxu0 %v2397
    %3427 = vmatpush.bf16.msra.mxu0 %v2393
    %3428 = vmatpush.bf16.msra.mxu0 %v2389
    %3429 = vmatpush.bf16.msra.mxu0 %v2385
    %3430 = vmatpush.bf16.msra.mxu0 %v2381
    %3431 = vmatpush.bf16.msra.mxu0 %v2377
    %3432 = vmatpush.bf16.msra.mxu0 %v2373
    %3433 = vmatmul.bf16.gmra.mxu0 %v3096
    %v3434 = vpop.f32.mrf.mxu0
    %v3435 = vadd.f32 %v3422, %v3434
    %v3436 = vpop.f32.mrf.mxu0
    %3437 = vdwg.mxu0
    %v3438 = vxor.u32 %v3357, 2147483648
    %v3439 = vmul.f32 %v3438, 1.442695
    %v3440 = vpow.pop %v3439
    %v3441 = vadd.f32 %v3440, 1.0
    %v3442 = vrcp.pop %v3441
    %v3443 = vmul.f32 %v3441, %v3442
    %v3444 = vsub.f32 1.0, %v3443
    %v3445 = vmul.f32 %v3442, %v3444
    %v3446 = vadd.f32 %v3442, %v3445
    %vm3447 = vweird.f32 %v3441
    %vm3448 = vweird.f32 %v3442
    %vm3449 = vmor %vm3447, %vm3448
    %v3450 = vsel %vm3449, %v3442, %v3446
    %v3451 = vand.u32 2147483647, %v3441
    %vm3452 = vcmp.eq.f32.partialorder %v3451, 8.507059e+37
    %v3453 = vand.u32 %v3441, 2147483648
    %v3454 = vor.u32 1.1754944e-38, %v3453
    %v3455 = vsel %vm3452, %v3454, %v3450
    %v3456 = vmul.f32 1.0, %v3455
    %v3457 = vxor.u32 %v3383, 2147483648
    %v3458 = vmul.f32 %v3457, 1.442695
    %v3459 = vpow.pop %v3458
    %v3460 = vadd.f32 %v3459, 1.0
    %v3461 = vrcp.pop %v3460
    %v3462 = vmul.f32 %v3460, %v3461
    %v3463 = vsub.f32 1.0, %v3462
    %v3464 = vmul.f32 %v3461, %v3463
    %v3465 = vadd.f32 %v3461, %v3464
    %vm3466 = vweird.f32 %v3460
    %vm3467 = vweird.f32 %v3461
    %vm3468 = vmor %vm3466, %vm3467
    %v3469 = vsel %vm3468, %v3461, %v3465
    %v3470 = vand.u32 2147483647, %v3460
    %vm3471 = vcmp.eq.f32.partialorder %v3470, 8.507059e+37
    %v3472 = vand.u32 %v3460, 2147483648
    %v3473 = vor.u32 1.1754944e-38, %v3472
    %v3474 = vsel %vm3471, %v3473, %v3469
    %v3475 = vmul.f32 1.0, %v3474
    %v3476 = vtanh.pop %v3409
    %v3477 = vxor.u32 %v3435, 2147483648
    %v3478 = vmul.f32 %v3477, 1.442695
    %v3479 = vpow.pop %v3478
    %v3480 = vadd.f32 %v3479, 1.0
    %v3481 = vrcp.pop %v3480
    %v3482 = vmul.f32 %v3480, %v3481
    %v3483 = vsub.f32 1.0, %v3482
    %v3484 = vmul.f32 %v3481, %v3483
    %v3485 = vadd.f32 %v3481, %v3484
    %vm3486 = vweird.f32 %v3480
    %vm3487 = vweird.f32 %v3481
    %vm3488 = vmor %vm3486, %vm3487
    %v3489 = vsel %vm3488, %v3481, %v3485
    %v3490 = vand.u32 2147483647, %v3480
    %vm3491 = vcmp.eq.f32.partialorder %v3490, 8.507059e+37
    %v3492 = vand.u32 %v3480, 2147483648
    %v3493 = vor.u32 1.1754944e-38, %v3492
    %v3494 = vsel %vm3491, %v3493, %v3489
    %v3495 = vmul.f32 1.0, %v3494
    %v3496 = vmul.f32 %v3475, %v3093
    %v3497 = vmul.f32 %v3456, %v3476
    %v3498 = vadd.f32 %v3496, %v3497
    %v3499 = vtanh.pop %v3498
    %v3500 = vmul.f32 %v3495, %v3499
    %v3501 = vpack.c.bf16 %v3500, %v3500
    %3502 = vmatpush.bf16.msra.mxu0 %v2682
    %3503 = vmatpush.bf16.msra.mxu0 %v2681
    %3504 = vmatpush.bf16.msra.mxu0 %v2680
    %3505 = vmatpush.bf16.msra.mxu0 %v2679
    %3506 = vmatpush.bf16.msra.mxu0 %v2678
    %3507 = vmatpush.bf16.msra.mxu0 %v2677
    %3508 = vmatpush.bf16.msra.mxu0 %v2676
    %3509 = vmatpush.bf16.msra.mxu0 %v2675
    %3510 = vmatmul.bf16.gmra.mxu0 %v3501
    %v3511 = vpop.f32.mrf.mxu0
    %v3512 = vadd.f32 %v1798, %v3511
    %v3513 = vpop.f32.mrf.mxu0
    %3514 = vdwg.mxu0
    %v3515 = vsel %vm2704, %v3512, -inf
    %3516 = vmax.xlane.f32.xlu0 %v3515
    %v3517 = vpop.xlane.xlu0 %3516
    %vm3518 = vcmp.eq.f32.partialorder %v3512, %v3517
    %v3519 = vsel %vm3518, %v1800, 8
    %v3520 = vsel %vm2704, %v3519, 2147483647
    %v3521 = vand.u32 %v3520, 65535
    %v3522 = vshra.s32 %v3520, 16
    %v3523 = vcvt.s32.f32 %v3521
    %v3524 = vcvt.s32.f32 %v3522
    %3525 = vmin.xlane.f32.xlu0 %v3524
    %v3526 = vpop.xlane.xlu0 %3525
    %vm3527 = vcmp.eq.f32.partialorder %v3524, %v3526
    %v3528 = vsel %vm3527, %v3523, inf
    %3529 = vmin.xlane.f32.xlu0 %v3528
    %v3530 = vpop.xlane.xlu0 %3529
    %v3531 = vcvt.f32.s32 %v3530
    %v3532 = vcvt.f32.s32 %v3526
    %v3533 = vshll.u32 %v3532, 16
    %v3534 = vadd.s32 %v3533, %v3531
    %s3535 = sld [smem:[#allocation4 + $0x2]]
    %v3536 = vsub.f32 %v3512, %v3517
    %v3537 = vmul.f32 %v3536, 1.442695
    %v3538 = vpow.pop %v3537
    %v3539 = vsel %vm2704, %v3538, 0.0
    %3540 = vadd.xlane.f32.xlu0 %v3539
    %v3541 = vpop.xlane.xlu0 %3540
    %v3542 = vlog2.pop %v3541
    %v3543 = vmul.f32 %v3542, 0.6931472
    %v3544 = vadd.f32 %v3517, %v3543
    %v3545 = vstv %s3535
    %vm3546 = vcmp.eq.s32.totalorder %v1800, %v3545
    %v3547 = vsel %vm3546, %v3512, 0.0
    %v3548 = vsel %vm2704, %v3547, 0.0
    %3549 = vadd.xlane.f32.xlu0 %v3548
    %v3550 = vpop.xlane.xlu0 %3549
    %p3551 = scmp.eq.s32.totalorder %s3535, 0
    %v3552 = vsub.f32 %v3544, %v3550
    %s3553 = scalar_select %p3551, 1, 0
    %v3554 = vstv %s3553
    %vm3555 = vcmp.eq.s32.totalorder %v3554, 1
    %v3556 = vsel %vm3555, 0.0, %v3552
    %v3557 = vadd.f32 %v3152, %v3556
    %s3558 = scalar_lea.vmem [#allocation3], 3
    %v3559 = vld [vmem:[%s3558] ss:$8 sm:$0xf]
    %v3560 = vperm.slane %v3534, 0
    %vm3561 = vcmp.eq.s32.totalorder %v1802, %v3560
    %v3562 = vsel %vm3561, 1, 0
    %vm3563 = vcmp.eq.s32.totalorder %v3562, 1
    %v3564 = vsel %vm3563, %v1681, 0.0
    %v3565 = vsel %vm3563, %v1682, 0.0
    %v3566 = vsel %vm3563, %v1683, 0.0
    %v3567 = vsel %vm3563, %v1684, 0.0
    %v3568 = vrot.slane %v3564, 4
    %v3569 = vadd.f32 %v3564, %v3568
    %v3570 = vrot.slane %v3569, 2
    %v3571 = vadd.f32 %v3569, %v3570
    %v3572 = vrot.slane %v3571, 1
    %v3573 = vadd.f32 %v3571, %v3572
    %v3574 = vrot.slane %v3565, 4
    %v3575 = vadd.f32 %v3565, %v3574
    %v3576 = vrot.slane %v3575, 2
    %v3577 = vadd.f32 %v3575, %v3576
    %v3578 = vrot.slane %v3577, 1
    %v3579 = vadd.f32 %v3577, %v3578
    %v3580 = vrot.slane %v3566, 4
    %v3581 = vadd.f32 %v3566, %v3580
    %v3582 = vrot.slane %v3581, 2
    %v3583 = vadd.f32 %v3581, %v3582
    %v3584 = vrot.slane %v3583, 1
    %v3585 = vadd.f32 %v3583, %v3584
    %v3586 = vrot.slane %v3567, 4
    %v3587 = vadd.f32 %v3567, %v3586
    %v3588 = vrot.slane %v3587, 2
    %v3589 = vadd.f32 %v3587, %v3588
    %v3590 = vrot.slane %v3589, 1
    %v3591 = vadd.f32 %v3589, %v3590
    %v3596 = vrot.slane %v3579, 7
    %v3597 = vrot.slane %v3585, 6
    %v3598 = vrot.slane %v3591, 5
    %v3599 = vsel %vm1842, %v3573, %v3596
    %v3600 = vsel %vm1844, %v3597, %v3598
    %v3601 = vsel %vm1846, %v3599, %v3600
    %v3603 = vadd.f32 %v3559, %v3601
    %3604 = vmatpush.bf16.msra.mxu0 %v1974
    %3605 = vmatpush.bf16.msra.mxu0 %v1970
    %3606 = vmatpush.bf16.msra.mxu0 %v1966
    %3607 = vmatpush.bf16.msra.mxu0 %v1962
    %3608 = vmatpush.bf16.msra.mxu0 %v1958
    %3609 = vmatpush.bf16.msra.mxu0 %v1954
    %3610 = vmatpush.bf16.msra.mxu0 %v1950
    %3611 = vmatpush.bf16.msra.mxu0 %v1946
    %3612 = vmatmul.bf16.gmra.mxu0 %v3333
    %v3613 = vpop.f32.mrf.mxu0
    %v3614 = vadd.f32 0.0, %v3613
    %v3615 = vpop.f32.mrf.mxu0
    %3616 = vdwg.mxu0
    %3617 = vmatpush.bf16.msra.mxu0 %v1975
    %3618 = vmatpush.bf16.msra.mxu0 %v1971
    %3619 = vmatpush.bf16.msra.mxu0 %v1967
    %3620 = vmatpush.bf16.msra.mxu0 %v1963
    %3621 = vmatpush.bf16.msra.mxu0 %v1959
    %3622 = vmatpush.bf16.msra.mxu0 %v1955
    %3623 = vmatpush.bf16.msra.mxu0 %v1951
    %3624 = vmatpush.bf16.msra.mxu0 %v1947
    %3625 = vmatmul.bf16.gmra.mxu0 %v3333
    %v3626 = vpop.f32.mrf.mxu0
    %v3627 = vadd.f32 0.0, %v3626
    %v3628 = vpop.f32.mrf.mxu0
    %3629 = vdwg.mxu0
    %3630 = vmatpush.bf16.msra.mxu0 %v1976
    %3631 = vmatpush.bf16.msra.mxu0 %v1972
    %3632 = vmatpush.bf16.msra.mxu0 %v1968
    %3633 = vmatpush.bf16.msra.mxu0 %v1964
    %3634 = vmatpush.bf16.msra.mxu0 %v1960
    %3635 = vmatpush.bf16.msra.mxu0 %v1956
    %3636 = vmatpush.bf16.msra.mxu0 %v1952
    %3637 = vmatpush.bf16.msra.mxu0 %v1948
    %3638 = vmatmul.bf16.gmra.mxu0 %v3333
    %v3639 = vpop.f32.mrf.mxu0
    %v3640 = vadd.f32 0.0, %v3639
    %v3641 = vpop.f32.mrf.mxu0
    %3642 = vdwg.mxu0
    %3643 = vmatpush.bf16.msra.mxu0 %v1977
    %3644 = vmatpush.bf16.msra.mxu0 %v1973
    %3645 = vmatpush.bf16.msra.mxu0 %v1969
    %3646 = vmatpush.bf16.msra.mxu0 %v1965
    %3647 = vmatpush.bf16.msra.mxu0 %v1961
    %3648 = vmatpush.bf16.msra.mxu0 %v1957
    %3649 = vmatpush.bf16.msra.mxu0 %v1953
    %3650 = vmatpush.bf16.msra.mxu0 %v1949
    %3651 = vmatmul.bf16.gmra.mxu0 %v3333
    %v3652 = vpop.f32.mrf.mxu0
    %v3653 = vadd.f32 0.0, %v3652
    %v3654 = vpop.f32.mrf.mxu0
    %3655 = vdwg.mxu0
    %v3660 = vrot.slane %v3627, 7
    %v3661 = vrot.slane %v3640, 6
    %v3662 = vrot.slane %v3653, 5
    %v3663 = vsel %vm1842, %v3614, %v3660
    %v3664 = vsel %vm1844, %v3661, %v3662
    %v3665 = vsel %vm1846, %v3663, %v3664
    %v3667 = vadd.f32 %v3603, %v3665
    %v3668 = vxor.u32 %v3667, 2147483648
    %v3669 = vmul.f32 %v3668, 1.442695
    %v3670 = vpow.pop %v3669
    %v3671 = vadd.f32 %v3670, 1.0
    %v3672 = vrcp.pop %v3671
    %v3673 = vmul.f32 %v3671, %v3672
    %v3674 = vsub.f32 1.0, %v3673
    %v3675 = vmul.f32 %v3672, %v3674
    %v3676 = vadd.f32 %v3672, %v3675
    %vm3677 = vweird.f32 %v3671
    %vm3678 = vweird.f32 %v3672
    %vm3679 = vmor %vm3677, %vm3678
    %v3680 = vsel %vm3679, %v3672, %v3676
    %v3681 = vand.u32 2147483647, %v3671
    %vm3682 = vcmp.eq.f32.partialorder %v3681, 8.507059e+37
    %v3683 = vand.u32 %v3671, 2147483648
    %v3684 = vor.u32 1.1754944e-38, %v3683
    %v3685 = vsel %vm3682, %v3684, %v3680
    %v3686 = vmul.f32 1.0, %v3685
    %v3688 = vrot.slane %v3667, 1
    %v3690 = vxor.u32 %v3688, 2147483648
    %v3691 = vmul.f32 %v3690, 1.442695
    %v3692 = vpow.pop %v3691
    %v3693 = vadd.f32 %v3692, 1.0
    %v3694 = vrcp.pop %v3693
    %v3695 = vmul.f32 %v3693, %v3694
    %v3696 = vsub.f32 1.0, %v3695
    %v3697 = vmul.f32 %v3694, %v3696
    %v3698 = vadd.f32 %v3694, %v3697
    %vm3699 = vweird.f32 %v3693
    %vm3700 = vweird.f32 %v3694
    %vm3701 = vmor %vm3699, %vm3700
    %v3702 = vsel %vm3701, %v3694, %v3698
    %v3703 = vand.u32 2147483647, %v3693
    %vm3704 = vcmp.eq.f32.partialorder %v3703, 8.507059e+37
    %v3705 = vand.u32 %v3693, 2147483648
    %v3706 = vor.u32 1.1754944e-38, %v3705
    %v3707 = vsel %vm3704, %v3706, %v3702
    %v3708 = vmul.f32 1.0, %v3707
    %v3709 = vrot.slane %v3667, 2
    %v3711 = vtanh.pop %v3709
    %v3712 = vrot.slane %v3667, 3
    %v3714 = vxor.u32 %v3712, 2147483648
    %v3715 = vmul.f32 %v3714, 1.442695
    %v3716 = vpow.pop %v3715
    %v3717 = vadd.f32 %v3716, 1.0
    %v3718 = vrcp.pop %v3717
    %v3719 = vmul.f32 %v3717, %v3718
    %v3720 = vsub.f32 1.0, %v3719
    %v3721 = vmul.f32 %v3718, %v3720
    %v3722 = vadd.f32 %v3718, %v3721
    %vm3723 = vweird.f32 %v3717
    %vm3724 = vweird.f32 %v3718
    %vm3725 = vmor %vm3723, %vm3724
    %v3726 = vsel %vm3725, %v3718, %v3722
    %v3727 = vand.u32 2147483647, %v3717
    %vm3728 = vcmp.eq.f32.partialorder %v3727, 8.507059e+37
    %v3729 = vand.u32 %v3717, 2147483648
    %v3730 = vor.u32 1.1754944e-38, %v3729
    %v3731 = vsel %vm3728, %v3730, %v3726
    %v3732 = vmul.f32 1.0, %v3731
    %v3733 = vmul.f32 %v3708, %v3330
    %v3734 = vmul.f32 %v3686, %v3711
    %v3735 = vadd.f32 %v3733, %v3734
    %v3736 = vtanh.pop %v3735
    %v3737 = vmul.f32 %v3732, %v3736
    %v3738 = vpack.c.bf16 %v3737, %v3737
    %3739 = vmatpush.bf16.msra.mxu0 %v2366
    %3740 = vmatpush.bf16.msra.mxu0 %v2362
    %3741 = vmatpush.bf16.msra.mxu0 %v2358
    %3742 = vmatpush.bf16.msra.mxu0 %v2354
    %3743 = vmatpush.bf16.msra.mxu0 %v2350
    %3744 = vmatpush.bf16.msra.mxu0 %v2346
    %3745 = vmatpush.bf16.msra.mxu0 %v2342
    %3746 = vmatpush.bf16.msra.mxu0 %v2338
    %3747 = vmatmul.bf16.gmra.mxu0 %v3738
    %v3748 = vpop.f32.mrf.mxu0
    %v3749 = vadd.f32 %v2467, %v3748
    %v3750 = vpop.f32.mrf.mxu0
    %3751 = vdwg.mxu0
    %3752 = vmatpush.bf16.msra.mxu0 %v2398
    %3753 = vmatpush.bf16.msra.mxu0 %v2394
    %3754 = vmatpush.bf16.msra.mxu0 %v2390
    %3755 = vmatpush.bf16.msra.mxu0 %v2386
    %3756 = vmatpush.bf16.msra.mxu0 %v2382
    %3757 = vmatpush.bf16.msra.mxu0 %v2378
    %3758 = vmatpush.bf16.msra.mxu0 %v2374
    %3759 = vmatpush.bf16.msra.mxu0 %v2370
    %3760 = vmatmul.bf16.gmra.mxu0 %v3501
    %v3761 = vpop.f32.mrf.mxu0
    %v3762 = vadd.f32 %v3749, %v3761
    %v3763 = vpop.f32.mrf.mxu0
    %3764 = vdwg.mxu0
    %3765 = vmatpush.bf16.msra.mxu0 %v2367
    %3766 = vmatpush.bf16.msra.mxu0 %v2363
    %3767 = vmatpush.bf16.msra.mxu0 %v2359
    %3768 = vmatpush.bf16.msra.mxu0 %v2355
    %3769 = vmatpush.bf16.msra.mxu0 %v2351
    %3770 = vmatpush.bf16.msra.mxu0 %v2347
    %3771 = vmatpush.bf16.msra.mxu0 %v2343
    %3772 = vmatpush.bf16.msra.mxu0 %v2339
    %3773 = vmatmul.bf16.gmra.mxu0 %v3738
    %v3774 = vpop.f32.mrf.mxu0
    %v3775 = vadd.f32 %v2468, %v3774
    %v3776 = vpop.f32.mrf.mxu0
    %3777 = vdwg.mxu0
    %3778 = vmatpush.bf16.msra.mxu0 %v2399
    %3779 = vmatpush.bf16.msra.mxu0 %v2395
    %3780 = vmatpush.bf16.msra.mxu0 %v2391
    %3781 = vmatpush.bf16.msra.mxu0 %v2387
    %3782 = vmatpush.bf16.msra.mxu0 %v2383
    %3783 = vmatpush.bf16.msra.mxu0 %v2379
    %3784 = vmatpush.bf16.msra.mxu0 %v2375
    %3785 = vmatpush.bf16.msra.mxu0 %v2371
    %3786 = vmatmul.bf16.gmra.mxu0 %v3501
    %v3787 = vpop.f32.mrf.mxu0
    %v3788 = vadd.f32 %v3775, %v3787
    %v3789 = vpop.f32.mrf.mxu0
    %3790 = vdwg.mxu0
    %3791 = vmatpush.bf16.msra.mxu0 %v2368
    %3792 = vmatpush.bf16.msra.mxu0 %v2364
    %3793 = vmatpush.bf16.msra.mxu0 %v2360
    %3794 = vmatpush.bf16.msra.mxu0 %v2356
    %3795 = vmatpush.bf16.msra.mxu0 %v2352
    %3796 = vmatpush.bf16.msra.mxu0 %v2348
    %3797 = vmatpush.bf16.msra.mxu0 %v2344
    %3798 = vmatpush.bf16.msra.mxu0 %v2340
    %3799 = vmatmul.bf16.gmra.mxu0 %v3738
    %v3800 = vpop.f32.mrf.mxu0
    %v3801 = vadd.f32 %v2469, %v3800
    %v3802 = vpop.f32.mrf.mxu0
    %3803 = vdwg.mxu0
    %3804 = vmatpush.bf16.msra.mxu0 %v2400
    %3805 = vmatpush.bf16.msra.mxu0 %v2396
    %3806 = vmatpush.bf16.msra.mxu0 %v2392
    %3807 = vmatpush.bf16.msra.mxu0 %v2388
    %3808 = vmatpush.bf16.msra.mxu0 %v2384
    %3809 = vmatpush.bf16.msra.mxu0 %v2380
    %3810 = vmatpush.bf16.msra.mxu0 %v2376
    %3811 = vmatpush.bf16.msra.mxu0 %v2372
    %3812 = vmatmul.bf16.gmra.mxu0 %v3501
    %v3813 = vpop.f32.mrf.mxu0
    %v3814 = vadd.f32 %v3801, %v3813
    %v3815 = vpop.f32.mrf.mxu0
    %3816 = vdwg.mxu0
    %3817 = vmatpush.bf16.msra.mxu0 %v2369
    %3818 = vmatpush.bf16.msra.mxu0 %v2365
    %3819 = vmatpush.bf16.msra.mxu0 %v2361
    %3820 = vmatpush.bf16.msra.mxu0 %v2357
    %3821 = vmatpush.bf16.msra.mxu0 %v2353
    %3822 = vmatpush.bf16.msra.mxu0 %v2349
    %3823 = vmatpush.bf16.msra.mxu0 %v2345
    %3824 = vmatpush.bf16.msra.mxu0 %v2341
    %3825 = vmatmul.bf16.gmra.mxu0 %v3738
    %v3826 = vpop.f32.mrf.mxu0
    %v3827 = vadd.f32 %v2470, %v3826
    %v3828 = vpop.f32.mrf.mxu0
    %3829 = vdwg.mxu0
    %3830 = vmatpush.bf16.msra.mxu0 %v2401
    %3831 = vmatpush.bf16.msra.mxu0 %v2397
    %3832 = vmatpush.bf16.msra.mxu0 %v2393
    %3833 = vmatpush.bf16.msra.mxu0 %v2389
    %3834 = vmatpush.bf16.msra.mxu0 %v2385
    %3835 = vmatpush.bf16.msra.mxu0 %v2381
    %3836 = vmatpush.bf16.msra.mxu0 %v2377
    %3837 = vmatpush.bf16.msra.mxu0 %v2373
    %3838 = vmatmul.bf16.gmra.mxu0 %v3501
    %v3839 = vpop.f32.mrf.mxu0
    %v3840 = vadd.f32 %v3827, %v3839
    %v3841 = vpop.f32.mrf.mxu0
    %3842 = vdwg.mxu0
    %v3843 = vxor.u32 %v3762, 2147483648
    %v3844 = vmul.f32 %v3843, 1.442695
    %v3845 = vpow.pop %v3844
    %v3846 = vadd.f32 %v3845, 1.0
    %v3847 = vrcp.pop %v3846
    %v3848 = vmul.f32 %v3846, %v3847
    %v3849 = vsub.f32 1.0, %v3848
    %v3850 = vmul.f32 %v3847, %v3849
    %v3851 = vadd.f32 %v3847, %v3850
    %vm3852 = vweird.f32 %v3846
    %vm3853 = vweird.f32 %v3847
    %vm3854 = vmor %vm3852, %vm3853
    %v3855 = vsel %vm3854, %v3847, %v3851
    %v3856 = vand.u32 2147483647, %v3846
    %vm3857 = vcmp.eq.f32.partialorder %v3856, 8.507059e+37
    %v3858 = vand.u32 %v3846, 2147483648
    %v3859 = vor.u32 1.1754944e-38, %v3858
    %v3860 = vsel %vm3857, %v3859, %v3855
    %v3861 = vmul.f32 1.0, %v3860
    %v3862 = vxor.u32 %v3788, 2147483648
    %v3863 = vmul.f32 %v3862, 1.442695
    %v3864 = vpow.pop %v3863
    %v3865 = vadd.f32 %v3864, 1.0
    %v3866 = vrcp.pop %v3865
    %v3867 = vmul.f32 %v3865, %v3866
    %v3868 = vsub.f32 1.0, %v3867
    %v3869 = vmul.f32 %v3866, %v3868
    %v3870 = vadd.f32 %v3866, %v3869
    %vm3871 = vweird.f32 %v3865
    %vm3872 = vweird.f32 %v3866
    %vm3873 = vmor %vm3871, %vm3872
    %v3874 = vsel %vm3873, %v3866, %v3870
    %v3875 = vand.u32 2147483647, %v3865
    %vm3876 = vcmp.eq.f32.partialorder %v3875, 8.507059e+37
    %v3877 = vand.u32 %v3865, 2147483648
    %v3878 = vor.u32 1.1754944e-38, %v3877
    %v3879 = vsel %vm3876, %v3878, %v3874
    %v3880 = vmul.f32 1.0, %v3879
    %v3881 = vtanh.pop %v3814
    %v3882 = vxor.u32 %v3840, 2147483648
    %v3883 = vmul.f32 %v3882, 1.442695
    %v3884 = vpow.pop %v3883
    %v3885 = vadd.f32 %v3884, 1.0
    %v3886 = vrcp.pop %v3885
    %v3887 = vmul.f32 %v3885, %v3886
    %v3888 = vsub.f32 1.0, %v3887
    %v3889 = vmul.f32 %v3886, %v3888
    %v3890 = vadd.f32 %v3886, %v3889
    %vm3891 = vweird.f32 %v3885
    %vm3892 = vweird.f32 %v3886
    %vm3893 = vmor %vm3891, %vm3892
    %v3894 = vsel %vm3893, %v3886, %v3890
    %v3895 = vand.u32 2147483647, %v3885
    %vm3896 = vcmp.eq.f32.partialorder %v3895, 8.507059e+37
    %v3897 = vand.u32 %v3885, 2147483648
    %v3898 = vor.u32 1.1754944e-38, %v3897
    %v3899 = vsel %vm3896, %v3898, %v3894
    %v3900 = vmul.f32 1.0, %v3899
    %v3901 = vmul.f32 %v3880, %v3498
    %v3902 = vmul.f32 %v3861, %v3881
    %v3903 = vadd.f32 %v3901, %v3902
    %v3904 = vtanh.pop %v3903
    %v3905 = vmul.f32 %v3900, %v3904
    %v3906 = vpack.c.bf16 %v3905, %v3905
    %3907 = vmatpush.bf16.msra.mxu0 %v2682
    %3908 = vmatpush.bf16.msra.mxu0 %v2681
    %3909 = vmatpush.bf16.msra.mxu0 %v2680
    %3910 = vmatpush.bf16.msra.mxu0 %v2679
    %3911 = vmatpush.bf16.msra.mxu0 %v2678
    %3912 = vmatpush.bf16.msra.mxu0 %v2677
    %3913 = vmatpush.bf16.msra.mxu0 %v2676
    %3914 = vmatpush.bf16.msra.mxu0 %v2675
    %3915 = vmatmul.bf16.gmra.mxu0 %v3906
    %v3916 = vpop.f32.mrf.mxu0
    %v3917 = vadd.f32 %v1798, %v3916
    %v3918 = vpop.f32.mrf.mxu0
    %3919 = vdwg.mxu0
    %v3920 = vsel %vm2704, %v3917, -inf
    %3921 = vmax.xlane.f32.xlu0 %v3920
    %v3922 = vpop.xlane.xlu0 %3921
    %s3923 = sld [smem:[#allocation4 + $0x3]]
    %v3924 = vsub.f32 %v3917, %v3922
    %v3925 = vmul.f32 %v3924, 1.442695
    %v3926 = vpow.pop %v3925
    %v3927 = vsel %vm2704, %v3926, 0.0
    %3928 = vadd.xlane.f32.xlu0 %v3927
    %v3929 = vpop.xlane.xlu0 %3928
    %v3930 = vlog2.pop %v3929
    %v3931 = vmul.f32 %v3930, 0.6931472
    %v3932 = vadd.f32 %v3922, %v3931
    %v3933 = vstv %s3923
    %vm3934 = vcmp.eq.s32.totalorder %v1800, %v3933
    %v3935 = vsel %vm3934, %v3917, 0.0
    %v3936 = vsel %vm2704, %v3935, 0.0
    %3937 = vadd.xlane.f32.xlu0 %v3936
    %v3938 = vpop.xlane.xlu0 %3937
    %p3939 = scmp.eq.s32.totalorder %s3923, 0
    %v3940 = vsub.f32 %v3932, %v3938
    %s3941 = scalar_select %p3939, 1, 0
    %v3942 = vstv %s3941
    %vm3943 = vcmp.eq.s32.totalorder %v3942, 1
    %v3944 = vsel %vm3943, 0.0, %v3940
    %v3945 = vadd.f32 %v3557, %v3944
    %vm3946 = vcmask 0
    %3947 = vst.msk [vmem:[#allocation17] sm:$0x1] %vm3946, %v3945
    // Predicated region
    $region82: #{tpu_custom_call.1} parent=1 // pred_check
      _
    $region83: #{tpu_custom_call.1} parent=1 // pred_check_branch
      %3949 = sbr.rel (0) target = $region85
    $region84: #{tpu_custom_call.1} parent=1 // pred_region
      %3951 = vsyncadd [#allocation6], 0
      %s3953 = sshll.u32 [#allocation17], 4
      %s3954 = int_to_ptr.vmem [resolvable:$true] %s3953
      %s3955 = sshll.u32 %s13, 4
      %s3956 = int_to_ptr.hbm [resolvable:$true] %s3955
      %3958 = dma.vmem_to_hbm [thread:$0]  %s3954, 16, %s3956, [#allocation6]
    $region85: #{tpu_custom_call.1} parent=1 // pred_fallthru
      _
    // Predicated region
    $region86: #{tpu_custom_call.1} parent=1 // pred_check
      _
    $region87: #{tpu_custom_call.1} parent=1 // pred_check_branch
      %3960 = sbr.rel (0) target = $region89
    $region88: #{tpu_custom_call.1} parent=1 // pred_region
      %3962 = dma.done [#allocation6], 16
    $region89: #{tpu_custom_call.1} parent=1 // pred_fallthru
      _
    %3963 = vsyncpa [#allocation5], 1
    %3964 = vsyncpa [#allocation10], 1
    %3965 = vsyncpa [#allocation13], 1
    %3966 = vsyncpa [#allocation16], 1
    %3967 = vsyncpa [#allocation6], 1
    %3968 = vsyncpa [#allocation7], 1

</llo_original>
